<compile_context>
chip_gen: v7x
topology: tpu7x:2x2x1
jax: 0.10.0
libtpu: 0.0.40
codegen_flags: <defaults>
</compile_context>

<pallas_src>
import jax
import jax.numpy as jnp
from jax.experimental import pallas as pl
from jax.experimental.pallas import tpu as pltpu

N_EMBED = 320
TIME_DIM = 4 * N_EMBED  # 1280


def _num_tensorcores_per_chip() -> int:
    """2 on v7x-class chips (2 TC/chip), else 1. Conservative fallback = 1."""
    try:
        kind = jax.devices()[0].device_kind.lower()
    except Exception:
        return 1
    return 2 if ("v7" in kind or "7x" in kind) else 1


def time_embedding_kernel(x_ref, w1_ref, b1_ref, w2_ref, b2_ref, o_ref):
    """Fused Linear -> SiLU -> Linear for one N-tile of the output.

    x_ref : (Bp, 320)   f32   (same block every grid step -> DMA'd once per core)
    w1_ref: (320, 1280) bf16  (same block every grid step -> DMA'd once per core)
    b1_ref: (1, 1280)   f32
    w2_ref: (1280, TN)  bf16  (per-grid-step / per-core tile)
    b2_ref: (1, TN)     f32
    o_ref : (Bp, TN)    f32
    """
    x = x_ref[...].astype(jnp.bfloat16)                                 # (Bp, 320)
    # First linear: bf16 MXU matmul, f32 accumulate.  Each core executes
    # exactly one grid step in every configuration, so this is never recomputed.
    h = jnp.dot(x, w1_ref[...], preferred_element_type=jnp.float32)     # (Bp, 1280) f32
    h = h + b1_ref[...]
    # SiLU kept in f32 (v5e VPU/EUP have no bf16 path).
    h = h * jax.nn.sigmoid(h)
    # Second linear on this output tile.
    y = jnp.dot(h.astype(jnp.bfloat16), w2_ref[...],
                preferred_element_type=jnp.float32)                     # (Bp, TN)
    o_ref[...] = (y + b2_ref[...]).astype(o_ref.dtype)


def time_embedding(time, w1, b1, w2, b2):
    """time: (B, 320) f32; w1: (320, 1280) bf16; w2: (1280, 1280) bf16."""
    B = time.shape[0]
    # Pad batch rows to a full f32 sublane (8) so loads/stores are unmasked.
    Bp = max(8, ((B + 7) // 8) * 8)
    if Bp != B:
        time = jnp.pad(time, ((0, Bp - B), (0, 0)))

    # Single grid step on 1-TC chips (v5e/v6e); 2-way N split only where a
    # second TensorCore exists to take the other half (v7x).
    n_tiles = _num_tensorcores_per_chip()
    tn = TIME_DIM // n_tiles  # 1280 or 640; both are multiples of 128 lanes.

    weight_bytes = w1.size * w1.dtype.itemsize + w2.size * w2.dtype.itemsize
    act_bytes = (time.size + b1.size + b2.size + Bp * TIME_DIM) * 4
    cost = pl.CostEstimate(
        flops=2 * Bp * (N_EMBED * TIME_DIM * n_tiles + TIME_DIM * TIME_DIM),
        transcendentals=Bp * TIME_DIM * n_tiles,
        bytes_accessed=weight_bytes + act_bytes,
    )

    out = pl.pallas_call(
        time_embedding_kernel,
        out_shape=jax.ShapeDtypeStruct((Bp, TIME_DIM), jnp.float32),
        grid=(n_tiles,),
        in_specs=[
            pl.BlockSpec((Bp, N_EMBED), lambda j: (0, 0)),        # x   (resident)
            pl.BlockSpec((N_EMBED, TIME_DIM), lambda j: (0, 0)),  # w1  (resident)
            pl.BlockSpec((1, TIME_DIM), lambda j: (0, 0)),        # b1  (resident)
            pl.BlockSpec((TIME_DIM, tn), lambda j: (0, j)),       # w2  tile
            pl.BlockSpec((1, tn), lambda j: (0, j)),              # b2  tile
        ],
        out_specs=pl.BlockSpec((Bp, tn), lambda j: (0, j)),
        compiler_params=pltpu.CompilerParams(
            # "parallel" only meaningful on multi-TC chips; pure overhead-free
            # single step otherwise.
            dimension_semantics=("parallel",) if n_tiles > 1 else ("arbitrary",),
            vmem_limit_bytes=12 << 20,
        ),
        cost_estimate=cost,
    )(time, w1, b1, w2, b2)
    return out[:B]


class Diffusion:
    """JAX/Pallas analogue of the PyTorch `Diffusion` module."""

    def __init__(self, key):
        k1, k2, k3, k4 = jax.random.split(key, 4)
        # Deterministic synthetic init.  PyTorch Linear weight is (out, in);
        # we store the transpose (in, out) so the kernel does x @ W.
        w1_pt = jax.random.normal(k1, (TIME_DIM, N_EMBED), jnp.float32) * 0.02
        w2_pt = jax.random.normal(k2, (TIME_DIM, TIME_DIM), jnp.float32) * 0.02
        # f32 master weights kept for the reference check; bf16 copies are what
        # the kernel streams from HBM (halves the dominant weight DMA).
        self.w1_f32 = jnp.asarray(w1_pt.T)                               # (320, 1280)
        self.w2_f32 = jnp.asarray(w2_pt.T)                               # (1280, 1280)
        self.w1 = self.w1_f32.astype(jnp.bfloat16)
        self.w2 = self.w2_f32.astype(jnp.bfloat16)
        self.b1 = (jax.random.normal(k3, (TIME_DIM,), jnp.float32) * 0.02).reshape(1, TIME_DIM)
        self.b2 = (jax.random.normal(k4, (TIME_DIM,), jnp.float32) * 0.02).reshape(1, TIME_DIM)

    def __call__(self, latent, context, time):
        t = time_embedding(time, self.w1, self.b1, self.w2, self.b2)
        # TODO(synk): reference UNet is `nn.Module([SwitchSequential()])` (invalid)
        # and UNetFinal(320, 4) is never defined, so only the TimeEmbedding path
        # is computed; `latent` and `context` are accepted but unused.
        return t


def _reference_time_embedding(time, w1_f32, b1, w2_f32, b2):
    """Pure-f32 reference against the un-quantized master weights."""
    h = time @ w1_f32 + b1
    h = h * jax.nn.sigmoid(h)
    return h @ w2_f32 + b2


if __name__ == "__main__":
    key = jax.random.PRNGKey(0)
    k_lat, k_ctx, k_time, k_params = jax.random.split(key, 4)

    B = 2
    latent = jax.random.normal(k_lat, (B, 4, 16, 16), jnp.float32)   # NCHW latent (unused by UNet stub)
    context = jax.random.normal(k_ctx, (B, 8, 32), jnp.float32)      # (batch, seq, dim) (unused)
    time = jax.random.normal(k_time, (B, N_EMBED), jnp.float32)      # (batch, 320)

    model = Diffusion(k_params)
    out = model(latent, context, time)
    out = jax.block_until_ready(out)

    ref = _reference_time_embedding(time, model.w1_f32, model.b1, model.w2_f32, model.b2)
    assert out.shape == (B, TIME_DIM)
    # bf16 weight storage + bf16 MXU operands vs f32 reference => loosened tolerance.
    assert jnp.allclose(out, ref, atol=2e-2, rtol=2e-2)

    print("KERNEL_OK")
</pallas_src>

<mosaic_0001>
module attributes {stable_mosaic.version = 11 : i64} {
  func.func @time_embedding_kernel(%arg0: i32, %arg1: memref<8x320xf32, #tpu.memory_space<vmem>>, %arg2: memref<320x1280xbf16, #tpu.memory_space<vmem>>, %arg3: memref<1x1280xf32, #tpu.memory_space<vmem>>, %arg4: memref<1280x1280xbf16, #tpu.memory_space<vmem>>, %arg5: memref<1x1280xf32, #tpu.memory_space<vmem>>, %arg6: memref<8x1280xf32, #tpu.memory_space<vmem>>) attributes {dimension_semantics = [#tpu.dimension_semantics<arbitrary>], iteration_bounds = array<i64: 1>, scalar_prefetch = 0 : i64, scratch_operands = 0 : i64, tpu.core_type = #tpu.core_type<tc>, window_params = [{pipeline_mode = #tpu.pipeline_mode<synchronous>, transform_indices = @transform_0, window_bounds = array<i64: 8, 320>}, {pipeline_mode = #tpu.pipeline_mode<synchronous>, transform_indices = @transform_1, window_bounds = array<i64: 320, 1280>}, {pipeline_mode = #tpu.pipeline_mode<synchronous>, transform_indices = @transform_2, window_bounds = array<i64: 1, 1280>}, {transform_indices = @transform_3, window_bounds = array<i64: 1280, 1280>}, {transform_indices = @transform_4, window_bounds = array<i64: 1, 1280>}, {transform_indices = @transform_5, window_bounds = array<i64: 8, 1280>}]} {
    %c0 = arith.constant 0 : index
    %c0_0 = arith.constant 0 : index
    %0 = vector.load %arg1[%c0, %c0_0] : memref<8x320xf32, #tpu.memory_space<vmem>>, vector<8x320xf32>
    %1 = arith.truncf %0 : vector<8x320xf32> to vector<8x320xbf16>
    %c0_1 = arith.constant 0 : index
    %c0_2 = arith.constant 0 : index
    %2 = vector.load %arg2[%c0_1, %c0_2] : memref<320x1280xbf16, #tpu.memory_space<vmem>>, vector<320x1280xbf16>
    %cst = arith.constant dense<0.000000e+00> : vector<8x1280xf32>
    %3 = tpu.matmul %1, %2, %cst {dimension_numbers = #tpu.dot_dimension_numbers<[1], [0], [0], [1], [0, 0, 1, 1], [], []>} : vector<8x320xbf16>, vector<320x1280xbf16>, vector<8x1280xf32> -> vector<8x1280xf32>
    %c0_3 = arith.constant 0 : index
    %c0_4 = arith.constant 0 : index
    %4 = vector.load %arg3[%c0_3, %c0_4] : memref<1x1280xf32, #tpu.memory_space<vmem>>, vector<1x1280xf32>
    %5 = vector.broadcast %4 : vector<1x1280xf32> to vector<8x1280xf32>
    %6 = arith.addf %3, %5 : vector<8x1280xf32>
    %7 = arith.negf %6 : vector<8x1280xf32>
    %8 = math.exp %7 : vector<8x1280xf32>
    %cst_5 = arith.constant 1.000000e+00 : f32
    %9 = vector.broadcast %cst_5 : f32 to vector<8x1280xf32>
    %10 = arith.addf %9, %8 : vector<8x1280xf32>
    %11 = arith.divf %9, %10 : vector<8x1280xf32>
    %12 = arith.mulf %6, %11 : vector<8x1280xf32>
    %13 = arith.truncf %12 : vector<8x1280xf32> to vector<8x1280xbf16>
    %c0_6 = arith.constant 0 : index
    %c0_7 = arith.constant 0 : index
    %14 = vector.load %arg4[%c0_6, %c0_7] : memref<1280x1280xbf16, #tpu.memory_space<vmem>>, vector<1280x1280xbf16>
    %cst_8 = arith.constant dense<0.000000e+00> : vector<8x1280xf32>
    %15 = tpu.matmul %13, %14, %cst_8 {dimension_numbers = #tpu.dot_dimension_numbers<[1], [0], [0], [1], [0, 0, 1, 1], [], []>} : vector<8x1280xbf16>, vector<1280x1280xbf16>, vector<8x1280xf32> -> vector<8x1280xf32>
    %c0_9 = arith.constant 0 : index
    %c0_10 = arith.constant 0 : index
    %16 = vector.load %arg5[%c0_9, %c0_10] : memref<1x1280xf32, #tpu.memory_space<vmem>>, vector<1x1280xf32>
    %17 = vector.broadcast %16 : vector<1x1280xf32> to vector<8x1280xf32>
    %18 = arith.addf %15, %17 : vector<8x1280xf32>
    %c0_11 = arith.constant 0 : index
    %c0_12 = arith.constant 0 : index
    %19 = vector.load %arg6[%c0_11, %c0_12] : memref<8x1280xf32, #tpu.memory_space<vmem>>, vector<8x1280xf32>
    tpu.vector_store %arg6[%c0_11, %c0_12], %18 {strides = array<i32>} : memref<8x1280xf32, #tpu.memory_space<vmem>>, vector<8x1280xf32>,
    return
  }
  func.func @transform_0(%arg0: i32) -> (i32, i32) {
    %c0_i32 = arith.constant 0 : i32
    %c0_i32_0 = arith.constant 0 : i32
    %c0_i32_1 = arith.constant 0 : i32
    return %c0_i32, %c0_i32_0 : i32, i32
  }
  func.func @transform_1(%arg0: i32) -> (i32, i32) {
    %c0_i32 = arith.constant 0 : i32
    %c0_i32_0 = arith.constant 0 : i32
    %c0_i32_1 = arith.constant 0 : i32
    return %c0_i32, %c0_i32_0 : i32, i32
  }
  func.func @transform_2(%arg0: i32) -> (i32, i32) {
    %c0_i32 = arith.constant 0 : i32
    %c0_i32_0 = arith.constant 0 : i32
    %c0_i32_1 = arith.constant 0 : i32
    return %c0_i32, %c0_i32_0 : i32, i32
  }
  func.func @transform_3(%arg0: i32) -> (i32, i32) {
    %c0_i32 = arith.constant 0 : i32
    %c0_i32_0 = arith.constant 0 : i32
    return %c0_i32, %arg0 : i32, i32
  }
  func.func @transform_4(%arg0: i32) -> (i32, i32) {
    %c0_i32 = arith.constant 0 : i32
    %c0_i32_0 = arith.constant 0 : i32
    return %c0_i32, %arg0 : i32, i32
  }
  func.func @transform_5(%arg0: i32) -> (i32, i32) {
    %c0_i32 = arith.constant 0 : i32
    %c0_i32_0 = arith.constant 0 : i32
    return %c0_i32, %arg0 : i32, i32
  }
}

</mosaic_0001>

<llo_original>
// kernel: tpu_custom_call.1
$region0: #{tpu_custom_call.1}
  #allocation0 [shape = 'u32[]', space=smem, size = 0x4, offset = 0x4, fixed_abs, tag = 'smem constant byte address 0x4 - core index']
  #allocation1 [shape = 'u32[144,128]{1,0:T(1,128)}', space=vmem, size = 0x12000, scoped, tag = 'internal scratch']
  %s0 = inlined_call_operand.hbm [shape: f32[8,320], index: 0, kind: input, shape index: {}]
  %s1 = inlined_call_operand.hbm [shape: bf16[320,1280], index: 1, kind: input, shape index: {}]
  %s2 = inlined_call_operand.hbm [shape: f32[1,1280], index: 2, kind: input, shape index: {}]
  %s3 = inlined_call_operand.hbm [shape: bf16[1280,1280], index: 3, kind: input, shape index: {}]
  %s4 = inlined_call_operand.hbm [shape: f32[1,1280], index: 4, kind: input, shape index: {}]
  %s5 = inlined_call_operand.hbm [shape: f32[8,1280], index: 5, kind: output, shape index: {}]
  %s6 = sld [smem:[#allocation0]]
  $region50: #{tpu_custom_call.1} parent=0
    _
  %s8 = ssub.s32 1, %s6
  %s9 = scalar_select 0, %s8, %s6
  $region1: #{tpu_custom_call.1} parent=0
    #allocation2 [shape = 'u8[12288]{0}', space=vmem, size = 0x3000, scoped, tag = 'input window, operand 0, single buffered']
    #allocation3 [shape = 's32[1]{0}', space=sflag, size = 0x4, scoped, tag = 'scoped memory for tpu_custom_call.1']
    #allocation4 [shape = 's32[1]{0}', space=sflag, size = 0x4, scoped, tag = 'scoped memory for tpu_custom_call.1']
    #allocation5 [shape = 'u8[819200]{0}', space=vmem, size = 0xc8000, scoped, tag = 'input window, operand 1, single buffered']
    #allocation6 [shape = 's32[1]{0}', space=sflag, size = 0x4, scoped, tag = 'scoped memory for tpu_custom_call.1']
    #allocation7 [shape = 'u8[5120]{0}', space=vmem, size = 0x1400, scoped, tag = 'input window, operand 2, single buffered']
    #allocation8 [shape = 'u8[3276800]{0}', space=vmem, size = 0x320000, scoped, tag = 'input window, operand 3, single buffered']
    #allocation9 [shape = 's32[1]{0}', space=sflag, size = 0x4, scoped, tag = 'scoped memory for tpu_custom_call.1']
    #allocation10 [shape = 'u8[5120]{0}', space=vmem, size = 0x1400, scoped, tag = 'input window, operand 4, single buffered']
    #allocation11 [shape = 'u8[40960]{0}', space=vmem, size = 0xa000, scoped, tag = 'output window, operand 0, single buffered']
    %10 = vsyncpa [#allocation3], 0
    %11 = vsyncpa [#allocation6], 0
    %12 = vsyncpa [#allocation9], 0
    %13 = vsyncpa [#allocation4], 0
    // Predicated region
    $region2: #{tpu_custom_call.1} parent=1 // pred_check
      _
    $region3: #{tpu_custom_call.1} parent=1 // pred_check_branch
      %15 = sbr.rel (0) target = $region5
    $region4: #{tpu_custom_call.1} parent=1 // pred_region
      %s17 = ssub.s32 384, 384
      %18 = vsyncadd [#allocation3], %s17
      %s20 = sshll.u32 [#allocation2], 4
      %s21 = int_to_ptr.vmem [resolvable:$true] %s20
      %23 = dma.hbm_to_vmem [thread:$0]  %s0, 384, %s21, [#allocation3]
    $region5: #{tpu_custom_call.1} parent=1 // pred_fallthru
      _
    // Predicated region
    $region6: #{tpu_custom_call.1} parent=1 // pred_check
      _
    $region7: #{tpu_custom_call.1} parent=1 // pred_check_branch
      %25 = sbr.rel (0) target = $region9
    $region8: #{tpu_custom_call.1} parent=1 // pred_region
      %s27 = ssub.s32 25600, 25600
      %28 = vsyncadd [#allocation6], %s27
      %s29 = sshll.u32 [#allocation5], 4
      %s30 = int_to_ptr.vmem [resolvable:$true] %s29
      %35 = dma.hbm_to_vmem [thread:$0]  %s1, 25600, %s30, [#allocation6], 640, 640, 40
    $region9: #{tpu_custom_call.1} parent=1 // pred_fallthru
      _
    // Predicated region
    $region10: #{tpu_custom_call.1} parent=1 // pred_check
      _
    $region11: #{tpu_custom_call.1} parent=1 // pred_check_branch
      %37 = sbr.rel (0) target = $region13
    $region12: #{tpu_custom_call.1} parent=1 // pred_region
      %s39 = ssub.s32 160, 160
      %40 = vsyncadd [#allocation6], %s39
      %s42 = sshll.u32 [#allocation7], 4
      %s43 = int_to_ptr.vmem [resolvable:$true] %s42
      %45 = dma.hbm_to_vmem [thread:$0]  %s2, 160, %s43, [#allocation6]
    $region13: #{tpu_custom_call.1} parent=1 // pred_fallthru
      _
    // Predicated region
    $region14: #{tpu_custom_call.1} parent=1 // pred_check
      _
    $region15: #{tpu_custom_call.1} parent=1 // pred_check_branch
      %47 = sbr.rel (0) target = $region17
    $region16: #{tpu_custom_call.1} parent=1 // pred_region
      %s49 = ssub.s32 102400, 102400
      %50 = vsyncadd [#allocation9], %s49
      %s51 = sshll.u32 [#allocation8], 4
      %s52 = int_to_ptr.vmem [resolvable:$true] %s51
      %57 = dma.hbm_to_vmem [thread:$0]  %s3, 102400, %s52, [#allocation9], 640, 640, 40
    $region17: #{tpu_custom_call.1} parent=1 // pred_fallthru
      _
    // Predicated region
    $region18: #{tpu_custom_call.1} parent=1 // pred_check
      _
    $region19: #{tpu_custom_call.1} parent=1 // pred_check_branch
      %59 = sbr.rel (0) target = $region21
    $region20: #{tpu_custom_call.1} parent=1 // pred_region
      %s61 = ssub.s32 160, 160
      %62 = vsyncadd [#allocation9], %s61
      %s64 = sshll.u32 [#allocation10], 4
      %s65 = int_to_ptr.vmem [resolvable:$true] %s64
      %67 = dma.hbm_to_vmem [thread:$0]  %s4, 160, %s65, [#allocation9]
    $region21: #{tpu_custom_call.1} parent=1 // pred_fallthru
      _
    // Predicated region
    $region22: #{tpu_custom_call.1} parent=1 // pred_check
      _
    $region23: #{tpu_custom_call.1} parent=1 // pred_check_branch
      %69 = sbr.rel (0) target = $region25
    $region24: #{tpu_custom_call.1} parent=1 // pred_region
      %70 = dma.done [#allocation3], 384
    $region25: #{tpu_custom_call.1} parent=1 // pred_fallthru
      _
    // Predicated region
    $region26: #{tpu_custom_call.1} parent=1 // pred_check
      _
    $region27: #{tpu_custom_call.1} parent=1 // pred_check_branch
      %72 = sbr.rel (0) target = $region29
    $region28: #{tpu_custom_call.1} parent=1 // pred_region
      %73 = dma.done [#allocation6], 25600
    $region29: #{tpu_custom_call.1} parent=1 // pred_fallthru
      _
    // Predicated region
    $region30: #{tpu_custom_call.1} parent=1 // pred_check
      _
    $region31: #{tpu_custom_call.1} parent=1 // pred_check_branch
      %75 = sbr.rel (0) target = $region33
    $region32: #{tpu_custom_call.1} parent=1 // pred_region
      %76 = dma.done [#allocation6], 160
    $region33: #{tpu_custom_call.1} parent=1 // pred_fallthru
      _
    // Predicated region
    $region34: #{tpu_custom_call.1} parent=1 // pred_check
      _
    $region35: #{tpu_custom_call.1} parent=1 // pred_check_branch
      %78 = sbr.rel (0) target = $region37
    $region36: #{tpu_custom_call.1} parent=1 // pred_region
      %79 = dma.done [#allocation9], 102400
    $region37: #{tpu_custom_call.1} parent=1 // pred_fallthru
      _
    // Predicated region
    $region38: #{tpu_custom_call.1} parent=1 // pred_check
      _
    $region39: #{tpu_custom_call.1} parent=1 // pred_check_branch
      %81 = sbr.rel (0) target = $region41
    $region40: #{tpu_custom_call.1} parent=1 // pred_region
      %82 = dma.done [#allocation9], 160
    $region41: #{tpu_custom_call.1} parent=1 // pred_fallthru
      _
    %v84 = vld [vmem:[#allocation2] sm:$0xff]
    %v85 = vld [vmem:[#allocation2 + $0x8] sm:$0xff]
    %v86 = vld [vmem:[#allocation2 + $0x10] sm:$0xff]
    %v87 = vpack.c.bf16 %v84, %v84
    %v88 = vpack.c.bf16 %v85, %v85
    %v89 = vpack.c.bf16 %v86, %v86
    %v90 = vld [vmem:[#allocation5] sm:$0xff]
    %v91 = vld [vmem:[#allocation5 + $0x8] sm:$0xff]
    %v92 = vld [vmem:[#allocation5 + $0x10] sm:$0xff]
    %v93 = vld [vmem:[#allocation5 + $0x18] sm:$0xff]
    %v94 = vld [vmem:[#allocation5 + $0x20] sm:$0xff]
    %v95 = vld [vmem:[#allocation5 + $0x28] sm:$0xff]
    %v96 = vld [vmem:[#allocation5 + $0x30] sm:$0xff]
    %v97 = vld [vmem:[#allocation5 + $0x38] sm:$0xff]
    %v98 = vld [vmem:[#allocation5 + $0x40] sm:$0xff]
    %v99 = vld [vmem:[#allocation5 + $0x48] sm:$0xff]
    %v100 = vld [vmem:[#allocation5 + $0x50] sm:$0xff]
    %v101 = vld [vmem:[#allocation5 + $0x58] sm:$0xff]
    %v102 = vld [vmem:[#allocation5 + $0x60] sm:$0xff]
    %v103 = vld [vmem:[#allocation5 + $0x68] sm:$0xff]
    %v104 = vld [vmem:[#allocation5 + $0x70] sm:$0xff]
    %v105 = vld [vmem:[#allocation5 + $0x78] sm:$0xff]
    %v106 = vld [vmem:[#allocation5 + $0x80] sm:$0xff]
    %v107 = vld [vmem:[#allocation5 + $0x88] sm:$0xff]
    %v108 = vld [vmem:[#allocation5 + $0x90] sm:$0xff]
    %v109 = vld [vmem:[#allocation5 + $0x98] sm:$0xff]
    %v110 = vld [vmem:[#allocation5 + $0xa0] sm:$0xff]
    %v111 = vld [vmem:[#allocation5 + $0xa8] sm:$0xff]
    %v112 = vld [vmem:[#allocation5 + $0xb0] sm:$0xff]
    %v113 = vld [vmem:[#allocation5 + $0xb8] sm:$0xff]
    %v114 = vld [vmem:[#allocation5 + $0xc0] sm:$0xff]
    %v115 = vld [vmem:[#allocation5 + $0xc8] sm:$0xff]
    %v116 = vld [vmem:[#allocation5 + $0xd0] sm:$0xff]
    %v117 = vld [vmem:[#allocation5 + $0xd8] sm:$0xff]
    %v118 = vld [vmem:[#allocation5 + $0xe0] sm:$0xff]
    %v119 = vld [vmem:[#allocation5 + $0xe8] sm:$0xff]
    %v120 = vld [vmem:[#allocation5 + $0xf0] sm:$0xff]
    %v121 = vld [vmem:[#allocation5 + $0xf8] sm:$0xff]
    %v122 = vld [vmem:[#allocation5 + $0x100] sm:$0xff]
    %v123 = vld [vmem:[#allocation5 + $0x108] sm:$0xff]
    %v124 = vld [vmem:[#allocation5 + $0x110] sm:$0xff]
    %v125 = vld [vmem:[#allocation5 + $0x118] sm:$0xff]
    %v126 = vld [vmem:[#allocation5 + $0x120] sm:$0xff]
    %v127 = vld [vmem:[#allocation5 + $0x128] sm:$0xff]
    %v128 = vld [vmem:[#allocation5 + $0x130] sm:$0xff]
    %v129 = vld [vmem:[#allocation5 + $0x138] sm:$0xff]
    %v130 = vld [vmem:[#allocation5 + $0x140] sm:$0xff]
    %v131 = vld [vmem:[#allocation5 + $0x148] sm:$0xff]
    %v132 = vld [vmem:[#allocation5 + $0x150] sm:$0xff]
    %v133 = vld [vmem:[#allocation5 + $0x158] sm:$0xff]
    %v134 = vld [vmem:[#allocation5 + $0x160] sm:$0xff]
    %v135 = vld [vmem:[#allocation5 + $0x168] sm:$0xff]
    %v136 = vld [vmem:[#allocation5 + $0x170] sm:$0xff]
    %v137 = vld [vmem:[#allocation5 + $0x178] sm:$0xff]
    %v138 = vld [vmem:[#allocation5 + $0x180] sm:$0xff]
    %v139 = vld [vmem:[#allocation5 + $0x188] sm:$0xff]
    %v140 = vld [vmem:[#allocation5 + $0x190] sm:$0xff]
    %v141 = vld [vmem:[#allocation5 + $0x198] sm:$0xff]
    %v142 = vld [vmem:[#allocation5 + $0x1a0] sm:$0xff]
    %v143 = vld [vmem:[#allocation5 + $0x1a8] sm:$0xff]
    %v144 = vld [vmem:[#allocation5 + $0x1b0] sm:$0xff]
    %v145 = vld [vmem:[#allocation5 + $0x1b8] sm:$0xff]
    %v146 = vld [vmem:[#allocation5 + $0x1c0] sm:$0xff]
    %v147 = vld [vmem:[#allocation5 + $0x1c8] sm:$0xff]
    %v148 = vld [vmem:[#allocation5 + $0x1d0] sm:$0xff]
    %v149 = vld [vmem:[#allocation5 + $0x1d8] sm:$0xff]
    %v150 = vld [vmem:[#allocation5 + $0x1e0] sm:$0xff]
    %v151 = vld [vmem:[#allocation5 + $0x1e8] sm:$0xff]
    %v152 = vld [vmem:[#allocation5 + $0x1f0] sm:$0xff]
    %v153 = vld [vmem:[#allocation5 + $0x1f8] sm:$0xff]
    %v154 = vld [vmem:[#allocation5 + $0x200] sm:$0xff]
    %v155 = vld [vmem:[#allocation5 + $0x208] sm:$0xff]
    %v156 = vld [vmem:[#allocation5 + $0x210] sm:$0xff]
    %v157 = vld [vmem:[#allocation5 + $0x218] sm:$0xff]
    %v158 = vld [vmem:[#allocation5 + $0x220] sm:$0xff]
    %v159 = vld [vmem:[#allocation5 + $0x228] sm:$0xff]
    %v160 = vld [vmem:[#allocation5 + $0x230] sm:$0xff]
    %v161 = vld [vmem:[#allocation5 + $0x238] sm:$0xff]
    %v162 = vld [vmem:[#allocation5 + $0x240] sm:$0xff]
    %v163 = vld [vmem:[#allocation5 + $0x248] sm:$0xff]
    %v164 = vld [vmem:[#allocation5 + $0x250] sm:$0xff]
    %v165 = vld [vmem:[#allocation5 + $0x258] sm:$0xff]
    %v166 = vld [vmem:[#allocation5 + $0x260] sm:$0xff]
    %v167 = vld [vmem:[#allocation5 + $0x268] sm:$0xff]
    %v168 = vld [vmem:[#allocation5 + $0x270] sm:$0xff]
    %v169 = vld [vmem:[#allocation5 + $0x278] sm:$0xff]
    %v170 = vld [vmem:[#allocation5 + $0x280] sm:$0xff]
    %v171 = vld [vmem:[#allocation5 + $0x288] sm:$0xff]
    %v172 = vld [vmem:[#allocation5 + $0x290] sm:$0xff]
    %v173 = vld [vmem:[#allocation5 + $0x298] sm:$0xff]
    %v174 = vld [vmem:[#allocation5 + $0x2a0] sm:$0xff]
    %v175 = vld [vmem:[#allocation5 + $0x2a8] sm:$0xff]
    %v176 = vld [vmem:[#allocation5 + $0x2b0] sm:$0xff]
    %v177 = vld [vmem:[#allocation5 + $0x2b8] sm:$0xff]
    %v178 = vld [vmem:[#allocation5 + $0x2c0] sm:$0xff]
    %v179 = vld [vmem:[#allocation5 + $0x2c8] sm:$0xff]
    %v180 = vld [vmem:[#allocation5 + $0x2d0] sm:$0xff]
    %v181 = vld [vmem:[#allocation5 + $0x2d8] sm:$0xff]
    %v182 = vld [vmem:[#allocation5 + $0x2e0] sm:$0xff]
    %v183 = vld [vmem:[#allocation5 + $0x2e8] sm:$0xff]
    %v184 = vld [vmem:[#allocation5 + $0x2f0] sm:$0xff]
    %v185 = vld [vmem:[#allocation5 + $0x2f8] sm:$0xff]
    %v186 = vld [vmem:[#allocation5 + $0x300] sm:$0xff]
    %v187 = vld [vmem:[#allocation5 + $0x308] sm:$0xff]
    %v188 = vld [vmem:[#allocation5 + $0x310] sm:$0xff]
    %v189 = vld [vmem:[#allocation5 + $0x318] sm:$0xff]
    %v190 = vld [vmem:[#allocation5 + $0x320] sm:$0xff]
    %v191 = vld [vmem:[#allocation5 + $0x328] sm:$0xff]
    %v192 = vld [vmem:[#allocation5 + $0x330] sm:$0xff]
    %v193 = vld [vmem:[#allocation5 + $0x338] sm:$0xff]
    %v194 = vld [vmem:[#allocation5 + $0x340] sm:$0xff]
    %v195 = vld [vmem:[#allocation5 + $0x348] sm:$0xff]
    %v196 = vld [vmem:[#allocation5 + $0x350] sm:$0xff]
    %v197 = vld [vmem:[#allocation5 + $0x358] sm:$0xff]
    %v198 = vld [vmem:[#allocation5 + $0x360] sm:$0xff]
    %v199 = vld [vmem:[#allocation5 + $0x368] sm:$0xff]
    %v200 = vld [vmem:[#allocation5 + $0x370] sm:$0xff]
    %v201 = vld [vmem:[#allocation5 + $0x378] sm:$0xff]
    %v202 = vld [vmem:[#allocation5 + $0x380] sm:$0xff]
    %v203 = vld [vmem:[#allocation5 + $0x388] sm:$0xff]
    %v204 = vld [vmem:[#allocation5 + $0x390] sm:$0xff]
    %v205 = vld [vmem:[#allocation5 + $0x398] sm:$0xff]
    %v206 = vld [vmem:[#allocation5 + $0x3a0] sm:$0xff]
    %v207 = vld [vmem:[#allocation5 + $0x3a8] sm:$0xff]
    %v208 = vld [vmem:[#allocation5 + $0x3b0] sm:$0xff]
    %v209 = vld [vmem:[#allocation5 + $0x3b8] sm:$0xff]
    %v210 = vld [vmem:[#allocation5 + $0x3c0] sm:$0xff]
    %v211 = vld [vmem:[#allocation5 + $0x3c8] sm:$0xff]
    %v212 = vld [vmem:[#allocation5 + $0x3d0] sm:$0xff]
    %v213 = vld [vmem:[#allocation5 + $0x3d8] sm:$0xff]
    %v214 = vld [vmem:[#allocation5 + $0x3e0] sm:$0xff]
    %v215 = vld [vmem:[#allocation5 + $0x3e8] sm:$0xff]
    %v216 = vld [vmem:[#allocation5 + $0x3f0] sm:$0xff]
    %v217 = vld [vmem:[#allocation5 + $0x3f8] sm:$0xff]
    %v218 = vld [vmem:[#allocation5 + $0x400] sm:$0xff]
    %v219 = vld [vmem:[#allocation5 + $0x408] sm:$0xff]
    %v220 = vld [vmem:[#allocation5 + $0x410] sm:$0xff]
    %v221 = vld [vmem:[#allocation5 + $0x418] sm:$0xff]
    %v222 = vld [vmem:[#allocation5 + $0x420] sm:$0xff]
    %v223 = vld [vmem:[#allocation5 + $0x428] sm:$0xff]
    %v224 = vld [vmem:[#allocation5 + $0x430] sm:$0xff]
    %v225 = vld [vmem:[#allocation5 + $0x438] sm:$0xff]
    %v226 = vld [vmem:[#allocation5 + $0x440] sm:$0xff]
    %v227 = vld [vmem:[#allocation5 + $0x448] sm:$0xff]
    %v228 = vld [vmem:[#allocation5 + $0x450] sm:$0xff]
    %v229 = vld [vmem:[#allocation5 + $0x458] sm:$0xff]
    %v230 = vld [vmem:[#allocation5 + $0x460] sm:$0xff]
    %v231 = vld [vmem:[#allocation5 + $0x468] sm:$0xff]
    %v232 = vld [vmem:[#allocation5 + $0x470] sm:$0xff]
    %v233 = vld [vmem:[#allocation5 + $0x478] sm:$0xff]
    %v234 = vld [vmem:[#allocation5 + $0x480] sm:$0xff]
    %v235 = vld [vmem:[#allocation5 + $0x488] sm:$0xff]
    %v236 = vld [vmem:[#allocation5 + $0x490] sm:$0xff]
    %v237 = vld [vmem:[#allocation5 + $0x498] sm:$0xff]
    %v238 = vld [vmem:[#allocation5 + $0x4a0] sm:$0xff]
    %v239 = vld [vmem:[#allocation5 + $0x4a8] sm:$0xff]
    %v240 = vld [vmem:[#allocation5 + $0x4b0] sm:$0xff]
    %v241 = vld [vmem:[#allocation5 + $0x4b8] sm:$0xff]
    %v242 = vld [vmem:[#allocation5 + $0x4c0] sm:$0xff]
    %v243 = vld [vmem:[#allocation5 + $0x4c8] sm:$0xff]
    %v244 = vld [vmem:[#allocation5 + $0x4d0] sm:$0xff]
    %v245 = vld [vmem:[#allocation5 + $0x4d8] sm:$0xff]
    %v246 = vld [vmem:[#allocation5 + $0x4e0] sm:$0xff]
    %v247 = vld [vmem:[#allocation5 + $0x4e8] sm:$0xff]
    %v248 = vld [vmem:[#allocation5 + $0x4f0] sm:$0xff]
    %v249 = vld [vmem:[#allocation5 + $0x4f8] sm:$0xff]
    %v250 = vld [vmem:[#allocation5 + $0x500] sm:$0xff]
    %v251 = vld [vmem:[#allocation5 + $0x508] sm:$0xff]
    %v252 = vld [vmem:[#allocation5 + $0x510] sm:$0xff]
    %v253 = vld [vmem:[#allocation5 + $0x518] sm:$0xff]
    %v254 = vld [vmem:[#allocation5 + $0x520] sm:$0xff]
    %v255 = vld [vmem:[#allocation5 + $0x528] sm:$0xff]
    %v256 = vld [vmem:[#allocation5 + $0x530] sm:$0xff]
    %v257 = vld [vmem:[#allocation5 + $0x538] sm:$0xff]
    %v258 = vld [vmem:[#allocation5 + $0x540] sm:$0xff]
    %v259 = vld [vmem:[#allocation5 + $0x548] sm:$0xff]
    %v260 = vld [vmem:[#allocation5 + $0x550] sm:$0xff]
    %v261 = vld [vmem:[#allocation5 + $0x558] sm:$0xff]
    %v262 = vld [vmem:[#allocation5 + $0x560] sm:$0xff]
    %v263 = vld [vmem:[#allocation5 + $0x568] sm:$0xff]
    %v264 = vld [vmem:[#allocation5 + $0x570] sm:$0xff]
    %v265 = vld [vmem:[#allocation5 + $0x578] sm:$0xff]
    %v266 = vld [vmem:[#allocation5 + $0x580] sm:$0xff]
    %v267 = vld [vmem:[#allocation5 + $0x588] sm:$0xff]
    %v268 = vld [vmem:[#allocation5 + $0x590] sm:$0xff]
    %v269 = vld [vmem:[#allocation5 + $0x598] sm:$0xff]
    %v270 = vld [vmem:[#allocation5 + $0x5a0] sm:$0xff]
    %v271 = vld [vmem:[#allocation5 + $0x5a8] sm:$0xff]
    %v272 = vld [vmem:[#allocation5 + $0x5b0] sm:$0xff]
    %v273 = vld [vmem:[#allocation5 + $0x5b8] sm:$0xff]
    %v274 = vld [vmem:[#allocation5 + $0x5c0] sm:$0xff]
    %v275 = vld [vmem:[#allocation5 + $0x5c8] sm:$0xff]
    %v276 = vld [vmem:[#allocation5 + $0x5d0] sm:$0xff]
    %v277 = vld [vmem:[#allocation5 + $0x5d8] sm:$0xff]
    %v278 = vld [vmem:[#allocation5 + $0x5e0] sm:$0xff]
    %v279 = vld [vmem:[#allocation5 + $0x5e8] sm:$0xff]
    %v280 = vld [vmem:[#allocation5 + $0x5f0] sm:$0xff]
    %v281 = vld [vmem:[#allocation5 + $0x5f8] sm:$0xff]
    %v282 = vld [vmem:[#allocation5 + $0x600] sm:$0xff]
    %v283 = vld [vmem:[#allocation5 + $0x608] sm:$0xff]
    %v284 = vld [vmem:[#allocation5 + $0x610] sm:$0xff]
    %v285 = vld [vmem:[#allocation5 + $0x618] sm:$0xff]
    %v286 = vld [vmem:[#allocation5 + $0x620] sm:$0xff]
    %v287 = vld [vmem:[#allocation5 + $0x628] sm:$0xff]
    %v288 = vld [vmem:[#allocation5 + $0x630] sm:$0xff]
    %v289 = vld [vmem:[#allocation5 + $0x638] sm:$0xff]
    %v290 = vld [vmem:[#allocation7] sm:$0xff]
    %v291 = vld [vmem:[#allocation7 + $0x8] sm:$0x3]
    %v294 = vlaneseq
    %v295 = vshrl.u32 %v294, 7
    %v296 = vsub.s32 0, %v295
    %v297 = vrot.slane %v290, %v296
    %v298 = vlaneseq
    %v299 = vshrl.u32 %v298, 7
    %v300 = vsub.s32 1, %v299
    %v301 = vrot.slane %v290, %v300
    %v302 = vlaneseq
    %v303 = vshrl.u32 %v302, 7
    %v304 = vsub.s32 2, %v303
    %v305 = vrot.slane %v290, %v304
    %v306 = vlaneseq
    %v307 = vshrl.u32 %v306, 7
    %v308 = vsub.s32 3, %v307
    %v309 = vrot.slane %v290, %v308
    %v310 = vlaneseq
    %v311 = vshrl.u32 %v310, 7
    %v312 = vsub.s32 4, %v311
    %v313 = vrot.slane %v290, %v312
    %v314 = vlaneseq
    %v315 = vshrl.u32 %v314, 7
    %v316 = vsub.s32 5, %v315
    %v317 = vrot.slane %v290, %v316
    %v318 = vlaneseq
    %v319 = vshrl.u32 %v318, 7
    %v320 = vsub.s32 6, %v319
    %v321 = vrot.slane %v290, %v320
    %v322 = vlaneseq
    %v323 = vshrl.u32 %v322, 7
    %v324 = vsub.s32 7, %v323
    %v325 = vrot.slane %v290, %v324
    %v326 = vlaneseq
    %v327 = vshrl.u32 %v326, 7
    %v328 = vsub.s32 0, %v327
    %v329 = vrot.slane %v291, %v328
    %v330 = vlaneseq
    %v331 = vshrl.u32 %v330, 7
    %v332 = vsub.s32 1, %v331
    %v333 = vrot.slane %v291, %v332
    %v544 = vunpack.c.l.b16 %v90
    %v545 = vunpack.c.h.b16 %v90
    %v546 = vunpack.c.l.b16 %v91
    %v547 = vunpack.c.h.b16 %v91
    %v548 = vunpack.c.l.b16 %v92
    %v549 = vunpack.c.h.b16 %v92
    %v550 = vunpack.c.l.b16 %v93
    %v551 = vunpack.c.h.b16 %v93
    %v552 = vunpack.c.l.b16 %v94
    %v553 = vunpack.c.h.b16 %v94
    %v554 = vunpack.c.l.b16 %v95
    %v555 = vunpack.c.h.b16 %v95
    %v556 = vunpack.c.l.b16 %v96
    %v557 = vunpack.c.h.b16 %v96
    %v558 = vunpack.c.l.b16 %v97
    %v559 = vunpack.c.h.b16 %v97
    %v560 = vunpack.c.l.b16 %v98
    %v561 = vunpack.c.h.b16 %v98
    %v562 = vunpack.c.l.b16 %v99
    %v563 = vunpack.c.h.b16 %v99
    %v564 = vunpack.c.l.b16 %v100
    %v565 = vunpack.c.h.b16 %v100
    %v566 = vunpack.c.l.b16 %v101
    %v567 = vunpack.c.h.b16 %v101
    %v568 = vunpack.c.l.b16 %v102
    %v569 = vunpack.c.h.b16 %v102
    %v570 = vunpack.c.l.b16 %v103
    %v571 = vunpack.c.h.b16 %v103
    %v572 = vunpack.c.l.b16 %v104
    %v573 = vunpack.c.h.b16 %v104
    %v574 = vunpack.c.l.b16 %v105
    %v575 = vunpack.c.h.b16 %v105
    %v576 = vunpack.c.l.b16 %v106
    %v577 = vunpack.c.h.b16 %v106
    %v578 = vunpack.c.l.b16 %v107
    %v579 = vunpack.c.h.b16 %v107
    %v580 = vunpack.c.l.b16 %v108
    %v581 = vunpack.c.h.b16 %v108
    %v582 = vunpack.c.l.b16 %v109
    %v583 = vunpack.c.h.b16 %v109
    %v584 = vunpack.c.l.b16 %v110
    %v585 = vunpack.c.h.b16 %v110
    %v586 = vunpack.c.l.b16 %v111
    %v587 = vunpack.c.h.b16 %v111
    %v588 = vunpack.c.l.b16 %v112
    %v589 = vunpack.c.h.b16 %v112
    %v590 = vunpack.c.l.b16 %v113
    %v591 = vunpack.c.h.b16 %v113
    %v592 = vunpack.c.l.b16 %v114
    %v593 = vunpack.c.h.b16 %v114
    %v594 = vunpack.c.l.b16 %v115
    %v595 = vunpack.c.h.b16 %v115
    %v596 = vunpack.c.l.b16 %v116
    %v597 = vunpack.c.h.b16 %v116
    %v598 = vunpack.c.l.b16 %v117
    %v599 = vunpack.c.h.b16 %v117
    %v600 = vunpack.c.l.b16 %v118
    %v601 = vunpack.c.h.b16 %v118
    %v602 = vunpack.c.l.b16 %v119
    %v603 = vunpack.c.h.b16 %v119
    %v604 = vunpack.c.l.b16 %v120
    %v605 = vunpack.c.h.b16 %v120
    %v606 = vunpack.c.l.b16 %v121
    %v607 = vunpack.c.h.b16 %v121
    %v608 = vunpack.c.l.b16 %v122
    %v609 = vunpack.c.h.b16 %v122
    %v610 = vunpack.c.l.b16 %v123
    %v611 = vunpack.c.h.b16 %v123
    %v612 = vunpack.c.l.b16 %v124
    %v613 = vunpack.c.h.b16 %v124
    %v614 = vunpack.c.l.b16 %v125
    %v615 = vunpack.c.h.b16 %v125
    %v616 = vunpack.c.l.b16 %v126
    %v617 = vunpack.c.h.b16 %v126
    %v618 = vunpack.c.l.b16 %v127
    %v619 = vunpack.c.h.b16 %v127
    %v620 = vunpack.c.l.b16 %v128
    %v621 = vunpack.c.h.b16 %v128
    %v622 = vunpack.c.l.b16 %v129
    %v623 = vunpack.c.h.b16 %v129
    %v624 = vunpack.c.l.b16 %v130
    %v625 = vunpack.c.h.b16 %v130
    %v626 = vunpack.c.l.b16 %v131
    %v627 = vunpack.c.h.b16 %v131
    %v628 = vunpack.c.l.b16 %v132
    %v629 = vunpack.c.h.b16 %v132
    %v630 = vunpack.c.l.b16 %v133
    %v631 = vunpack.c.h.b16 %v133
    %v632 = vunpack.c.l.b16 %v134
    %v633 = vunpack.c.h.b16 %v134
    %v634 = vunpack.c.l.b16 %v135
    %v635 = vunpack.c.h.b16 %v135
    %v636 = vunpack.c.l.b16 %v136
    %v637 = vunpack.c.h.b16 %v136
    %v638 = vunpack.c.l.b16 %v137
    %v639 = vunpack.c.h.b16 %v137
    %v640 = vunpack.c.l.b16 %v138
    %v641 = vunpack.c.h.b16 %v138
    %v642 = vunpack.c.l.b16 %v139
    %v643 = vunpack.c.h.b16 %v139
    %v644 = vunpack.c.l.b16 %v140
    %v645 = vunpack.c.h.b16 %v140
    %v646 = vunpack.c.l.b16 %v141
    %v647 = vunpack.c.h.b16 %v141
    %v648 = vunpack.c.l.b16 %v142
    %v649 = vunpack.c.h.b16 %v142
    %v650 = vunpack.c.l.b16 %v143
    %v651 = vunpack.c.h.b16 %v143
    %v652 = vunpack.c.l.b16 %v144
    %v653 = vunpack.c.h.b16 %v144
    %v654 = vunpack.c.l.b16 %v145
    %v655 = vunpack.c.h.b16 %v145
    %v656 = vunpack.c.l.b16 %v146
    %v657 = vunpack.c.h.b16 %v146
    %v658 = vunpack.c.l.b16 %v147
    %v659 = vunpack.c.h.b16 %v147
    %v660 = vunpack.c.l.b16 %v148
    %v661 = vunpack.c.h.b16 %v148
    %v662 = vunpack.c.l.b16 %v149
    %v663 = vunpack.c.h.b16 %v149
    %v664 = vunpack.c.l.b16 %v150
    %v665 = vunpack.c.h.b16 %v150
    %v666 = vunpack.c.l.b16 %v151
    %v667 = vunpack.c.h.b16 %v151
    %v668 = vunpack.c.l.b16 %v152
    %v669 = vunpack.c.h.b16 %v152
    %v670 = vunpack.c.l.b16 %v153
    %v671 = vunpack.c.h.b16 %v153
    %v672 = vunpack.c.l.b16 %v154
    %v673 = vunpack.c.h.b16 %v154
    %v674 = vunpack.c.l.b16 %v155
    %v675 = vunpack.c.h.b16 %v155
    %v676 = vunpack.c.l.b16 %v156
    %v677 = vunpack.c.h.b16 %v156
    %v678 = vunpack.c.l.b16 %v157
    %v679 = vunpack.c.h.b16 %v157
    %v680 = vunpack.c.l.b16 %v158
    %v681 = vunpack.c.h.b16 %v158
    %v682 = vunpack.c.l.b16 %v159
    %v683 = vunpack.c.h.b16 %v159
    %v684 = vunpack.c.l.b16 %v160
    %v685 = vunpack.c.h.b16 %v160
    %v686 = vunpack.c.l.b16 %v161
    %v687 = vunpack.c.h.b16 %v161
    %v688 = vunpack.c.l.b16 %v162
    %v689 = vunpack.c.h.b16 %v162
    %v690 = vunpack.c.l.b16 %v163
    %v691 = vunpack.c.h.b16 %v163
    %v692 = vunpack.c.l.b16 %v164
    %v693 = vunpack.c.h.b16 %v164
    %v694 = vunpack.c.l.b16 %v165
    %v695 = vunpack.c.h.b16 %v165
    %v696 = vunpack.c.l.b16 %v166
    %v697 = vunpack.c.h.b16 %v166
    %v698 = vunpack.c.l.b16 %v167
    %v699 = vunpack.c.h.b16 %v167
    %v700 = vunpack.c.l.b16 %v168
    %v701 = vunpack.c.h.b16 %v168
    %v702 = vunpack.c.l.b16 %v169
    %v703 = vunpack.c.h.b16 %v169
    %v704 = vunpack.c.l.b16 %v170
    %v705 = vunpack.c.h.b16 %v170
    %v706 = vunpack.c.l.b16 %v171
    %v707 = vunpack.c.h.b16 %v171
    %v708 = vunpack.c.l.b16 %v172
    %v709 = vunpack.c.h.b16 %v172
    %v710 = vunpack.c.l.b16 %v173
    %v711 = vunpack.c.h.b16 %v173
    %v712 = vunpack.c.l.b16 %v174
    %v713 = vunpack.c.h.b16 %v174
    %v714 = vunpack.c.l.b16 %v175
    %v715 = vunpack.c.h.b16 %v175
    %v716 = vunpack.c.l.b16 %v176
    %v717 = vunpack.c.h.b16 %v176
    %v718 = vunpack.c.l.b16 %v177
    %v719 = vunpack.c.h.b16 %v177
    %v720 = vunpack.c.l.b16 %v178
    %v721 = vunpack.c.h.b16 %v178
    %v722 = vunpack.c.l.b16 %v179
    %v723 = vunpack.c.h.b16 %v179
    %v724 = vunpack.c.l.b16 %v180
    %v725 = vunpack.c.h.b16 %v180
    %v726 = vunpack.c.l.b16 %v181
    %v727 = vunpack.c.h.b16 %v181
    %v728 = vunpack.c.l.b16 %v182
    %v729 = vunpack.c.h.b16 %v182
    %v730 = vunpack.c.l.b16 %v183
    %v731 = vunpack.c.h.b16 %v183
    %v732 = vunpack.c.l.b16 %v184
    %v733 = vunpack.c.h.b16 %v184
    %v734 = vunpack.c.l.b16 %v185
    %v735 = vunpack.c.h.b16 %v185
    %v736 = vunpack.c.l.b16 %v186
    %v737 = vunpack.c.h.b16 %v186
    %v738 = vunpack.c.l.b16 %v187
    %v739 = vunpack.c.h.b16 %v187
    %v740 = vunpack.c.l.b16 %v188
    %v741 = vunpack.c.h.b16 %v188
    %v742 = vunpack.c.l.b16 %v189
    %v743 = vunpack.c.h.b16 %v189
    %v744 = vunpack.c.l.b16 %v190
    %v745 = vunpack.c.h.b16 %v190
    %v746 = vunpack.c.l.b16 %v191
    %v747 = vunpack.c.h.b16 %v191
    %v748 = vunpack.c.l.b16 %v192
    %v749 = vunpack.c.h.b16 %v192
    %v750 = vunpack.c.l.b16 %v193
    %v751 = vunpack.c.h.b16 %v193
    %v752 = vunpack.c.l.b16 %v194
    %v753 = vunpack.c.h.b16 %v194
    %v754 = vunpack.c.l.b16 %v195
    %v755 = vunpack.c.h.b16 %v195
    %v756 = vunpack.c.l.b16 %v196
    %v757 = vunpack.c.h.b16 %v196
    %v758 = vunpack.c.l.b16 %v197
    %v759 = vunpack.c.h.b16 %v197
    %v760 = vunpack.c.l.b16 %v198
    %v761 = vunpack.c.h.b16 %v198
    %v762 = vunpack.c.l.b16 %v199
    %v763 = vunpack.c.h.b16 %v199
    %v764 = vunpack.c.l.b16 %v200
    %v765 = vunpack.c.h.b16 %v200
    %v766 = vunpack.c.l.b16 %v201
    %v767 = vunpack.c.h.b16 %v201
    %v768 = vunpack.c.l.b16 %v202
    %v769 = vunpack.c.h.b16 %v202
    %v770 = vunpack.c.l.b16 %v203
    %v771 = vunpack.c.h.b16 %v203
    %v772 = vunpack.c.l.b16 %v204
    %v773 = vunpack.c.h.b16 %v204
    %v774 = vunpack.c.l.b16 %v205
    %v775 = vunpack.c.h.b16 %v205
    %v776 = vunpack.c.l.b16 %v206
    %v777 = vunpack.c.h.b16 %v206
    %v778 = vunpack.c.l.b16 %v207
    %v779 = vunpack.c.h.b16 %v207
    %v780 = vunpack.c.l.b16 %v208
    %v781 = vunpack.c.h.b16 %v208
    %v782 = vunpack.c.l.b16 %v209
    %v783 = vunpack.c.h.b16 %v209
    %v784 = vunpack.c.l.b16 %v210
    %v785 = vunpack.c.h.b16 %v210
    %v786 = vunpack.c.l.b16 %v211
    %v787 = vunpack.c.h.b16 %v211
    %v788 = vunpack.c.l.b16 %v212
    %v789 = vunpack.c.h.b16 %v212
    %v790 = vunpack.c.l.b16 %v213
    %v791 = vunpack.c.h.b16 %v213
    %v792 = vunpack.c.l.b16 %v214
    %v793 = vunpack.c.h.b16 %v214
    %v794 = vunpack.c.l.b16 %v215
    %v795 = vunpack.c.h.b16 %v215
    %v796 = vunpack.c.l.b16 %v216
    %v797 = vunpack.c.h.b16 %v216
    %v798 = vunpack.c.l.b16 %v217
    %v799 = vunpack.c.h.b16 %v217
    %v800 = vunpack.c.l.b16 %v218
    %v801 = vunpack.c.h.b16 %v218
    %v802 = vunpack.c.l.b16 %v219
    %v803 = vunpack.c.h.b16 %v219
    %v804 = vunpack.c.l.b16 %v220
    %v805 = vunpack.c.h.b16 %v220
    %v806 = vunpack.c.l.b16 %v221
    %v807 = vunpack.c.h.b16 %v221
    %v808 = vunpack.c.l.b16 %v222
    %v809 = vunpack.c.h.b16 %v222
    %v810 = vunpack.c.l.b16 %v223
    %v811 = vunpack.c.h.b16 %v223
    %v812 = vunpack.c.l.b16 %v224
    %v813 = vunpack.c.h.b16 %v224
    %v814 = vunpack.c.l.b16 %v225
    %v815 = vunpack.c.h.b16 %v225
    %v816 = vunpack.c.l.b16 %v226
    %v817 = vunpack.c.h.b16 %v226
    %v818 = vunpack.c.l.b16 %v227
    %v819 = vunpack.c.h.b16 %v227
    %v820 = vunpack.c.l.b16 %v228
    %v821 = vunpack.c.h.b16 %v228
    %v822 = vunpack.c.l.b16 %v229
    %v823 = vunpack.c.h.b16 %v229
    %v824 = vunpack.c.l.b16 %v230
    %v825 = vunpack.c.h.b16 %v230
    %v826 = vunpack.c.l.b16 %v231
    %v827 = vunpack.c.h.b16 %v231
    %v828 = vunpack.c.l.b16 %v232
    %v829 = vunpack.c.h.b16 %v232
    %v830 = vunpack.c.l.b16 %v233
    %v831 = vunpack.c.h.b16 %v233
    %v832 = vunpack.c.l.b16 %v234
    %v833 = vunpack.c.h.b16 %v234
    %v834 = vunpack.c.l.b16 %v235
    %v835 = vunpack.c.h.b16 %v235
    %v836 = vunpack.c.l.b16 %v236
    %v837 = vunpack.c.h.b16 %v236
    %v838 = vunpack.c.l.b16 %v237
    %v839 = vunpack.c.h.b16 %v237
    %v840 = vunpack.c.l.b16 %v238
    %v841 = vunpack.c.h.b16 %v238
    %v842 = vunpack.c.l.b16 %v239
    %v843 = vunpack.c.h.b16 %v239
    %v844 = vunpack.c.l.b16 %v240
    %v845 = vunpack.c.h.b16 %v240
    %v846 = vunpack.c.l.b16 %v241
    %v847 = vunpack.c.h.b16 %v241
    %v848 = vunpack.c.l.b16 %v242
    %v849 = vunpack.c.h.b16 %v242
    %v850 = vunpack.c.l.b16 %v243
    %v851 = vunpack.c.h.b16 %v243
    %v852 = vunpack.c.l.b16 %v244
    %v853 = vunpack.c.h.b16 %v244
    %v854 = vunpack.c.l.b16 %v245
    %v855 = vunpack.c.h.b16 %v245
    %v856 = vunpack.c.l.b16 %v246
    %v857 = vunpack.c.h.b16 %v246
    %v858 = vunpack.c.l.b16 %v247
    %v859 = vunpack.c.h.b16 %v247
    %v860 = vunpack.c.l.b16 %v248
    %v861 = vunpack.c.h.b16 %v248
    %v862 = vunpack.c.l.b16 %v249
    %v863 = vunpack.c.h.b16 %v249
    %v864 = vunpack.c.l.b16 %v250
    %v865 = vunpack.c.h.b16 %v250
    %v866 = vunpack.c.l.b16 %v251
    %v867 = vunpack.c.h.b16 %v251
    %v868 = vunpack.c.l.b16 %v252
    %v869 = vunpack.c.h.b16 %v252
    %v870 = vunpack.c.l.b16 %v253
    %v871 = vunpack.c.h.b16 %v253
    %v872 = vunpack.c.l.b16 %v254
    %v873 = vunpack.c.h.b16 %v254
    %v874 = vunpack.c.l.b16 %v255
    %v875 = vunpack.c.h.b16 %v255
    %v876 = vunpack.c.l.b16 %v256
    %v877 = vunpack.c.h.b16 %v256
    %v878 = vunpack.c.l.b16 %v257
    %v879 = vunpack.c.h.b16 %v257
    %v880 = vunpack.c.l.b16 %v258
    %v881 = vunpack.c.h.b16 %v258
    %v882 = vunpack.c.l.b16 %v259
    %v883 = vunpack.c.h.b16 %v259
    %v884 = vunpack.c.l.b16 %v260
    %v885 = vunpack.c.h.b16 %v260
    %v886 = vunpack.c.l.b16 %v261
    %v887 = vunpack.c.h.b16 %v261
    %v888 = vunpack.c.l.b16 %v262
    %v889 = vunpack.c.h.b16 %v262
    %v890 = vunpack.c.l.b16 %v263
    %v891 = vunpack.c.h.b16 %v263
    %v892 = vunpack.c.l.b16 %v264
    %v893 = vunpack.c.h.b16 %v264
    %v894 = vunpack.c.l.b16 %v265
    %v895 = vunpack.c.h.b16 %v265
    %v896 = vunpack.c.l.b16 %v266
    %v897 = vunpack.c.h.b16 %v266
    %v898 = vunpack.c.l.b16 %v267
    %v899 = vunpack.c.h.b16 %v267
    %v900 = vunpack.c.l.b16 %v268
    %v901 = vunpack.c.h.b16 %v268
    %v902 = vunpack.c.l.b16 %v269
    %v903 = vunpack.c.h.b16 %v269
    %v904 = vunpack.c.l.b16 %v270
    %v905 = vunpack.c.h.b16 %v270
    %v906 = vunpack.c.l.b16 %v271
    %v907 = vunpack.c.h.b16 %v271
    %v908 = vunpack.c.l.b16 %v272
    %v909 = vunpack.c.h.b16 %v272
    %v910 = vunpack.c.l.b16 %v273
    %v911 = vunpack.c.h.b16 %v273
    %v912 = vunpack.c.l.b16 %v274
    %v913 = vunpack.c.h.b16 %v274
    %v914 = vunpack.c.l.b16 %v275
    %v915 = vunpack.c.h.b16 %v275
    %v916 = vunpack.c.l.b16 %v276
    %v917 = vunpack.c.h.b16 %v276
    %v918 = vunpack.c.l.b16 %v277
    %v919 = vunpack.c.h.b16 %v277
    %v920 = vunpack.c.l.b16 %v278
    %v921 = vunpack.c.h.b16 %v278
    %v922 = vunpack.c.l.b16 %v279
    %v923 = vunpack.c.h.b16 %v279
    %v924 = vunpack.c.l.b16 %v280
    %v925 = vunpack.c.h.b16 %v280
    %v926 = vunpack.c.l.b16 %v281
    %v927 = vunpack.c.h.b16 %v281
    %v928 = vunpack.c.l.b16 %v282
    %v929 = vunpack.c.h.b16 %v282
    %v930 = vunpack.c.l.b16 %v283
    %v931 = vunpack.c.h.b16 %v283
    %v932 = vunpack.c.l.b16 %v284
    %v933 = vunpack.c.h.b16 %v284
    %v934 = vunpack.c.l.b16 %v285
    %v935 = vunpack.c.h.b16 %v285
    %v936 = vunpack.c.l.b16 %v286
    %v937 = vunpack.c.h.b16 %v286
    %v938 = vunpack.c.l.b16 %v287
    %v939 = vunpack.c.h.b16 %v287
    %v940 = vunpack.c.l.b16 %v288
    %v941 = vunpack.c.h.b16 %v288
    %v942 = vunpack.c.l.b16 %v289
    %v943 = vunpack.c.h.b16 %v289
    %v944 = vpack.c.b16 %v554, %v544
    %v945 = vpack.c.b16 %v555, %v545
    %v946 = vpack.c.b16 %v556, %v546
    %v947 = vpack.c.b16 %v557, %v547
    %v948 = vpack.c.b16 %v558, %v548
    %v949 = vpack.c.b16 %v559, %v549
    %v950 = vpack.c.b16 %v560, %v550
    %v951 = vpack.c.b16 %v561, %v551
    %v952 = vpack.c.b16 %v562, %v552
    %v953 = vpack.c.b16 %v563, %v553
    %v954 = vpack.c.b16 %v574, %v564
    %v955 = vpack.c.b16 %v575, %v565
    %v956 = vpack.c.b16 %v576, %v566
    %v957 = vpack.c.b16 %v577, %v567
    %v958 = vpack.c.b16 %v578, %v568
    %v959 = vpack.c.b16 %v579, %v569
    %v960 = vpack.c.b16 %v580, %v570
    %v961 = vpack.c.b16 %v581, %v571
    %v962 = vpack.c.b16 %v582, %v572
    %v963 = vpack.c.b16 %v583, %v573
    %v964 = vpack.c.b16 %v594, %v584
    %v965 = vpack.c.b16 %v595, %v585
    %v966 = vpack.c.b16 %v596, %v586
    %v967 = vpack.c.b16 %v597, %v587
    %v968 = vpack.c.b16 %v598, %v588
    %v969 = vpack.c.b16 %v599, %v589
    %v970 = vpack.c.b16 %v600, %v590
    %v971 = vpack.c.b16 %v601, %v591
    %v972 = vpack.c.b16 %v602, %v592
    %v973 = vpack.c.b16 %v603, %v593
    %v974 = vpack.c.b16 %v614, %v604
    %v975 = vpack.c.b16 %v615, %v605
    %v976 = vpack.c.b16 %v616, %v606
    %v977 = vpack.c.b16 %v617, %v607
    %v978 = vpack.c.b16 %v618, %v608
    %v979 = vpack.c.b16 %v619, %v609
    %v980 = vpack.c.b16 %v620, %v610
    %v981 = vpack.c.b16 %v621, %v611
    %v982 = vpack.c.b16 %v622, %v612
    %v983 = vpack.c.b16 %v623, %v613
    %v984 = vpack.c.b16 %v634, %v624
    %v985 = vpack.c.b16 %v635, %v625
    %v986 = vpack.c.b16 %v636, %v626
    %v987 = vpack.c.b16 %v637, %v627
    %v988 = vpack.c.b16 %v638, %v628
    %v989 = vpack.c.b16 %v639, %v629
    %v990 = vpack.c.b16 %v640, %v630
    %v991 = vpack.c.b16 %v641, %v631
    %v992 = vpack.c.b16 %v642, %v632
    %v993 = vpack.c.b16 %v643, %v633
    %v994 = vpack.c.b16 %v654, %v644
    %v995 = vpack.c.b16 %v655, %v645
    %v996 = vpack.c.b16 %v656, %v646
    %v997 = vpack.c.b16 %v657, %v647
    %v998 = vpack.c.b16 %v658, %v648
    %v999 = vpack.c.b16 %v659, %v649
    %v1000 = vpack.c.b16 %v660, %v650
    %v1001 = vpack.c.b16 %v661, %v651
    %v1002 = vpack.c.b16 %v662, %v652
    %v1003 = vpack.c.b16 %v663, %v653
    %v1004 = vpack.c.b16 %v674, %v664
    %v1005 = vpack.c.b16 %v675, %v665
    %v1006 = vpack.c.b16 %v676, %v666
    %v1007 = vpack.c.b16 %v677, %v667
    %v1008 = vpack.c.b16 %v678, %v668
    %v1009 = vpack.c.b16 %v679, %v669
    %v1010 = vpack.c.b16 %v680, %v670
    %v1011 = vpack.c.b16 %v681, %v671
    %v1012 = vpack.c.b16 %v682, %v672
    %v1013 = vpack.c.b16 %v683, %v673
    %v1014 = vpack.c.b16 %v694, %v684
    %v1015 = vpack.c.b16 %v695, %v685
    %v1016 = vpack.c.b16 %v696, %v686
    %v1017 = vpack.c.b16 %v697, %v687
    %v1018 = vpack.c.b16 %v698, %v688
    %v1019 = vpack.c.b16 %v699, %v689
    %v1020 = vpack.c.b16 %v700, %v690
    %v1021 = vpack.c.b16 %v701, %v691
    %v1022 = vpack.c.b16 %v702, %v692
    %v1023 = vpack.c.b16 %v703, %v693
    %v1024 = vpack.c.b16 %v714, %v704
    %v1025 = vpack.c.b16 %v715, %v705
    %v1026 = vpack.c.b16 %v716, %v706
    %v1027 = vpack.c.b16 %v717, %v707
    %v1028 = vpack.c.b16 %v718, %v708
    %v1029 = vpack.c.b16 %v719, %v709
    %v1030 = vpack.c.b16 %v720, %v710
    %v1031 = vpack.c.b16 %v721, %v711
    %v1032 = vpack.c.b16 %v722, %v712
    %v1033 = vpack.c.b16 %v723, %v713
    %v1034 = vpack.c.b16 %v734, %v724
    %v1035 = vpack.c.b16 %v735, %v725
    %v1036 = vpack.c.b16 %v736, %v726
    %v1037 = vpack.c.b16 %v737, %v727
    %v1038 = vpack.c.b16 %v738, %v728
    %v1039 = vpack.c.b16 %v739, %v729
    %v1040 = vpack.c.b16 %v740, %v730
    %v1041 = vpack.c.b16 %v741, %v731
    %v1042 = vpack.c.b16 %v742, %v732
    %v1043 = vpack.c.b16 %v743, %v733
    %v1044 = vpack.c.b16 %v754, %v744
    %v1045 = vpack.c.b16 %v755, %v745
    %v1046 = vpack.c.b16 %v756, %v746
    %v1047 = vpack.c.b16 %v757, %v747
    %v1048 = vpack.c.b16 %v758, %v748
    %v1049 = vpack.c.b16 %v759, %v749
    %v1050 = vpack.c.b16 %v760, %v750
    %v1051 = vpack.c.b16 %v761, %v751
    %v1052 = vpack.c.b16 %v762, %v752
    %v1053 = vpack.c.b16 %v763, %v753
    %v1054 = vpack.c.b16 %v774, %v764
    %v1055 = vpack.c.b16 %v775, %v765
    %v1056 = vpack.c.b16 %v776, %v766
    %v1057 = vpack.c.b16 %v777, %v767
    %v1058 = vpack.c.b16 %v778, %v768
    %v1059 = vpack.c.b16 %v779, %v769
    %v1060 = vpack.c.b16 %v780, %v770
    %v1061 = vpack.c.b16 %v781, %v771
    %v1062 = vpack.c.b16 %v782, %v772
    %v1063 = vpack.c.b16 %v783, %v773
    %v1064 = vpack.c.b16 %v794, %v784
    %v1065 = vpack.c.b16 %v795, %v785
    %v1066 = vpack.c.b16 %v796, %v786
    %v1067 = vpack.c.b16 %v797, %v787
    %v1068 = vpack.c.b16 %v798, %v788
    %v1069 = vpack.c.b16 %v799, %v789
    %v1070 = vpack.c.b16 %v800, %v790
    %v1071 = vpack.c.b16 %v801, %v791
    %v1072 = vpack.c.b16 %v802, %v792
    %v1073 = vpack.c.b16 %v803, %v793
    %v1074 = vpack.c.b16 %v814, %v804
    %v1075 = vpack.c.b16 %v815, %v805
    %v1076 = vpack.c.b16 %v816, %v806
    %v1077 = vpack.c.b16 %v817, %v807
    %v1078 = vpack.c.b16 %v818, %v808
    %v1079 = vpack.c.b16 %v819, %v809
    %v1080 = vpack.c.b16 %v820, %v810
    %v1081 = vpack.c.b16 %v821, %v811
    %v1082 = vpack.c.b16 %v822, %v812
    %v1083 = vpack.c.b16 %v823, %v813
    %v1084 = vpack.c.b16 %v834, %v824
    %v1085 = vpack.c.b16 %v835, %v825
    %v1086 = vpack.c.b16 %v836, %v826
    %v1087 = vpack.c.b16 %v837, %v827
    %v1088 = vpack.c.b16 %v838, %v828
    %v1089 = vpack.c.b16 %v839, %v829
    %v1090 = vpack.c.b16 %v840, %v830
    %v1091 = vpack.c.b16 %v841, %v831
    %v1092 = vpack.c.b16 %v842, %v832
    %v1093 = vpack.c.b16 %v843, %v833
    %v1094 = vpack.c.b16 %v854, %v844
    %v1095 = vpack.c.b16 %v855, %v845
    %v1096 = vpack.c.b16 %v856, %v846
    %v1097 = vpack.c.b16 %v857, %v847
    %v1098 = vpack.c.b16 %v858, %v848
    %v1099 = vpack.c.b16 %v859, %v849
    %v1100 = vpack.c.b16 %v860, %v850
    %v1101 = vpack.c.b16 %v861, %v851
    %v1102 = vpack.c.b16 %v862, %v852
    %v1103 = vpack.c.b16 %v863, %v853
    %v1104 = vpack.c.b16 %v874, %v864
    %v1105 = vpack.c.b16 %v875, %v865
    %v1106 = vpack.c.b16 %v876, %v866
    %v1107 = vpack.c.b16 %v877, %v867
    %v1108 = vpack.c.b16 %v878, %v868
    %v1109 = vpack.c.b16 %v879, %v869
    %v1110 = vpack.c.b16 %v880, %v870
    %v1111 = vpack.c.b16 %v881, %v871
    %v1112 = vpack.c.b16 %v882, %v872
    %v1113 = vpack.c.b16 %v883, %v873
    %v1114 = vpack.c.b16 %v894, %v884
    %v1115 = vpack.c.b16 %v895, %v885
    %v1116 = vpack.c.b16 %v896, %v886
    %v1117 = vpack.c.b16 %v897, %v887
    %v1118 = vpack.c.b16 %v898, %v888
    %v1119 = vpack.c.b16 %v899, %v889
    %v1120 = vpack.c.b16 %v900, %v890
    %v1121 = vpack.c.b16 %v901, %v891
    %v1122 = vpack.c.b16 %v902, %v892
    %v1123 = vpack.c.b16 %v903, %v893
    %v1124 = vpack.c.b16 %v914, %v904
    %v1125 = vpack.c.b16 %v915, %v905
    %v1126 = vpack.c.b16 %v916, %v906
    %v1127 = vpack.c.b16 %v917, %v907
    %v1128 = vpack.c.b16 %v918, %v908
    %v1129 = vpack.c.b16 %v919, %v909
    %v1130 = vpack.c.b16 %v920, %v910
    %v1131 = vpack.c.b16 %v921, %v911
    %v1132 = vpack.c.b16 %v922, %v912
    %v1133 = vpack.c.b16 %v923, %v913
    %v1134 = vpack.c.b16 %v934, %v924
    %v1135 = vpack.c.b16 %v935, %v925
    %v1136 = vpack.c.b16 %v936, %v926
    %v1137 = vpack.c.b16 %v937, %v927
    %v1138 = vpack.c.b16 %v938, %v928
    %v1139 = vpack.c.b16 %v939, %v929
    %v1140 = vpack.c.b16 %v940, %v930
    %v1141 = vpack.c.b16 %v941, %v931
    %v1142 = vpack.c.b16 %v942, %v932
    %v1143 = vpack.c.b16 %v943, %v933
    %vm1344 = vcmask 523264
    %v1346 = vsel %vm1344, %v89, 0
    %1348 = vmatprep.subr.bf16.mxu0 %v945
    %1349 = vmatpush1.bf16.msra.mxu0 %v944
    %1350 = vmatprep.subr.bf16.mxu0 %v955
    %1351 = vmatpush1.bf16.msra.mxu0 %v954
    %1352 = vmatprep.subr.bf16.mxu0 %v965
    %1353 = vmatpush1.bf16.msra.mxu0 %v964
    %1354 = vmatprep.subr.bf16.mxu0 %v975
    %1355 = vmatpush1.bf16.msra.mxu0 %v974
    %1356 = vmatprep.subr.bf16.mxu0 %v985
    %1357 = vmatpush1.bf16.msra.mxu0 %v984
    %1358 = vmatprep.subr.bf16.mxu0 %v995
    %1359 = vmatpush1.bf16.msra.mxu0 %v994
    %1360 = vmatprep.subr.bf16.mxu0 %v1005
    %1361 = vmatpush1.bf16.msra.mxu0 %v1004
    %1362 = vmatprep.subr.bf16.mxu0 %v1015
    %1363 = vmatpush1.bf16.msra.mxu0 %v1014
    %1364 = vmatprep.subr.bf16.mxu0 %v1025
    %1365 = vmatpush1.bf16.msra.mxu0 %v1024
    %1366 = vmatprep.subr.bf16.mxu0 %v1035
    %1367 = vmatpush1.bf16.msra.mxu0 %v1034
    %1368 = vmatprep.subr.bf16.mxu0 %v1045
    %1369 = vmatpush1.bf16.msra.mxu0 %v1044
    %1370 = vmatprep.subr.bf16.mxu0 %v1055
    %1371 = vmatpush1.bf16.msra.mxu0 %v1054
    %1372 = vmatprep.subr.bf16.mxu0 %v1065
    %1373 = vmatpush1.bf16.msra.mxu0 %v1064
    %1374 = vmatprep.subr.bf16.mxu0 %v1075
    %1375 = vmatpush1.bf16.msra.mxu0 %v1074
    %1376 = vmatprep.subr.bf16.mxu0 %v1085
    %1377 = vmatpush1.bf16.msra.mxu0 %v1084
    %1378 = vmatprep.subr.bf16.mxu0 %v1095
    %1379 = vmatpush1.bf16.msra.mxu0 %v1094
    %1380 = vmatprep.mubr.bf16.mxu0 %v88
    %1381 = vmatmul.mubr.bf16.gmra.mrb[0].mxu0 %v87
    %v1382 = vpop.f32.mrb[0].mxu0
    %v1383 = vadd.f32 %v297, %v1382
    %v1384 = vpop.f32.mrb[0].mxu0
    %v1385 = vadd.f32 %v301, %v1384
    %v1386 = vpop.f32.mrb[0].mxu0
    %v1387 = vpop.f32.mrb[0].mxu0
    %1388 = vdwg.mxu0
    %1389 = vmatprep.subr.bf16.mxu0 %v1105
    %1390 = vmatpush1.bf16.msra.mxu0 %v1104
    %1391 = vmatprep.subr.bf16.mxu0 %v1115
    %1392 = vmatpush1.bf16.msra.mxu0 %v1114
    %1393 = vmatprep.subr.bf16.mxu0 %v1125
    %1394 = vmatpush1.bf16.msra.mxu0 %v1124
    %1395 = vmatprep.subr.bf16.mxu0 %v1135
    %1396 = vmatpush1.bf16.msra.mxu0 %v1134
    %1397 = vmatprep.subr.bf16.mxu0 0
    %1398 = vmatpush1.bf16.msra.mxu0 0
    %1399 = vmatprep.subr.bf16.mxu0 0
    %1400 = vmatpush1.bf16.msra.mxu0 0
    %1401 = vmatprep.subr.bf16.mxu0 0
    %1402 = vmatpush1.bf16.msra.mxu0 0
    %1403 = vmatprep.subr.bf16.mxu0 0
    %1404 = vmatpush1.bf16.msra.mxu0 0
    %1405 = vmatprep.subr.bf16.mxu0 0
    %1406 = vmatpush1.bf16.msra.mxu0 0
    %1407 = vmatprep.subr.bf16.mxu0 0
    %1408 = vmatpush1.bf16.msra.mxu0 0
    %1409 = vmatprep.subr.bf16.mxu0 0
    %1410 = vmatpush1.bf16.msra.mxu0 0
    %1411 = vmatprep.subr.bf16.mxu0 0
    %1412 = vmatpush1.bf16.msra.mxu0 0
    %1413 = vmatprep.subr.bf16.mxu0 0
    %1414 = vmatpush1.bf16.msra.mxu0 0
    %1415 = vmatprep.subr.bf16.mxu0 0
    %1416 = vmatpush1.bf16.msra.mxu0 0
    %1417 = vmatprep.subr.bf16.mxu0 0
    %1418 = vmatpush1.bf16.msra.mxu0 0
    %1419 = vmatprep.subr.bf16.mxu0 0
    %1420 = vmatpush1.bf16.msra.mxu0 0
    %1421 = vmatprep.mubr.bf16.mxu0 0
    %1422 = vmatmul.mubr.bf16.gmra.mrb[0].mxu0 %v1346
    %v1423 = vpop.f32.mrb[0].mxu0
    %v1424 = vadd.f32 %v1383, %v1423
    %v1425 = vpop.f32.mrb[0].mxu0
    %v1426 = vadd.f32 %v1385, %v1425
    %v1427 = vpop.f32.mrb[0].mxu0
    %v1428 = vpop.f32.mrb[0].mxu0
    %1429 = vdwg.mxu0
    %1430 = vmatprep.subr.bf16.mxu0 %v947
    %1431 = vmatpush1.bf16.msra.mxu0 %v946
    %1432 = vmatprep.subr.bf16.mxu0 %v957
    %1433 = vmatpush1.bf16.msra.mxu0 %v956
    %1434 = vmatprep.subr.bf16.mxu0 %v967
    %1435 = vmatpush1.bf16.msra.mxu0 %v966
    %1436 = vmatprep.subr.bf16.mxu0 %v977
    %1437 = vmatpush1.bf16.msra.mxu0 %v976
    %1438 = vmatprep.subr.bf16.mxu0 %v987
    %1439 = vmatpush1.bf16.msra.mxu0 %v986
    %1440 = vmatprep.subr.bf16.mxu0 %v997
    %1441 = vmatpush1.bf16.msra.mxu0 %v996
    %1442 = vmatprep.subr.bf16.mxu0 %v1007
    %1443 = vmatpush1.bf16.msra.mxu0 %v1006
    %1444 = vmatprep.subr.bf16.mxu0 %v1017
    %1445 = vmatpush1.bf16.msra.mxu0 %v1016
    %1446 = vmatprep.subr.bf16.mxu0 %v1027
    %1447 = vmatpush1.bf16.msra.mxu0 %v1026
    %1448 = vmatprep.subr.bf16.mxu0 %v1037
    %1449 = vmatpush1.bf16.msra.mxu0 %v1036
    %1450 = vmatprep.subr.bf16.mxu0 %v1047
    %1451 = vmatpush1.bf16.msra.mxu0 %v1046
    %1452 = vmatprep.subr.bf16.mxu0 %v1057
    %1453 = vmatpush1.bf16.msra.mxu0 %v1056
    %1454 = vmatprep.subr.bf16.mxu0 %v1067
    %1455 = vmatpush1.bf16.msra.mxu0 %v1066
    %1456 = vmatprep.subr.bf16.mxu0 %v1077
    %1457 = vmatpush1.bf16.msra.mxu0 %v1076
    %1458 = vmatprep.subr.bf16.mxu0 %v1087
    %1459 = vmatpush1.bf16.msra.mxu0 %v1086
    %1460 = vmatprep.subr.bf16.mxu0 %v1097
    %1461 = vmatpush1.bf16.msra.mxu0 %v1096
    %1462 = vmatprep.mubr.bf16.mxu0 %v88
    %1463 = vmatmul.mubr.bf16.gmra.mrb[0].mxu0 %v87
    %v1464 = vpop.f32.mrb[0].mxu0
    %v1465 = vadd.f32 %v305, %v1464
    %v1466 = vpop.f32.mrb[0].mxu0
    %v1467 = vadd.f32 %v309, %v1466
    %v1468 = vpop.f32.mrb[0].mxu0
    %v1469 = vpop.f32.mrb[0].mxu0
    %1470 = vdwg.mxu0
    %1471 = vmatprep.subr.bf16.mxu0 %v1107
    %1472 = vmatpush1.bf16.msra.mxu0 %v1106
    %1473 = vmatprep.subr.bf16.mxu0 %v1117
    %1474 = vmatpush1.bf16.msra.mxu0 %v1116
    %1475 = vmatprep.subr.bf16.mxu0 %v1127
    %1476 = vmatpush1.bf16.msra.mxu0 %v1126
    %1477 = vmatprep.subr.bf16.mxu0 %v1137
    %1478 = vmatpush1.bf16.msra.mxu0 %v1136
    %1479 = vmatprep.subr.bf16.mxu0 0
    %1480 = vmatpush1.bf16.msra.mxu0 0
    %1481 = vmatprep.subr.bf16.mxu0 0
    %1482 = vmatpush1.bf16.msra.mxu0 0
    %1483 = vmatprep.subr.bf16.mxu0 0
    %1484 = vmatpush1.bf16.msra.mxu0 0
    %1485 = vmatprep.subr.bf16.mxu0 0
    %1486 = vmatpush1.bf16.msra.mxu0 0
    %1487 = vmatprep.subr.bf16.mxu0 0
    %1488 = vmatpush1.bf16.msra.mxu0 0
    %1489 = vmatprep.subr.bf16.mxu0 0
    %1490 = vmatpush1.bf16.msra.mxu0 0
    %1491 = vmatprep.subr.bf16.mxu0 0
    %1492 = vmatpush1.bf16.msra.mxu0 0
    %1493 = vmatprep.subr.bf16.mxu0 0
    %1494 = vmatpush1.bf16.msra.mxu0 0
    %1495 = vmatprep.subr.bf16.mxu0 0
    %1496 = vmatpush1.bf16.msra.mxu0 0
    %1497 = vmatprep.subr.bf16.mxu0 0
    %1498 = vmatpush1.bf16.msra.mxu0 0
    %1499 = vmatprep.subr.bf16.mxu0 0
    %1500 = vmatpush1.bf16.msra.mxu0 0
    %1501 = vmatprep.subr.bf16.mxu0 0
    %1502 = vmatpush1.bf16.msra.mxu0 0
    %1503 = vmatprep.mubr.bf16.mxu0 0
    %1504 = vmatmul.mubr.bf16.gmra.mrb[0].mxu0 %v1346
    %v1505 = vpop.f32.mrb[0].mxu0
    %v1506 = vadd.f32 %v1465, %v1505
    %v1507 = vpop.f32.mrb[0].mxu0
    %v1508 = vadd.f32 %v1467, %v1507
    %v1509 = vpop.f32.mrb[0].mxu0
    %v1510 = vpop.f32.mrb[0].mxu0
    %1511 = vdwg.mxu0
    %1512 = vmatprep.subr.bf16.mxu0 %v949
    %1513 = vmatpush1.bf16.msra.mxu0 %v948
    %1514 = vmatprep.subr.bf16.mxu0 %v959
    %1515 = vmatpush1.bf16.msra.mxu0 %v958
    %1516 = vmatprep.subr.bf16.mxu0 %v969
    %1517 = vmatpush1.bf16.msra.mxu0 %v968
    %1518 = vmatprep.subr.bf16.mxu0 %v979
    %1519 = vmatpush1.bf16.msra.mxu0 %v978
    %1520 = vmatprep.subr.bf16.mxu0 %v989
    %1521 = vmatpush1.bf16.msra.mxu0 %v988
    %1522 = vmatprep.subr.bf16.mxu0 %v999
    %1523 = vmatpush1.bf16.msra.mxu0 %v998
    %1524 = vmatprep.subr.bf16.mxu0 %v1009
    %1525 = vmatpush1.bf16.msra.mxu0 %v1008
    %1526 = vmatprep.subr.bf16.mxu0 %v1019
    %1527 = vmatpush1.bf16.msra.mxu0 %v1018
    %1528 = vmatprep.subr.bf16.mxu0 %v1029
    %1529 = vmatpush1.bf16.msra.mxu0 %v1028
    %1530 = vmatprep.subr.bf16.mxu0 %v1039
    %1531 = vmatpush1.bf16.msra.mxu0 %v1038
    %1532 = vmatprep.subr.bf16.mxu0 %v1049
    %1533 = vmatpush1.bf16.msra.mxu0 %v1048
    %1534 = vmatprep.subr.bf16.mxu0 %v1059
    %1535 = vmatpush1.bf16.msra.mxu0 %v1058
    %1536 = vmatprep.subr.bf16.mxu0 %v1069
    %1537 = vmatpush1.bf16.msra.mxu0 %v1068
    %1538 = vmatprep.subr.bf16.mxu0 %v1079
    %1539 = vmatpush1.bf16.msra.mxu0 %v1078
    %1540 = vmatprep.subr.bf16.mxu0 %v1089
    %1541 = vmatpush1.bf16.msra.mxu0 %v1088
    %1542 = vmatprep.subr.bf16.mxu0 %v1099
    %1543 = vmatpush1.bf16.msra.mxu0 %v1098
    %1544 = vmatprep.mubr.bf16.mxu0 %v88
    %1545 = vmatmul.mubr.bf16.gmra.mrb[0].mxu0 %v87
    %v1546 = vpop.f32.mrb[0].mxu0
    %v1547 = vadd.f32 %v313, %v1546
    %v1548 = vpop.f32.mrb[0].mxu0
    %v1549 = vadd.f32 %v317, %v1548
    %v1550 = vpop.f32.mrb[0].mxu0
    %v1551 = vpop.f32.mrb[0].mxu0
    %1552 = vdwg.mxu0
    %1553 = vmatprep.subr.bf16.mxu0 %v1109
    %1554 = vmatpush1.bf16.msra.mxu0 %v1108
    %1555 = vmatprep.subr.bf16.mxu0 %v1119
    %1556 = vmatpush1.bf16.msra.mxu0 %v1118
    %1557 = vmatprep.subr.bf16.mxu0 %v1129
    %1558 = vmatpush1.bf16.msra.mxu0 %v1128
    %1559 = vmatprep.subr.bf16.mxu0 %v1139
    %1560 = vmatpush1.bf16.msra.mxu0 %v1138
    %1561 = vmatprep.subr.bf16.mxu0 0
    %1562 = vmatpush1.bf16.msra.mxu0 0
    %1563 = vmatprep.subr.bf16.mxu0 0
    %1564 = vmatpush1.bf16.msra.mxu0 0
    %1565 = vmatprep.subr.bf16.mxu0 0
    %1566 = vmatpush1.bf16.msra.mxu0 0
    %1567 = vmatprep.subr.bf16.mxu0 0
    %1568 = vmatpush1.bf16.msra.mxu0 0
    %1569 = vmatprep.subr.bf16.mxu0 0
    %1570 = vmatpush1.bf16.msra.mxu0 0
    %1571 = vmatprep.subr.bf16.mxu0 0
    %1572 = vmatpush1.bf16.msra.mxu0 0
    %1573 = vmatprep.subr.bf16.mxu0 0
    %1574 = vmatpush1.bf16.msra.mxu0 0
    %1575 = vmatprep.subr.bf16.mxu0 0
    %1576 = vmatpush1.bf16.msra.mxu0 0
    %1577 = vmatprep.subr.bf16.mxu0 0
    %1578 = vmatpush1.bf16.msra.mxu0 0
    %1579 = vmatprep.subr.bf16.mxu0 0
    %1580 = vmatpush1.bf16.msra.mxu0 0
    %1581 = vmatprep.subr.bf16.mxu0 0
    %1582 = vmatpush1.bf16.msra.mxu0 0
    %1583 = vmatprep.subr.bf16.mxu0 0
    %1584 = vmatpush1.bf16.msra.mxu0 0
    %1585 = vmatprep.mubr.bf16.mxu0 0
    %1586 = vmatmul.mubr.bf16.gmra.mrb[0].mxu0 %v1346
    %v1587 = vpop.f32.mrb[0].mxu0
    %v1588 = vadd.f32 %v1547, %v1587
    %v1589 = vpop.f32.mrb[0].mxu0
    %v1590 = vadd.f32 %v1549, %v1589
    %v1591 = vpop.f32.mrb[0].mxu0
    %v1592 = vpop.f32.mrb[0].mxu0
    %1593 = vdwg.mxu0
    %1594 = vmatprep.subr.bf16.mxu0 %v951
    %1595 = vmatpush1.bf16.msra.mxu0 %v950
    %1596 = vmatprep.subr.bf16.mxu0 %v961
    %1597 = vmatpush1.bf16.msra.mxu0 %v960
    %1598 = vmatprep.subr.bf16.mxu0 %v971
    %1599 = vmatpush1.bf16.msra.mxu0 %v970
    %1600 = vmatprep.subr.bf16.mxu0 %v981
    %1601 = vmatpush1.bf16.msra.mxu0 %v980
    %1602 = vmatprep.subr.bf16.mxu0 %v991
    %1603 = vmatpush1.bf16.msra.mxu0 %v990
    %1604 = vmatprep.subr.bf16.mxu0 %v1001
    %1605 = vmatpush1.bf16.msra.mxu0 %v1000
    %1606 = vmatprep.subr.bf16.mxu0 %v1011
    %1607 = vmatpush1.bf16.msra.mxu0 %v1010
    %1608 = vmatprep.subr.bf16.mxu0 %v1021
    %1609 = vmatpush1.bf16.msra.mxu0 %v1020
    %1610 = vmatprep.subr.bf16.mxu0 %v1031
    %1611 = vmatpush1.bf16.msra.mxu0 %v1030
    %1612 = vmatprep.subr.bf16.mxu0 %v1041
    %1613 = vmatpush1.bf16.msra.mxu0 %v1040
    %1614 = vmatprep.subr.bf16.mxu0 %v1051
    %1615 = vmatpush1.bf16.msra.mxu0 %v1050
    %1616 = vmatprep.subr.bf16.mxu0 %v1061
    %1617 = vmatpush1.bf16.msra.mxu0 %v1060
    %1618 = vmatprep.subr.bf16.mxu0 %v1071
    %1619 = vmatpush1.bf16.msra.mxu0 %v1070
    %1620 = vmatprep.subr.bf16.mxu0 %v1081
    %1621 = vmatpush1.bf16.msra.mxu0 %v1080
    %1622 = vmatprep.subr.bf16.mxu0 %v1091
    %1623 = vmatpush1.bf16.msra.mxu0 %v1090
    %1624 = vmatprep.subr.bf16.mxu0 %v1101
    %1625 = vmatpush1.bf16.msra.mxu0 %v1100
    %1626 = vmatprep.mubr.bf16.mxu0 %v88
    %1627 = vmatmul.mubr.bf16.gmra.mrb[0].mxu0 %v87
    %v1628 = vpop.f32.mrb[0].mxu0
    %v1629 = vadd.f32 %v321, %v1628
    %v1630 = vpop.f32.mrb[0].mxu0
    %v1631 = vadd.f32 %v325, %v1630
    %v1632 = vpop.f32.mrb[0].mxu0
    %v1633 = vpop.f32.mrb[0].mxu0
    %1634 = vdwg.mxu0
    %1635 = vmatprep.subr.bf16.mxu0 %v1111
    %1636 = vmatpush1.bf16.msra.mxu0 %v1110
    %1637 = vmatprep.subr.bf16.mxu0 %v1121
    %1638 = vmatpush1.bf16.msra.mxu0 %v1120
    %1639 = vmatprep.subr.bf16.mxu0 %v1131
    %1640 = vmatpush1.bf16.msra.mxu0 %v1130
    %1641 = vmatprep.subr.bf16.mxu0 %v1141
    %1642 = vmatpush1.bf16.msra.mxu0 %v1140
    %1643 = vmatprep.subr.bf16.mxu0 0
    %1644 = vmatpush1.bf16.msra.mxu0 0
    %1645 = vmatprep.subr.bf16.mxu0 0
    %1646 = vmatpush1.bf16.msra.mxu0 0
    %1647 = vmatprep.subr.bf16.mxu0 0
    %1648 = vmatpush1.bf16.msra.mxu0 0
    %1649 = vmatprep.subr.bf16.mxu0 0
    %1650 = vmatpush1.bf16.msra.mxu0 0
    %1651 = vmatprep.subr.bf16.mxu0 0
    %1652 = vmatpush1.bf16.msra.mxu0 0
    %1653 = vmatprep.subr.bf16.mxu0 0
    %1654 = vmatpush1.bf16.msra.mxu0 0
    %1655 = vmatprep.subr.bf16.mxu0 0
    %1656 = vmatpush1.bf16.msra.mxu0 0
    %1657 = vmatprep.subr.bf16.mxu0 0
    %1658 = vmatpush1.bf16.msra.mxu0 0
    %1659 = vmatprep.subr.bf16.mxu0 0
    %1660 = vmatpush1.bf16.msra.mxu0 0
    %1661 = vmatprep.subr.bf16.mxu0 0
    %1662 = vmatpush1.bf16.msra.mxu0 0
    %1663 = vmatprep.subr.bf16.mxu0 0
    %1664 = vmatpush1.bf16.msra.mxu0 0
    %1665 = vmatprep.subr.bf16.mxu0 0
    %1666 = vmatpush1.bf16.msra.mxu0 0
    %1667 = vmatprep.mubr.bf16.mxu0 0
    %1668 = vmatmul.mubr.bf16.gmra.mrb[0].mxu0 %v1346
    %v1669 = vpop.f32.mrb[0].mxu0
    %v1670 = vadd.f32 %v1629, %v1669
    %v1671 = vpop.f32.mrb[0].mxu0
    %v1672 = vadd.f32 %v1631, %v1671
    %v1673 = vpop.f32.mrb[0].mxu0
    %v1674 = vpop.f32.mrb[0].mxu0
    %1675 = vdwg.mxu0
    %1676 = vmatprep.subr.bf16.mxu0 %v953
    %1677 = vmatpush1.bf16.msra.mxu0 %v952
    %1678 = vmatprep.subr.bf16.mxu0 %v963
    %1679 = vmatpush1.bf16.msra.mxu0 %v962
    %1680 = vmatprep.subr.bf16.mxu0 %v973
    %1681 = vmatpush1.bf16.msra.mxu0 %v972
    %1682 = vmatprep.subr.bf16.mxu0 %v983
    %1683 = vmatpush1.bf16.msra.mxu0 %v982
    %1684 = vmatprep.subr.bf16.mxu0 %v993
    %1685 = vmatpush1.bf16.msra.mxu0 %v992
    %1686 = vmatprep.subr.bf16.mxu0 %v1003
    %1687 = vmatpush1.bf16.msra.mxu0 %v1002
    %1688 = vmatprep.subr.bf16.mxu0 %v1013
    %1689 = vmatpush1.bf16.msra.mxu0 %v1012
    %1690 = vmatprep.subr.bf16.mxu0 %v1023
    %1691 = vmatpush1.bf16.msra.mxu0 %v1022
    %1692 = vmatprep.subr.bf16.mxu0 %v1033
    %1693 = vmatpush1.bf16.msra.mxu0 %v1032
    %1694 = vmatprep.subr.bf16.mxu0 %v1043
    %1695 = vmatpush1.bf16.msra.mxu0 %v1042
    %1696 = vmatprep.subr.bf16.mxu0 %v1053
    %1697 = vmatpush1.bf16.msra.mxu0 %v1052
    %1698 = vmatprep.subr.bf16.mxu0 %v1063
    %1699 = vmatpush1.bf16.msra.mxu0 %v1062
    %1700 = vmatprep.subr.bf16.mxu0 %v1073
    %1701 = vmatpush1.bf16.msra.mxu0 %v1072
    %1702 = vmatprep.subr.bf16.mxu0 %v1083
    %1703 = vmatpush1.bf16.msra.mxu0 %v1082
    %1704 = vmatprep.subr.bf16.mxu0 %v1093
    %1705 = vmatpush1.bf16.msra.mxu0 %v1092
    %1706 = vmatprep.subr.bf16.mxu0 %v1103
    %1707 = vmatpush1.bf16.msra.mxu0 %v1102
    %1708 = vmatprep.mubr.bf16.mxu0 %v88
    %1709 = vmatmul.mubr.bf16.gmra.mrb[0].mxu0 %v87
    %v1710 = vpop.f32.mrb[0].mxu0
    %v1711 = vadd.f32 %v329, %v1710
    %v1712 = vpop.f32.mrb[0].mxu0
    %v1713 = vadd.f32 %v333, %v1712
    %v1714 = vpop.f32.mrb[0].mxu0
    %v1715 = vpop.f32.mrb[0].mxu0
    %1716 = vdwg.mxu0
    %1717 = vmatprep.subr.bf16.mxu0 %v1113
    %1718 = vmatpush1.bf16.msra.mxu0 %v1112
    %1719 = vmatprep.subr.bf16.mxu0 %v1123
    %1720 = vmatpush1.bf16.msra.mxu0 %v1122
    %1721 = vmatprep.subr.bf16.mxu0 %v1133
    %1722 = vmatpush1.bf16.msra.mxu0 %v1132
    %1723 = vmatprep.subr.bf16.mxu0 %v1143
    %1724 = vmatpush1.bf16.msra.mxu0 %v1142
    %1725 = vmatprep.subr.bf16.mxu0 0
    %1726 = vmatpush1.bf16.msra.mxu0 0
    %1727 = vmatprep.subr.bf16.mxu0 0
    %1728 = vmatpush1.bf16.msra.mxu0 0
    %1729 = vmatprep.subr.bf16.mxu0 0
    %1730 = vmatpush1.bf16.msra.mxu0 0
    %1731 = vmatprep.subr.bf16.mxu0 0
    %1732 = vmatpush1.bf16.msra.mxu0 0
    %1733 = vmatprep.subr.bf16.mxu0 0
    %1734 = vmatpush1.bf16.msra.mxu0 0
    %1735 = vmatprep.subr.bf16.mxu0 0
    %1736 = vmatpush1.bf16.msra.mxu0 0
    %1737 = vmatprep.subr.bf16.mxu0 0
    %1738 = vmatpush1.bf16.msra.mxu0 0
    %1739 = vmatprep.subr.bf16.mxu0 0
    %1740 = vmatpush1.bf16.msra.mxu0 0
    %1741 = vmatprep.subr.bf16.mxu0 0
    %1742 = vmatpush1.bf16.msra.mxu0 0
    %1743 = vmatprep.subr.bf16.mxu0 0
    %1744 = vmatpush1.bf16.msra.mxu0 0
    %1745 = vmatprep.subr.bf16.mxu0 0
    %1746 = vmatpush1.bf16.msra.mxu0 0
    %1747 = vmatprep.subr.bf16.mxu0 0
    %1748 = vmatpush1.bf16.msra.mxu0 0
    %1749 = vmatprep.mubr.bf16.mxu0 0
    %1750 = vmatmul.mubr.bf16.gmra.mrb[0].mxu0 %v1346
    %v1751 = vpop.f32.mrb[0].mxu0
    %v1752 = vadd.f32 %v1711, %v1751
    %v1753 = vpop.f32.mrb[0].mxu0
    %v1754 = vadd.f32 %v1713, %v1753
    %v1755 = vpop.f32.mrb[0].mxu0
    %v1756 = vpop.f32.mrb[0].mxu0
    %1757 = vdwg.mxu0
    %v1758 = vxor.u32 %v1424, 2147483648
    %v1759 = vxor.u32 %v1426, 2147483648
    %v1760 = vxor.u32 %v1506, 2147483648
    %v1761 = vxor.u32 %v1508, 2147483648
    %v1762 = vxor.u32 %v1588, 2147483648
    %v1763 = vxor.u32 %v1590, 2147483648
    %v1764 = vxor.u32 %v1670, 2147483648
    %v1765 = vxor.u32 %v1672, 2147483648
    %v1766 = vxor.u32 %v1752, 2147483648
    %v1767 = vxor.u32 %v1754, 2147483648
    %v1768 = vmul.f32 %v1758, 1.442695
    %v1769 = vpow.pop %v1768
    %v1770 = vmul.f32 %v1759, 1.442695
    %v1771 = vpow.pop %v1770
    %v1772 = vmul.f32 %v1760, 1.442695
    %v1773 = vpow.pop %v1772
    %v1774 = vmul.f32 %v1761, 1.442695
    %v1775 = vpow.pop %v1774
    %v1776 = vmul.f32 %v1762, 1.442695
    %v1777 = vpow.pop %v1776
    %v1778 = vmul.f32 %v1763, 1.442695
    %v1779 = vpow.pop %v1778
    %v1780 = vmul.f32 %v1764, 1.442695
    %v1781 = vpow.pop %v1780
    %v1782 = vmul.f32 %v1765, 1.442695
    %v1783 = vpow.pop %v1782
    %v1784 = vmul.f32 %v1766, 1.442695
    %v1785 = vpow.pop %v1784
    %v1786 = vmul.f32 %v1767, 1.442695
    %v1787 = vpow.pop %v1786
    %v1788 = vadd.f32 %v1769, 1.0
    %v1789 = vadd.f32 %v1771, 1.0
    %v1790 = vadd.f32 %v1773, 1.0
    %v1791 = vadd.f32 %v1775, 1.0
    %v1792 = vadd.f32 %v1777, 1.0
    %v1793 = vadd.f32 %v1779, 1.0
    %v1794 = vadd.f32 %v1781, 1.0
    %v1795 = vadd.f32 %v1783, 1.0
    %v1796 = vadd.f32 %v1785, 1.0
    %v1797 = vadd.f32 %v1787, 1.0
    %v1798 = vrcp.pop %v1788
    %v1799 = vmul.f32 1.0, %v1798
    %v1800 = vrcp.pop %v1789
    %v1801 = vmul.f32 1.0, %v1800
    %v1802 = vrcp.pop %v1790
    %v1803 = vmul.f32 1.0, %v1802
    %v1804 = vrcp.pop %v1791
    %v1805 = vmul.f32 1.0, %v1804
    %v1806 = vrcp.pop %v1792
    %v1807 = vmul.f32 1.0, %v1806
    %v1808 = vrcp.pop %v1793
    %v1809 = vmul.f32 1.0, %v1808
    %v1810 = vrcp.pop %v1794
    %v1811 = vmul.f32 1.0, %v1810
    %v1812 = vrcp.pop %v1795
    %v1813 = vmul.f32 1.0, %v1812
    %v1814 = vrcp.pop %v1796
    %v1815 = vmul.f32 1.0, %v1814
    %v1816 = vrcp.pop %v1797
    %v1817 = vmul.f32 1.0, %v1816
    %v1818 = vmul.f32 %v1424, %v1799
    %v1819 = vmul.f32 %v1426, %v1801
    %v1820 = vmul.f32 %v1506, %v1803
    %v1821 = vmul.f32 %v1508, %v1805
    %v1822 = vmul.f32 %v1588, %v1807
    %v1823 = vmul.f32 %v1590, %v1809
    %v1824 = vmul.f32 %v1670, %v1811
    %v1825 = vmul.f32 %v1672, %v1813
    %v1826 = vmul.f32 %v1752, %v1815
    %v1827 = vmul.f32 %v1754, %v1817
    %v1828 = vpack.c.bf16 %v1818, %v1818
    %v1829 = vpack.c.bf16 %v1819, %v1819
    %v1830 = vpack.c.bf16 %v1820, %v1820
    %v1831 = vpack.c.bf16 %v1821, %v1821
    %v1832 = vpack.c.bf16 %v1822, %v1822
    %v1833 = vpack.c.bf16 %v1823, %v1823
    %v1834 = vpack.c.bf16 %v1824, %v1824
    %v1835 = vpack.c.bf16 %v1825, %v1825
    %v1836 = vpack.c.bf16 %v1826, %v1826
    %v1837 = vpack.c.bf16 %v1827, %v1827
    %v1838 = vld [vmem:[#allocation8] sm:$0xff]
    %v1839 = vld [vmem:[#allocation8 + $0x8] sm:$0xff]
    %v1840 = vld [vmem:[#allocation8 + $0x10] sm:$0xff]
    %v1841 = vld [vmem:[#allocation8 + $0x18] sm:$0xff]
    %v1842 = vld [vmem:[#allocation8 + $0x20] sm:$0xff]
    %v1843 = vld [vmem:[#allocation8 + $0x28] sm:$0xff]
    %v1844 = vld [vmem:[#allocation8 + $0x30] sm:$0xff]
    %v1845 = vld [vmem:[#allocation8 + $0x38] sm:$0xff]
    %v1846 = vld [vmem:[#allocation8 + $0x40] sm:$0xff]
    %v1847 = vld [vmem:[#allocation8 + $0x48] sm:$0xff]
    %v1848 = vld [vmem:[#allocation8 + $0x50] sm:$0xff]
    %v1849 = vld [vmem:[#allocation8 + $0x58] sm:$0xff]
    %v1850 = vld [vmem:[#allocation8 + $0x60] sm:$0xff]
    %v1851 = vld [vmem:[#allocation8 + $0x68] sm:$0xff]
    %v1852 = vld [vmem:[#allocation8 + $0x70] sm:$0xff]
    %v1853 = vld [vmem:[#allocation8 + $0x78] sm:$0xff]
    %v1854 = vld [vmem:[#allocation8 + $0x80] sm:$0xff]
    %v1855 = vld [vmem:[#allocation8 + $0x88] sm:$0xff]
    %v1856 = vld [vmem:[#allocation8 + $0x90] sm:$0xff]
    %v1857 = vld [vmem:[#allocation8 + $0x98] sm:$0xff]
    %v1858 = vld [vmem:[#allocation8 + $0xa0] sm:$0xff]
    %v1859 = vld [vmem:[#allocation8 + $0xa8] sm:$0xff]
    %v1860 = vld [vmem:[#allocation8 + $0xb0] sm:$0xff]
    %v1861 = vld [vmem:[#allocation8 + $0xb8] sm:$0xff]
    %v1862 = vld [vmem:[#allocation8 + $0xc0] sm:$0xff]
    %v1863 = vld [vmem:[#allocation8 + $0xc8] sm:$0xff]
    %v1864 = vld [vmem:[#allocation8 + $0xd0] sm:$0xff]
    %v1865 = vld [vmem:[#allocation8 + $0xd8] sm:$0xff]
    %v1866 = vld [vmem:[#allocation8 + $0xe0] sm:$0xff]
    %v1867 = vld [vmem:[#allocation8 + $0xe8] sm:$0xff]
    %v1868 = vld [vmem:[#allocation8 + $0xf0] sm:$0xff]
    %v1869 = vld [vmem:[#allocation8 + $0xf8] sm:$0xff]
    %v1870 = vld [vmem:[#allocation8 + $0x100] sm:$0xff]
    %v1871 = vld [vmem:[#allocation8 + $0x108] sm:$0xff]
    %v1872 = vld [vmem:[#allocation8 + $0x110] sm:$0xff]
    %v1873 = vld [vmem:[#allocation8 + $0x118] sm:$0xff]
    %v1874 = vld [vmem:[#allocation8 + $0x120] sm:$0xff]
    %v1875 = vld [vmem:[#allocation8 + $0x128] sm:$0xff]
    %v1876 = vld [vmem:[#allocation8 + $0x130] sm:$0xff]
    %v1877 = vld [vmem:[#allocation8 + $0x138] sm:$0xff]
    %v1878 = vld [vmem:[#allocation8 + $0x140] sm:$0xff]
    %v1879 = vld [vmem:[#allocation8 + $0x148] sm:$0xff]
    %v1880 = vld [vmem:[#allocation8 + $0x150] sm:$0xff]
    %v1881 = vld [vmem:[#allocation8 + $0x158] sm:$0xff]
    %v1882 = vld [vmem:[#allocation8 + $0x160] sm:$0xff]
    %v1883 = vld [vmem:[#allocation8 + $0x168] sm:$0xff]
    %v1884 = vld [vmem:[#allocation8 + $0x170] sm:$0xff]
    %v1885 = vld [vmem:[#allocation8 + $0x178] sm:$0xff]
    %v1886 = vld [vmem:[#allocation8 + $0x180] sm:$0xff]
    %v1887 = vld [vmem:[#allocation8 + $0x188] sm:$0xff]
    %v1888 = vld [vmem:[#allocation8 + $0x190] sm:$0xff]
    %v1889 = vld [vmem:[#allocation8 + $0x198] sm:$0xff]
    %v1890 = vld [vmem:[#allocation8 + $0x1a0] sm:$0xff]
    %v1891 = vld [vmem:[#allocation8 + $0x1a8] sm:$0xff]
    %v1892 = vld [vmem:[#allocation8 + $0x1b0] sm:$0xff]
    %v1893 = vld [vmem:[#allocation8 + $0x1b8] sm:$0xff]
    %v1894 = vld [vmem:[#allocation8 + $0x1c0] sm:$0xff]
    %v1895 = vld [vmem:[#allocation8 + $0x1c8] sm:$0xff]
    %v1896 = vld [vmem:[#allocation8 + $0x1d0] sm:$0xff]
    %v1897 = vld [vmem:[#allocation8 + $0x1d8] sm:$0xff]
    %v1898 = vld [vmem:[#allocation8 + $0x1e0] sm:$0xff]
    %v1899 = vld [vmem:[#allocation8 + $0x1e8] sm:$0xff]
    %v1900 = vld [vmem:[#allocation8 + $0x1f0] sm:$0xff]
    %v1901 = vld [vmem:[#allocation8 + $0x1f8] sm:$0xff]
    %v1902 = vld [vmem:[#allocation8 + $0x200] sm:$0xff]
    %v1903 = vld [vmem:[#allocation8 + $0x208] sm:$0xff]
    %v1904 = vld [vmem:[#allocation8 + $0x210] sm:$0xff]
    %v1905 = vld [vmem:[#allocation8 + $0x218] sm:$0xff]
    %v1906 = vld [vmem:[#allocation8 + $0x220] sm:$0xff]
    %v1907 = vld [vmem:[#allocation8 + $0x228] sm:$0xff]
    %v1908 = vld [vmem:[#allocation8 + $0x230] sm:$0xff]
    %v1909 = vld [vmem:[#allocation8 + $0x238] sm:$0xff]
    %v1910 = vld [vmem:[#allocation8 + $0x240] sm:$0xff]
    %v1911 = vld [vmem:[#allocation8 + $0x248] sm:$0xff]
    %v1912 = vld [vmem:[#allocation8 + $0x250] sm:$0xff]
    %v1913 = vld [vmem:[#allocation8 + $0x258] sm:$0xff]
    %v1914 = vld [vmem:[#allocation8 + $0x260] sm:$0xff]
    %v1915 = vld [vmem:[#allocation8 + $0x268] sm:$0xff]
    %v1916 = vld [vmem:[#allocation8 + $0x270] sm:$0xff]
    %v1917 = vld [vmem:[#allocation8 + $0x278] sm:$0xff]
    %v1918 = vld [vmem:[#allocation8 + $0x280] sm:$0xff]
    %v1919 = vld [vmem:[#allocation8 + $0x288] sm:$0xff]
    %v1920 = vld [vmem:[#allocation8 + $0x290] sm:$0xff]
    %v1921 = vld [vmem:[#allocation8 + $0x298] sm:$0xff]
    %v1922 = vld [vmem:[#allocation8 + $0x2a0] sm:$0xff]
    %v1923 = vld [vmem:[#allocation8 + $0x2a8] sm:$0xff]
    %v1924 = vld [vmem:[#allocation8 + $0x2b0] sm:$0xff]
    %v1925 = vld [vmem:[#allocation8 + $0x2b8] sm:$0xff]
    %v1926 = vld [vmem:[#allocation8 + $0x2c0] sm:$0xff]
    %v1927 = vld [vmem:[#allocation8 + $0x2c8] sm:$0xff]
    %v1928 = vld [vmem:[#allocation8 + $0x2d0] sm:$0xff]
    %v1929 = vld [vmem:[#allocation8 + $0x2d8] sm:$0xff]
    %v1930 = vld [vmem:[#allocation8 + $0x2e0] sm:$0xff]
    %v1931 = vld [vmem:[#allocation8 + $0x2e8] sm:$0xff]
    %v1932 = vld [vmem:[#allocation8 + $0x2f0] sm:$0xff]
    %v1933 = vld [vmem:[#allocation8 + $0x2f8] sm:$0xff]
    %v1934 = vld [vmem:[#allocation8 + $0x300] sm:$0xff]
    %v1935 = vld [vmem:[#allocation8 + $0x308] sm:$0xff]
    %v1936 = vld [vmem:[#allocation8 + $0x310] sm:$0xff]
    %v1937 = vld [vmem:[#allocation8 + $0x318] sm:$0xff]
    %v1938 = vld [vmem:[#allocation8 + $0x320] sm:$0xff]
    %v1939 = vld [vmem:[#allocation8 + $0x328] sm:$0xff]
    %v1940 = vld [vmem:[#allocation8 + $0x330] sm:$0xff]
    %v1941 = vld [vmem:[#allocation8 + $0x338] sm:$0xff]
    %v1942 = vld [vmem:[#allocation8 + $0x340] sm:$0xff]
    %v1943 = vld [vmem:[#allocation8 + $0x348] sm:$0xff]
    %v1944 = vld [vmem:[#allocation8 + $0x350] sm:$0xff]
    %v1945 = vld [vmem:[#allocation8 + $0x358] sm:$0xff]
    %v1946 = vld [vmem:[#allocation8 + $0x360] sm:$0xff]
    %v1947 = vld [vmem:[#allocation8 + $0x368] sm:$0xff]
    %v1948 = vld [vmem:[#allocation8 + $0x370] sm:$0xff]
    %v1949 = vld [vmem:[#allocation8 + $0x378] sm:$0xff]
    %v1950 = vld [vmem:[#allocation8 + $0x380] sm:$0xff]
    %v1951 = vld [vmem:[#allocation8 + $0x388] sm:$0xff]
    %v1952 = vld [vmem:[#allocation8 + $0x390] sm:$0xff]
    %v1953 = vld [vmem:[#allocation8 + $0x398] sm:$0xff]
    %v1954 = vld [vmem:[#allocation8 + $0x3a0] sm:$0xff]
    %v1955 = vld [vmem:[#allocation8 + $0x3a8] sm:$0xff]
    %v1956 = vld [vmem:[#allocation8 + $0x3b0] sm:$0xff]
    %v1957 = vld [vmem:[#allocation8 + $0x3b8] sm:$0xff]
    %v1958 = vld [vmem:[#allocation8 + $0x3c0] sm:$0xff]
    %v1959 = vld [vmem:[#allocation8 + $0x3c8] sm:$0xff]
    %v1960 = vld [vmem:[#allocation8 + $0x3d0] sm:$0xff]
    %v1961 = vld [vmem:[#allocation8 + $0x3d8] sm:$0xff]
    %v1962 = vld [vmem:[#allocation8 + $0x3e0] sm:$0xff]
    %v1963 = vld [vmem:[#allocation8 + $0x3e8] sm:$0xff]
    %v1964 = vld [vmem:[#allocation8 + $0x3f0] sm:$0xff]
    %v1965 = vld [vmem:[#allocation8 + $0x3f8] sm:$0xff]
    %v1966 = vld [vmem:[#allocation8 + $0x400] sm:$0xff]
    %v1967 = vld [vmem:[#allocation8 + $0x408] sm:$0xff]
    %v1968 = vld [vmem:[#allocation8 + $0x410] sm:$0xff]
    %v1969 = vld [vmem:[#allocation8 + $0x418] sm:$0xff]
    %v1970 = vld [vmem:[#allocation8 + $0x420] sm:$0xff]
    %v1971 = vld [vmem:[#allocation8 + $0x428] sm:$0xff]
    %v1972 = vld [vmem:[#allocation8 + $0x430] sm:$0xff]
    %v1973 = vld [vmem:[#allocation8 + $0x438] sm:$0xff]
    %v1974 = vld [vmem:[#allocation8 + $0x440] sm:$0xff]
    %v1975 = vld [vmem:[#allocation8 + $0x448] sm:$0xff]
    %v1976 = vld [vmem:[#allocation8 + $0x450] sm:$0xff]
    %v1977 = vld [vmem:[#allocation8 + $0x458] sm:$0xff]
    %v1978 = vld [vmem:[#allocation8 + $0x460] sm:$0xff]
    %v1979 = vld [vmem:[#allocation8 + $0x468] sm:$0xff]
    %v1980 = vld [vmem:[#allocation8 + $0x470] sm:$0xff]
    %v1981 = vld [vmem:[#allocation8 + $0x478] sm:$0xff]
    %v1982 = vld [vmem:[#allocation8 + $0x480] sm:$0xff]
    %v1983 = vld [vmem:[#allocation8 + $0x488] sm:$0xff]
    %v1984 = vld [vmem:[#allocation8 + $0x490] sm:$0xff]
    %v1985 = vld [vmem:[#allocation8 + $0x498] sm:$0xff]
    %v1986 = vld [vmem:[#allocation8 + $0x4a0] sm:$0xff]
    %v1987 = vld [vmem:[#allocation8 + $0x4a8] sm:$0xff]
    %v1988 = vld [vmem:[#allocation8 + $0x4b0] sm:$0xff]
    %v1989 = vld [vmem:[#allocation8 + $0x4b8] sm:$0xff]
    %v1990 = vld [vmem:[#allocation8 + $0x4c0] sm:$0xff]
    %v1991 = vld [vmem:[#allocation8 + $0x4c8] sm:$0xff]
    %v1992 = vld [vmem:[#allocation8 + $0x4d0] sm:$0xff]
    %v1993 = vld [vmem:[#allocation8 + $0x4d8] sm:$0xff]
    %v1994 = vld [vmem:[#allocation8 + $0x4e0] sm:$0xff]
    %v1995 = vld [vmem:[#allocation8 + $0x4e8] sm:$0xff]
    %v1996 = vld [vmem:[#allocation8 + $0x4f0] sm:$0xff]
    %v1997 = vld [vmem:[#allocation8 + $0x4f8] sm:$0xff]
    %v1998 = vld [vmem:[#allocation8 + $0x500] sm:$0xff]
    %v1999 = vld [vmem:[#allocation8 + $0x508] sm:$0xff]
    %v2000 = vld [vmem:[#allocation8 + $0x510] sm:$0xff]
    %v2001 = vld [vmem:[#allocation8 + $0x518] sm:$0xff]
    %v2002 = vld [vmem:[#allocation8 + $0x520] sm:$0xff]
    %v2003 = vld [vmem:[#allocation8 + $0x528] sm:$0xff]
    %v2004 = vld [vmem:[#allocation8 + $0x530] sm:$0xff]
    %v2005 = vld [vmem:[#allocation8 + $0x538] sm:$0xff]
    %v2006 = vld [vmem:[#allocation8 + $0x540] sm:$0xff]
    %v2007 = vld [vmem:[#allocation8 + $0x548] sm:$0xff]
    %v2008 = vld [vmem:[#allocation8 + $0x550] sm:$0xff]
    %v2009 = vld [vmem:[#allocation8 + $0x558] sm:$0xff]
    %v2010 = vld [vmem:[#allocation8 + $0x560] sm:$0xff]
    %v2011 = vld [vmem:[#allocation8 + $0x568] sm:$0xff]
    %v2012 = vld [vmem:[#allocation8 + $0x570] sm:$0xff]
    %v2013 = vld [vmem:[#allocation8 + $0x578] sm:$0xff]
    %v2014 = vld [vmem:[#allocation8 + $0x580] sm:$0xff]
    %v2015 = vld [vmem:[#allocation8 + $0x588] sm:$0xff]
    %v2016 = vld [vmem:[#allocation8 + $0x590] sm:$0xff]
    %v2017 = vld [vmem:[#allocation8 + $0x598] sm:$0xff]
    %v2018 = vld [vmem:[#allocation8 + $0x5a0] sm:$0xff]
    %v2019 = vld [vmem:[#allocation8 + $0x5a8] sm:$0xff]
    %v2020 = vld [vmem:[#allocation8 + $0x5b0] sm:$0xff]
    %v2021 = vld [vmem:[#allocation8 + $0x5b8] sm:$0xff]
    %v2022 = vld [vmem:[#allocation8 + $0x5c0] sm:$0xff]
    %v2023 = vld [vmem:[#allocation8 + $0x5c8] sm:$0xff]
    %v2024 = vld [vmem:[#allocation8 + $0x5d0] sm:$0xff]
    %v2025 = vld [vmem:[#allocation8 + $0x5d8] sm:$0xff]
    %v2026 = vld [vmem:[#allocation8 + $0x5e0] sm:$0xff]
    %v2027 = vld [vmem:[#allocation8 + $0x5e8] sm:$0xff]
    %v2028 = vld [vmem:[#allocation8 + $0x5f0] sm:$0xff]
    %v2029 = vld [vmem:[#allocation8 + $0x5f8] sm:$0xff]
    %v2030 = vld [vmem:[#allocation8 + $0x600] sm:$0xff]
    %v2031 = vld [vmem:[#allocation8 + $0x608] sm:$0xff]
    %v2032 = vld [vmem:[#allocation8 + $0x610] sm:$0xff]
    %v2033 = vld [vmem:[#allocation8 + $0x618] sm:$0xff]
    %v2034 = vld [vmem:[#allocation8 + $0x620] sm:$0xff]
    %v2035 = vld [vmem:[#allocation8 + $0x628] sm:$0xff]
    %v2036 = vld [vmem:[#allocation8 + $0x630] sm:$0xff]
    %v2037 = vld [vmem:[#allocation8 + $0x638] sm:$0xff]
    %v2038 = vld [vmem:[#allocation8 + $0x640] sm:$0xff]
    %v2039 = vld [vmem:[#allocation8 + $0x648] sm:$0xff]
    %v2040 = vld [vmem:[#allocation8 + $0x650] sm:$0xff]
    %v2041 = vld [vmem:[#allocation8 + $0x658] sm:$0xff]
    %v2042 = vld [vmem:[#allocation8 + $0x660] sm:$0xff]
    %v2043 = vld [vmem:[#allocation8 + $0x668] sm:$0xff]
    %v2044 = vld [vmem:[#allocation8 + $0x670] sm:$0xff]
    %v2045 = vld [vmem:[#allocation8 + $0x678] sm:$0xff]
    %v2046 = vld [vmem:[#allocation8 + $0x680] sm:$0xff]
    %v2047 = vld [vmem:[#allocation8 + $0x688] sm:$0xff]
    %v2048 = vld [vmem:[#allocation8 + $0x690] sm:$0xff]
    %v2049 = vld [vmem:[#allocation8 + $0x698] sm:$0xff]
    %v2050 = vld [vmem:[#allocation8 + $0x6a0] sm:$0xff]
    %v2051 = vld [vmem:[#allocation8 + $0x6a8] sm:$0xff]
    %v2052 = vld [vmem:[#allocation8 + $0x6b0] sm:$0xff]
    %v2053 = vld [vmem:[#allocation8 + $0x6b8] sm:$0xff]
    %v2054 = vld [vmem:[#allocation8 + $0x6c0] sm:$0xff]
    %v2055 = vld [vmem:[#allocation8 + $0x6c8] sm:$0xff]
    %v2056 = vld [vmem:[#allocation8 + $0x6d0] sm:$0xff]
    %v2057 = vld [vmem:[#allocation8 + $0x6d8] sm:$0xff]
    %v2058 = vld [vmem:[#allocation8 + $0x6e0] sm:$0xff]
    %v2059 = vld [vmem:[#allocation8 + $0x6e8] sm:$0xff]
    %v2060 = vld [vmem:[#allocation8 + $0x6f0] sm:$0xff]
    %v2061 = vld [vmem:[#allocation8 + $0x6f8] sm:$0xff]
    %v2062 = vld [vmem:[#allocation8 + $0x700] sm:$0xff]
    %v2063 = vld [vmem:[#allocation8 + $0x708] sm:$0xff]
    %v2064 = vld [vmem:[#allocation8 + $0x710] sm:$0xff]
    %v2065 = vld [vmem:[#allocation8 + $0x718] sm:$0xff]
    %v2066 = vld [vmem:[#allocation8 + $0x720] sm:$0xff]
    %v2067 = vld [vmem:[#allocation8 + $0x728] sm:$0xff]
    %v2068 = vld [vmem:[#allocation8 + $0x730] sm:$0xff]
    %v2069 = vld [vmem:[#allocation8 + $0x738] sm:$0xff]
    %v2070 = vld [vmem:[#allocation8 + $0x740] sm:$0xff]
    %v2071 = vld [vmem:[#allocation8 + $0x748] sm:$0xff]
    %v2072 = vld [vmem:[#allocation8 + $0x750] sm:$0xff]
    %v2073 = vld [vmem:[#allocation8 + $0x758] sm:$0xff]
    %v2074 = vld [vmem:[#allocation8 + $0x760] sm:$0xff]
    %v2075 = vld [vmem:[#allocation8 + $0x768] sm:$0xff]
    %v2076 = vld [vmem:[#allocation8 + $0x770] sm:$0xff]
    %v2077 = vld [vmem:[#allocation8 + $0x778] sm:$0xff]
    %v2078 = vld [vmem:[#allocation8 + $0x780] sm:$0xff]
    %v2079 = vld [vmem:[#allocation8 + $0x788] sm:$0xff]
    %v2080 = vld [vmem:[#allocation8 + $0x790] sm:$0xff]
    %v2081 = vld [vmem:[#allocation8 + $0x798] sm:$0xff]
    %v2082 = vld [vmem:[#allocation8 + $0x7a0] sm:$0xff]
    %v2083 = vld [vmem:[#allocation8 + $0x7a8] sm:$0xff]
    %v2084 = vld [vmem:[#allocation8 + $0x7b0] sm:$0xff]
    %v2085 = vld [vmem:[#allocation8 + $0x7b8] sm:$0xff]
    %v2086 = vld [vmem:[#allocation8 + $0x7c0] sm:$0xff]
    %v2087 = vld [vmem:[#allocation8 + $0x7c8] sm:$0xff]
    %v2088 = vld [vmem:[#allocation8 + $0x7d0] sm:$0xff]
    %v2089 = vld [vmem:[#allocation8 + $0x7d8] sm:$0xff]
    %v2090 = vld [vmem:[#allocation8 + $0x7e0] sm:$0xff]
    %v2091 = vld [vmem:[#allocation8 + $0x7e8] sm:$0xff]
    %v2092 = vld [vmem:[#allocation8 + $0x7f0] sm:$0xff]
    %v2093 = vld [vmem:[#allocation8 + $0x7f8] sm:$0xff]
    %v2094 = vld [vmem:[#allocation8 + $0x800] sm:$0xff]
    %v2095 = vld [vmem:[#allocation8 + $0x808] sm:$0xff]
    %v2096 = vld [vmem:[#allocation8 + $0x810] sm:$0xff]
    %v2097 = vld [vmem:[#allocation8 + $0x818] sm:$0xff]
    %v2098 = vld [vmem:[#allocation8 + $0x820] sm:$0xff]
    %v2099 = vld [vmem:[#allocation8 + $0x828] sm:$0xff]
    %v2100 = vld [vmem:[#allocation8 + $0x830] sm:$0xff]
    %v2101 = vld [vmem:[#allocation8 + $0x838] sm:$0xff]
    %v2102 = vld [vmem:[#allocation8 + $0x840] sm:$0xff]
    %v2103 = vld [vmem:[#allocation8 + $0x848] sm:$0xff]
    %v2104 = vld [vmem:[#allocation8 + $0x850] sm:$0xff]
    %v2105 = vld [vmem:[#allocation8 + $0x858] sm:$0xff]
    %v2106 = vld [vmem:[#allocation8 + $0x860] sm:$0xff]
    %v2107 = vld [vmem:[#allocation8 + $0x868] sm:$0xff]
    %v2108 = vld [vmem:[#allocation8 + $0x870] sm:$0xff]
    %v2109 = vld [vmem:[#allocation8 + $0x878] sm:$0xff]
    %v2110 = vld [vmem:[#allocation8 + $0x880] sm:$0xff]
    %v2111 = vld [vmem:[#allocation8 + $0x888] sm:$0xff]
    %v2112 = vld [vmem:[#allocation8 + $0x890] sm:$0xff]
    %v2113 = vld [vmem:[#allocation8 + $0x898] sm:$0xff]
    %v2114 = vld [vmem:[#allocation8 + $0x8a0] sm:$0xff]
    %v2115 = vld [vmem:[#allocation8 + $0x8a8] sm:$0xff]
    %v2116 = vld [vmem:[#allocation8 + $0x8b0] sm:$0xff]
    %v2117 = vld [vmem:[#allocation8 + $0x8b8] sm:$0xff]
    %v2118 = vld [vmem:[#allocation8 + $0x8c0] sm:$0xff]
    %v2119 = vld [vmem:[#allocation8 + $0x8c8] sm:$0xff]
    %v2120 = vld [vmem:[#allocation8 + $0x8d0] sm:$0xff]
    %v2121 = vld [vmem:[#allocation8 + $0x8d8] sm:$0xff]
    %v2122 = vld [vmem:[#allocation8 + $0x8e0] sm:$0xff]
    %v2123 = vld [vmem:[#allocation8 + $0x8e8] sm:$0xff]
    %v2124 = vld [vmem:[#allocation8 + $0x8f0] sm:$0xff]
    %v2125 = vld [vmem:[#allocation8 + $0x8f8] sm:$0xff]
    %v2126 = vld [vmem:[#allocation8 + $0x900] sm:$0xff]
    %v2127 = vld [vmem:[#allocation8 + $0x908] sm:$0xff]
    %v2128 = vld [vmem:[#allocation8 + $0x910] sm:$0xff]
    %v2129 = vld [vmem:[#allocation8 + $0x918] sm:$0xff]
    %v2130 = vld [vmem:[#allocation8 + $0x920] sm:$0xff]
    %v2131 = vld [vmem:[#allocation8 + $0x928] sm:$0xff]
    %v2132 = vld [vmem:[#allocation8 + $0x930] sm:$0xff]
    %v2133 = vld [vmem:[#allocation8 + $0x938] sm:$0xff]
    %v2134 = vld [vmem:[#allocation8 + $0x940] sm:$0xff]
    %v2135 = vld [vmem:[#allocation8 + $0x948] sm:$0xff]
    %v2136 = vld [vmem:[#allocation8 + $0x950] sm:$0xff]
    %v2137 = vld [vmem:[#allocation8 + $0x958] sm:$0xff]
    %v2138 = vld [vmem:[#allocation8 + $0x960] sm:$0xff]
    %v2139 = vld [vmem:[#allocation8 + $0x968] sm:$0xff]
    %v2140 = vld [vmem:[#allocation8 + $0x970] sm:$0xff]
    %v2141 = vld [vmem:[#allocation8 + $0x978] sm:$0xff]
    %v2142 = vld [vmem:[#allocation8 + $0x980] sm:$0xff]
    %v2143 = vld [vmem:[#allocation8 + $0x988] sm:$0xff]
    %v2144 = vld [vmem:[#allocation8 + $0x990] sm:$0xff]
    %v2145 = vld [vmem:[#allocation8 + $0x998] sm:$0xff]
    %v2146 = vld [vmem:[#allocation8 + $0x9a0] sm:$0xff]
    %v2147 = vld [vmem:[#allocation8 + $0x9a8] sm:$0xff]
    %v2148 = vld [vmem:[#allocation8 + $0x9b0] sm:$0xff]
    %v2149 = vld [vmem:[#allocation8 + $0x9b8] sm:$0xff]
    %v2150 = vld [vmem:[#allocation8 + $0x9c0] sm:$0xff]
    %v2151 = vld [vmem:[#allocation8 + $0x9c8] sm:$0xff]
    %v2152 = vld [vmem:[#allocation8 + $0x9d0] sm:$0xff]
    %v2153 = vld [vmem:[#allocation8 + $0x9d8] sm:$0xff]
    %v2154 = vld [vmem:[#allocation8 + $0x9e0] sm:$0xff]
    %v2155 = vld [vmem:[#allocation8 + $0x9e8] sm:$0xff]
    %v2156 = vld [vmem:[#allocation8 + $0x9f0] sm:$0xff]
    %v2157 = vld [vmem:[#allocation8 + $0x9f8] sm:$0xff]
    %v2158 = vld [vmem:[#allocation8 + $0xa00] sm:$0xff]
    %v2159 = vld [vmem:[#allocation8 + $0xa08] sm:$0xff]
    %v2160 = vld [vmem:[#allocation8 + $0xa10] sm:$0xff]
    %v2161 = vld [vmem:[#allocation8 + $0xa18] sm:$0xff]
    %v2162 = vld [vmem:[#allocation8 + $0xa20] sm:$0xff]
    %v2163 = vld [vmem:[#allocation8 + $0xa28] sm:$0xff]
    %v2164 = vld [vmem:[#allocation8 + $0xa30] sm:$0xff]
    %v2165 = vld [vmem:[#allocation8 + $0xa38] sm:$0xff]
    %v2166 = vld [vmem:[#allocation8 + $0xa40] sm:$0xff]
    %v2167 = vld [vmem:[#allocation8 + $0xa48] sm:$0xff]
    %v2168 = vld [vmem:[#allocation8 + $0xa50] sm:$0xff]
    %v2169 = vld [vmem:[#allocation8 + $0xa58] sm:$0xff]
    %v2170 = vld [vmem:[#allocation8 + $0xa60] sm:$0xff]
    %v2171 = vld [vmem:[#allocation8 + $0xa68] sm:$0xff]
    %v2172 = vld [vmem:[#allocation8 + $0xa70] sm:$0xff]
    %v2173 = vld [vmem:[#allocation8 + $0xa78] sm:$0xff]
    %v2174 = vld [vmem:[#allocation8 + $0xa80] sm:$0xff]
    %v2175 = vld [vmem:[#allocation8 + $0xa88] sm:$0xff]
    %v2176 = vld [vmem:[#allocation8 + $0xa90] sm:$0xff]
    %v2177 = vld [vmem:[#allocation8 + $0xa98] sm:$0xff]
    %v2178 = vld [vmem:[#allocation8 + $0xaa0] sm:$0xff]
    %v2179 = vld [vmem:[#allocation8 + $0xaa8] sm:$0xff]
    %v2180 = vld [vmem:[#allocation8 + $0xab0] sm:$0xff]
    %v2181 = vld [vmem:[#allocation8 + $0xab8] sm:$0xff]
    %v2182 = vld [vmem:[#allocation8 + $0xac0] sm:$0xff]
    %v2183 = vld [vmem:[#allocation8 + $0xac8] sm:$0xff]
    %v2184 = vld [vmem:[#allocation8 + $0xad0] sm:$0xff]
    %v2185 = vld [vmem:[#allocation8 + $0xad8] sm:$0xff]
    %v2186 = vld [vmem:[#allocation8 + $0xae0] sm:$0xff]
    %v2187 = vld [vmem:[#allocation8 + $0xae8] sm:$0xff]
    %v2188 = vld [vmem:[#allocation8 + $0xaf0] sm:$0xff]
    %v2189 = vld [vmem:[#allocation8 + $0xaf8] sm:$0xff]
    %v2190 = vld [vmem:[#allocation8 + $0xb00] sm:$0xff]
    %v2191 = vld [vmem:[#allocation8 + $0xb08] sm:$0xff]
    %v2192 = vld [vmem:[#allocation8 + $0xb10] sm:$0xff]
    %v2193 = vld [vmem:[#allocation8 + $0xb18] sm:$0xff]
    %v2194 = vld [vmem:[#allocation8 + $0xb20] sm:$0xff]
    %v2195 = vld [vmem:[#allocation8 + $0xb28] sm:$0xff]
    %v2196 = vld [vmem:[#allocation8 + $0xb30] sm:$0xff]
    %v2197 = vld [vmem:[#allocation8 + $0xb38] sm:$0xff]
    %v2198 = vld [vmem:[#allocation8 + $0xb40] sm:$0xff]
    %v2199 = vld [vmem:[#allocation8 + $0xb48] sm:$0xff]
    %v2200 = vld [vmem:[#allocation8 + $0xb50] sm:$0xff]
    %v2201 = vld [vmem:[#allocation8 + $0xb58] sm:$0xff]
    %v2202 = vld [vmem:[#allocation8 + $0xb60] sm:$0xff]
    %v2203 = vld [vmem:[#allocation8 + $0xb68] sm:$0xff]
    %v2204 = vld [vmem:[#allocation8 + $0xb70] sm:$0xff]
    %v2205 = vld [vmem:[#allocation8 + $0xb78] sm:$0xff]
    %v2206 = vld [vmem:[#allocation8 + $0xb80] sm:$0xff]
    %v2207 = vld [vmem:[#allocation8 + $0xb88] sm:$0xff]
    %v2208 = vld [vmem:[#allocation8 + $0xb90] sm:$0xff]
    %v2209 = vld [vmem:[#allocation8 + $0xb98] sm:$0xff]
    %v2210 = vld [vmem:[#allocation8 + $0xba0] sm:$0xff]
    %v2211 = vld [vmem:[#allocation8 + $0xba8] sm:$0xff]
    %v2212 = vld [vmem:[#allocation8 + $0xbb0] sm:$0xff]
    %v2213 = vld [vmem:[#allocation8 + $0xbb8] sm:$0xff]
    %v2214 = vld [vmem:[#allocation8 + $0xbc0] sm:$0xff]
    %v2215 = vld [vmem:[#allocation8 + $0xbc8] sm:$0xff]
    %v2216 = vld [vmem:[#allocation8 + $0xbd0] sm:$0xff]
    %v2217 = vld [vmem:[#allocation8 + $0xbd8] sm:$0xff]
    %v2218 = vld [vmem:[#allocation8 + $0xbe0] sm:$0xff]
    %v2219 = vld [vmem:[#allocation8 + $0xbe8] sm:$0xff]
    %v2220 = vld [vmem:[#allocation8 + $0xbf0] sm:$0xff]
    %v2221 = vld [vmem:[#allocation8 + $0xbf8] sm:$0xff]
    %v2222 = vld [vmem:[#allocation8 + $0xc00] sm:$0xff]
    %v2223 = vld [vmem:[#allocation8 + $0xc08] sm:$0xff]
    %v2224 = vld [vmem:[#allocation8 + $0xc10] sm:$0xff]
    %v2225 = vld [vmem:[#allocation8 + $0xc18] sm:$0xff]
    %v2226 = vld [vmem:[#allocation8 + $0xc20] sm:$0xff]
    %v2227 = vld [vmem:[#allocation8 + $0xc28] sm:$0xff]
    %v2228 = vld [vmem:[#allocation8 + $0xc30] sm:$0xff]
    %v2229 = vld [vmem:[#allocation8 + $0xc38] sm:$0xff]
    %v2230 = vld [vmem:[#allocation8 + $0xc40] sm:$0xff]
    %v2231 = vld [vmem:[#allocation8 + $0xc48] sm:$0xff]
    %v2232 = vld [vmem:[#allocation8 + $0xc50] sm:$0xff]
    %v2233 = vld [vmem:[#allocation8 + $0xc58] sm:$0xff]
    %v2234 = vld [vmem:[#allocation8 + $0xc60] sm:$0xff]
    %v2235 = vld [vmem:[#allocation8 + $0xc68] sm:$0xff]
    %v2236 = vld [vmem:[#allocation8 + $0xc70] sm:$0xff]
    %v2237 = vld [vmem:[#allocation8 + $0xc78] sm:$0xff]
    %v2238 = vld [vmem:[#allocation8 + $0xc80] sm:$0xff]
    %v2239 = vld [vmem:[#allocation8 + $0xc88] sm:$0xff]
    %v2240 = vld [vmem:[#allocation8 + $0xc90] sm:$0xff]
    %v2241 = vld [vmem:[#allocation8 + $0xc98] sm:$0xff]
    %v2242 = vld [vmem:[#allocation8 + $0xca0] sm:$0xff]
    %v2243 = vld [vmem:[#allocation8 + $0xca8] sm:$0xff]
    %v2244 = vld [vmem:[#allocation8 + $0xcb0] sm:$0xff]
    %v2245 = vld [vmem:[#allocation8 + $0xcb8] sm:$0xff]
    %v2246 = vld [vmem:[#allocation8 + $0xcc0] sm:$0xff]
    %v2247 = vld [vmem:[#allocation8 + $0xcc8] sm:$0xff]
    %v2248 = vld [vmem:[#allocation8 + $0xcd0] sm:$0xff]
    %v2249 = vld [vmem:[#allocation8 + $0xcd8] sm:$0xff]
    %v2250 = vld [vmem:[#allocation8 + $0xce0] sm:$0xff]
    %v2251 = vld [vmem:[#allocation8 + $0xce8] sm:$0xff]
    %v2252 = vld [vmem:[#allocation8 + $0xcf0] sm:$0xff]
    %v2253 = vld [vmem:[#allocation8 + $0xcf8] sm:$0xff]
    %v2254 = vld [vmem:[#allocation8 + $0xd00] sm:$0xff]
    %v2255 = vld [vmem:[#allocation8 + $0xd08] sm:$0xff]
    %v2256 = vld [vmem:[#allocation8 + $0xd10] sm:$0xff]
    %v2257 = vld [vmem:[#allocation8 + $0xd18] sm:$0xff]
    %v2258 = vld [vmem:[#allocation8 + $0xd20] sm:$0xff]
    %v2259 = vld [vmem:[#allocation8 + $0xd28] sm:$0xff]
    %v2260 = vld [vmem:[#allocation8 + $0xd30] sm:$0xff]
    %v2261 = vld [vmem:[#allocation8 + $0xd38] sm:$0xff]
    %v2262 = vld [vmem:[#allocation8 + $0xd40] sm:$0xff]
    %v2263 = vld [vmem:[#allocation8 + $0xd48] sm:$0xff]
    %v2264 = vld [vmem:[#allocation8 + $0xd50] sm:$0xff]
    %v2265 = vld [vmem:[#allocation8 + $0xd58] sm:$0xff]
    %v2266 = vld [vmem:[#allocation8 + $0xd60] sm:$0xff]
    %v2267 = vld [vmem:[#allocation8 + $0xd68] sm:$0xff]
    %v2268 = vld [vmem:[#allocation8 + $0xd70] sm:$0xff]
    %v2269 = vld [vmem:[#allocation8 + $0xd78] sm:$0xff]
    %v2270 = vld [vmem:[#allocation8 + $0xd80] sm:$0xff]
    %v2271 = vld [vmem:[#allocation8 + $0xd88] sm:$0xff]
    %v2272 = vld [vmem:[#allocation8 + $0xd90] sm:$0xff]
    %v2273 = vld [vmem:[#allocation8 + $0xd98] sm:$0xff]
    %v2274 = vld [vmem:[#allocation8 + $0xda0] sm:$0xff]
    %v2275 = vld [vmem:[#allocation8 + $0xda8] sm:$0xff]
    %v2276 = vld [vmem:[#allocation8 + $0xdb0] sm:$0xff]
    %v2277 = vld [vmem:[#allocation8 + $0xdb8] sm:$0xff]
    %v2278 = vld [vmem:[#allocation8 + $0xdc0] sm:$0xff]
    %v2279 = vld [vmem:[#allocation8 + $0xdc8] sm:$0xff]
    %v2280 = vld [vmem:[#allocation8 + $0xdd0] sm:$0xff]
    %v2281 = vld [vmem:[#allocation8 + $0xdd8] sm:$0xff]
    %v2282 = vld [vmem:[#allocation8 + $0xde0] sm:$0xff]
    %v2283 = vld [vmem:[#allocation8 + $0xde8] sm:$0xff]
    %v2284 = vld [vmem:[#allocation8 + $0xdf0] sm:$0xff]
    %v2285 = vld [vmem:[#allocation8 + $0xdf8] sm:$0xff]
    %v2286 = vld [vmem:[#allocation8 + $0xe00] sm:$0xff]
    %v2287 = vld [vmem:[#allocation8 + $0xe08] sm:$0xff]
    %v2288 = vld [vmem:[#allocation8 + $0xe10] sm:$0xff]
    %v2289 = vld [vmem:[#allocation8 + $0xe18] sm:$0xff]
    %v2290 = vld [vmem:[#allocation8 + $0xe20] sm:$0xff]
    %v2291 = vld [vmem:[#allocation8 + $0xe28] sm:$0xff]
    %v2292 = vld [vmem:[#allocation8 + $0xe30] sm:$0xff]
    %v2293 = vld [vmem:[#allocation8 + $0xe38] sm:$0xff]
    %v2294 = vld [vmem:[#allocation8 + $0xe40] sm:$0xff]
    %v2295 = vld [vmem:[#allocation8 + $0xe48] sm:$0xff]
    %v2296 = vld [vmem:[#allocation8 + $0xe50] sm:$0xff]
    %v2297 = vld [vmem:[#allocation8 + $0xe58] sm:$0xff]
    %v2298 = vld [vmem:[#allocation8 + $0xe60] sm:$0xff]
    %v2299 = vld [vmem:[#allocation8 + $0xe68] sm:$0xff]
    %v2300 = vld [vmem:[#allocation8 + $0xe70] sm:$0xff]
    %v2301 = vld [vmem:[#allocation8 + $0xe78] sm:$0xff]
    %v2302 = vld [vmem:[#allocation8 + $0xe80] sm:$0xff]
    %v2303 = vld [vmem:[#allocation8 + $0xe88] sm:$0xff]
    %v2304 = vld [vmem:[#allocation8 + $0xe90] sm:$0xff]
    %v2305 = vld [vmem:[#allocation8 + $0xe98] sm:$0xff]
    %v2306 = vld [vmem:[#allocation8 + $0xea0] sm:$0xff]
    %v2307 = vld [vmem:[#allocation8 + $0xea8] sm:$0xff]
    %v2308 = vld [vmem:[#allocation8 + $0xeb0] sm:$0xff]
    %v2309 = vld [vmem:[#allocation8 + $0xeb8] sm:$0xff]
    %v2310 = vld [vmem:[#allocation8 + $0xec0] sm:$0xff]
    %v2311 = vld [vmem:[#allocation8 + $0xec8] sm:$0xff]
    %v2312 = vld [vmem:[#allocation8 + $0xed0] sm:$0xff]
    %v2313 = vld [vmem:[#allocation8 + $0xed8] sm:$0xff]
    %v2314 = vld [vmem:[#allocation8 + $0xee0] sm:$0xff]
    %v2315 = vld [vmem:[#allocation8 + $0xee8] sm:$0xff]
    %v2316 = vld [vmem:[#allocation8 + $0xef0] sm:$0xff]
    %v2317 = vld [vmem:[#allocation8 + $0xef8] sm:$0xff]
    %v2318 = vld [vmem:[#allocation8 + $0xf00] sm:$0xff]
    %v2319 = vld [vmem:[#allocation8 + $0xf08] sm:$0xff]
    %v2320 = vld [vmem:[#allocation8 + $0xf10] sm:$0xff]
    %v2321 = vld [vmem:[#allocation8 + $0xf18] sm:$0xff]
    %v2322 = vld [vmem:[#allocation8 + $0xf20] sm:$0xff]
    %v2323 = vld [vmem:[#allocation8 + $0xf28] sm:$0xff]
    %v2324 = vld [vmem:[#allocation8 + $0xf30] sm:$0xff]
    %v2325 = vld [vmem:[#allocation8 + $0xf38] sm:$0xff]
    %v2326 = vld [vmem:[#allocation8 + $0xf40] sm:$0xff]
    %v2327 = vld [vmem:[#allocation8 + $0xf48] sm:$0xff]
    %v2328 = vld [vmem:[#allocation8 + $0xf50] sm:$0xff]
    %v2329 = vld [vmem:[#allocation8 + $0xf58] sm:$0xff]
    %v2330 = vld [vmem:[#allocation8 + $0xf60] sm:$0xff]
    %v2331 = vld [vmem:[#allocation8 + $0xf68] sm:$0xff]
    %v2332 = vld [vmem:[#allocation8 + $0xf70] sm:$0xff]
    %v2333 = vld [vmem:[#allocation8 + $0xf78] sm:$0xff]
    %v2334 = vld [vmem:[#allocation8 + $0xf80] sm:$0xff]
    %v2335 = vld [vmem:[#allocation8 + $0xf88] sm:$0xff]
    %v2336 = vld [vmem:[#allocation8 + $0xf90] sm:$0xff]
    %v2337 = vld [vmem:[#allocation8 + $0xf98] sm:$0xff]
    %v2338 = vld [vmem:[#allocation8 + $0xfa0] sm:$0xff]
    %v2339 = vld [vmem:[#allocation8 + $0xfa8] sm:$0xff]
    %v2340 = vld [vmem:[#allocation8 + $0xfb0] sm:$0xff]
    %v2341 = vld [vmem:[#allocation8 + $0xfb8] sm:$0xff]
    %v2342 = vld [vmem:[#allocation8 + $0xfc0] sm:$0xff]
    %v2343 = vld [vmem:[#allocation8 + $0xfc8] sm:$0xff]
    %v2344 = vld [vmem:[#allocation8 + $0xfd0] sm:$0xff]
    %v2345 = vld [vmem:[#allocation8 + $0xfd8] sm:$0xff]
    %v2346 = vld [vmem:[#allocation8 + $0xfe0] sm:$0xff]
    %v2347 = vld [vmem:[#allocation8 + $0xfe8] sm:$0xff]
    %v2348 = vld [vmem:[#allocation8 + $0xff0] sm:$0xff]
    %v2349 = vld [vmem:[#allocation8 + $0xff8] sm:$0xff]
    %v2350 = vld [vmem:[#allocation8 + $0x1000] sm:$0xff]
    %v2351 = vld [vmem:[#allocation8 + $0x1008] sm:$0xff]
    %v2352 = vld [vmem:[#allocation8 + $0x1010] sm:$0xff]
    %v2353 = vld [vmem:[#allocation8 + $0x1018] sm:$0xff]
    %v2354 = vld [vmem:[#allocation8 + $0x1020] sm:$0xff]
    %v2355 = vld [vmem:[#allocation8 + $0x1028] sm:$0xff]
    %v2356 = vld [vmem:[#allocation8 + $0x1030] sm:$0xff]
    %v2357 = vld [vmem:[#allocation8 + $0x1038] sm:$0xff]
    %v2358 = vld [vmem:[#allocation8 + $0x1040] sm:$0xff]
    %v2359 = vld [vmem:[#allocation8 + $0x1048] sm:$0xff]
    %v2360 = vld [vmem:[#allocation8 + $0x1050] sm:$0xff]
    %v2361 = vld [vmem:[#allocation8 + $0x1058] sm:$0xff]
    %v2362 = vld [vmem:[#allocation8 + $0x1060] sm:$0xff]
    %v2363 = vld [vmem:[#allocation8 + $0x1068] sm:$0xff]
    %v2364 = vld [vmem:[#allocation8 + $0x1070] sm:$0xff]
    %v2365 = vld [vmem:[#allocation8 + $0x1078] sm:$0xff]
    %v2366 = vld [vmem:[#allocation8 + $0x1080] sm:$0xff]
    %v2367 = vld [vmem:[#allocation8 + $0x1088] sm:$0xff]
    %v2368 = vld [vmem:[#allocation8 + $0x1090] sm:$0xff]
    %v2369 = vld [vmem:[#allocation8 + $0x1098] sm:$0xff]
    %v2370 = vld [vmem:[#allocation8 + $0x10a0] sm:$0xff]
    %v2371 = vld [vmem:[#allocation8 + $0x10a8] sm:$0xff]
    %v2372 = vld [vmem:[#allocation8 + $0x10b0] sm:$0xff]
    %v2373 = vld [vmem:[#allocation8 + $0x10b8] sm:$0xff]
    %v2374 = vld [vmem:[#allocation8 + $0x10c0] sm:$0xff]
    %v2375 = vld [vmem:[#allocation8 + $0x10c8] sm:$0xff]
    %v2376 = vld [vmem:[#allocation8 + $0x10d0] sm:$0xff]
    %v2377 = vld [vmem:[#allocation8 + $0x10d8] sm:$0xff]
    %v2378 = vld [vmem:[#allocation8 + $0x10e0] sm:$0xff]
    %v2379 = vld [vmem:[#allocation8 + $0x10e8] sm:$0xff]
    %v2380 = vld [vmem:[#allocation8 + $0x10f0] sm:$0xff]
    %v2381 = vld [vmem:[#allocation8 + $0x10f8] sm:$0xff]
    %v2382 = vld [vmem:[#allocation8 + $0x1100] sm:$0xff]
    %v2383 = vld [vmem:[#allocation8 + $0x1108] sm:$0xff]
    %v2384 = vld [vmem:[#allocation8 + $0x1110] sm:$0xff]
    %v2385 = vld [vmem:[#allocation8 + $0x1118] sm:$0xff]
    %v2386 = vld [vmem:[#allocation8 + $0x1120] sm:$0xff]
    %v2387 = vld [vmem:[#allocation8 + $0x1128] sm:$0xff]
    %v2388 = vld [vmem:[#allocation8 + $0x1130] sm:$0xff]
    %v2389 = vld [vmem:[#allocation8 + $0x1138] sm:$0xff]
    %v2390 = vld [vmem:[#allocation8 + $0x1140] sm:$0xff]
    %v2391 = vld [vmem:[#allocation8 + $0x1148] sm:$0xff]
    %v2392 = vld [vmem:[#allocation8 + $0x1150] sm:$0xff]
    %v2393 = vld [vmem:[#allocation8 + $0x1158] sm:$0xff]
    %v2394 = vld [vmem:[#allocation8 + $0x1160] sm:$0xff]
    %v2395 = vld [vmem:[#allocation8 + $0x1168] sm:$0xff]
    %v2396 = vld [vmem:[#allocation8 + $0x1170] sm:$0xff]
    %v2397 = vld [vmem:[#allocation8 + $0x1178] sm:$0xff]
    %v2398 = vld [vmem:[#allocation8 + $0x1180] sm:$0xff]
    %v2399 = vld [vmem:[#allocation8 + $0x1188] sm:$0xff]
    %v2400 = vld [vmem:[#allocation8 + $0x1190] sm:$0xff]
    %v2401 = vld [vmem:[#allocation8 + $0x1198] sm:$0xff]
    %v2402 = vld [vmem:[#allocation8 + $0x11a0] sm:$0xff]
    %v2403 = vld [vmem:[#allocation8 + $0x11a8] sm:$0xff]
    %v2404 = vld [vmem:[#allocation8 + $0x11b0] sm:$0xff]
    %v2405 = vld [vmem:[#allocation8 + $0x11b8] sm:$0xff]
    %v2406 = vld [vmem:[#allocation8 + $0x11c0] sm:$0xff]
    %v2407 = vld [vmem:[#allocation8 + $0x11c8] sm:$0xff]
    %v2408 = vld [vmem:[#allocation8 + $0x11d0] sm:$0xff]
    %v2409 = vld [vmem:[#allocation8 + $0x11d8] sm:$0xff]
    %v2410 = vld [vmem:[#allocation8 + $0x11e0] sm:$0xff]
    %v2411 = vld [vmem:[#allocation8 + $0x11e8] sm:$0xff]
    %v2412 = vld [vmem:[#allocation8 + $0x11f0] sm:$0xff]
    %v2413 = vld [vmem:[#allocation8 + $0x11f8] sm:$0xff]
    %v2414 = vld [vmem:[#allocation8 + $0x1200] sm:$0xff]
    %v2415 = vld [vmem:[#allocation8 + $0x1208] sm:$0xff]
    %v2416 = vld [vmem:[#allocation8 + $0x1210] sm:$0xff]
    %v2417 = vld [vmem:[#allocation8 + $0x1218] sm:$0xff]
    %v2418 = vld [vmem:[#allocation8 + $0x1220] sm:$0xff]
    %v2419 = vld [vmem:[#allocation8 + $0x1228] sm:$0xff]
    %v2420 = vld [vmem:[#allocation8 + $0x1230] sm:$0xff]
    %v2421 = vld [vmem:[#allocation8 + $0x1238] sm:$0xff]
    %v2422 = vld [vmem:[#allocation8 + $0x1240] sm:$0xff]
    %v2423 = vld [vmem:[#allocation8 + $0x1248] sm:$0xff]
    %v2424 = vld [vmem:[#allocation8 + $0x1250] sm:$0xff]
    %v2425 = vld [vmem:[#allocation8 + $0x1258] sm:$0xff]
    %v2426 = vld [vmem:[#allocation8 + $0x1260] sm:$0xff]
    %v2427 = vld [vmem:[#allocation8 + $0x1268] sm:$0xff]
    %v2428 = vld [vmem:[#allocation8 + $0x1270] sm:$0xff]
    %v2429 = vld [vmem:[#allocation8 + $0x1278] sm:$0xff]
    %v2430 = vld [vmem:[#allocation8 + $0x1280] sm:$0xff]
    %v2431 = vld [vmem:[#allocation8 + $0x1288] sm:$0xff]
    %v2432 = vld [vmem:[#allocation8 + $0x1290] sm:$0xff]
    %v2433 = vld [vmem:[#allocation8 + $0x1298] sm:$0xff]
    %v2434 = vld [vmem:[#allocation8 + $0x12a0] sm:$0xff]
    %v2435 = vld [vmem:[#allocation8 + $0x12a8] sm:$0xff]
    %v2436 = vld [vmem:[#allocation8 + $0x12b0] sm:$0xff]
    %v2437 = vld [vmem:[#allocation8 + $0x12b8] sm:$0xff]
    %v2438 = vld [vmem:[#allocation8 + $0x12c0] sm:$0xff]
    %v2439 = vld [vmem:[#allocation8 + $0x12c8] sm:$0xff]
    %v2440 = vld [vmem:[#allocation8 + $0x12d0] sm:$0xff]
    %v2441 = vld [vmem:[#allocation8 + $0x12d8] sm:$0xff]
    %v2442 = vld [vmem:[#allocation8 + $0x12e0] sm:$0xff]
    %v2443 = vld [vmem:[#allocation8 + $0x12e8] sm:$0xff]
    %v2444 = vld [vmem:[#allocation8 + $0x12f0] sm:$0xff]
    %v2445 = vld [vmem:[#allocation8 + $0x12f8] sm:$0xff]
    %v2446 = vld [vmem:[#allocation8 + $0x1300] sm:$0xff]
    %v2447 = vld [vmem:[#allocation8 + $0x1308] sm:$0xff]
    %v2448 = vld [vmem:[#allocation8 + $0x1310] sm:$0xff]
    %v2449 = vld [vmem:[#allocation8 + $0x1318] sm:$0xff]
    %v2450 = vld [vmem:[#allocation8 + $0x1320] sm:$0xff]
    %v2451 = vld [vmem:[#allocation8 + $0x1328] sm:$0xff]
    %v2452 = vld [vmem:[#allocation8 + $0x1330] sm:$0xff]
    %v2453 = vld [vmem:[#allocation8 + $0x1338] sm:$0xff]
    %v2454 = vld [vmem:[#allocation8 + $0x1340] sm:$0xff]
    %v2455 = vld [vmem:[#allocation8 + $0x1348] sm:$0xff]
    %v2456 = vld [vmem:[#allocation8 + $0x1350] sm:$0xff]
    %v2457 = vld [vmem:[#allocation8 + $0x1358] sm:$0xff]
    %v2458 = vld [vmem:[#allocation8 + $0x1360] sm:$0xff]
    %v2459 = vld [vmem:[#allocation8 + $0x1368] sm:$0xff]
    %v2460 = vld [vmem:[#allocation8 + $0x1370] sm:$0xff]
    %v2461 = vld [vmem:[#allocation8 + $0x1378] sm:$0xff]
    %v2462 = vld [vmem:[#allocation8 + $0x1380] sm:$0xff]
    %v2463 = vld [vmem:[#allocation8 + $0x1388] sm:$0xff]
    %v2464 = vld [vmem:[#allocation8 + $0x1390] sm:$0xff]
    %v2465 = vld [vmem:[#allocation8 + $0x1398] sm:$0xff]
    %v2466 = vld [vmem:[#allocation8 + $0x13a0] sm:$0xff]
    %v2467 = vld [vmem:[#allocation8 + $0x13a8] sm:$0xff]
    %v2468 = vld [vmem:[#allocation8 + $0x13b0] sm:$0xff]
    %v2469 = vld [vmem:[#allocation8 + $0x13b8] sm:$0xff]
    %v2470 = vld [vmem:[#allocation8 + $0x13c0] sm:$0xff]
    %v2471 = vld [vmem:[#allocation8 + $0x13c8] sm:$0xff]
    %v2472 = vld [vmem:[#allocation8 + $0x13d0] sm:$0xff]
    %v2473 = vld [vmem:[#allocation8 + $0x13d8] sm:$0xff]
    %v2474 = vld [vmem:[#allocation8 + $0x13e0] sm:$0xff]
    %v2475 = vld [vmem:[#allocation8 + $0x13e8] sm:$0xff]
    %v2476 = vld [vmem:[#allocation8 + $0x13f0] sm:$0xff]
    %v2477 = vld [vmem:[#allocation8 + $0x13f8] sm:$0xff]
    %v2478 = vld [vmem:[#allocation8 + $0x1400] sm:$0xff]
    %v2479 = vld [vmem:[#allocation8 + $0x1408] sm:$0xff]
    %v2480 = vld [vmem:[#allocation8 + $0x1410] sm:$0xff]
    %v2481 = vld [vmem:[#allocation8 + $0x1418] sm:$0xff]
    %v2482 = vld [vmem:[#allocation8 + $0x1420] sm:$0xff]
    %v2483 = vld [vmem:[#allocation8 + $0x1428] sm:$0xff]
    %v2484 = vld [vmem:[#allocation8 + $0x1430] sm:$0xff]
    %v2485 = vld [vmem:[#allocation8 + $0x1438] sm:$0xff]
    %v2486 = vld [vmem:[#allocation8 + $0x1440] sm:$0xff]
    %v2487 = vld [vmem:[#allocation8 + $0x1448] sm:$0xff]
    %v2488 = vld [vmem:[#allocation8 + $0x1450] sm:$0xff]
    %v2489 = vld [vmem:[#allocation8 + $0x1458] sm:$0xff]
    %v2490 = vld [vmem:[#allocation8 + $0x1460] sm:$0xff]
    %v2491 = vld [vmem:[#allocation8 + $0x1468] sm:$0xff]
    %v2492 = vld [vmem:[#allocation8 + $0x1470] sm:$0xff]
    %v2493 = vld [vmem:[#allocation8 + $0x1478] sm:$0xff]
    %v2494 = vld [vmem:[#allocation8 + $0x1480] sm:$0xff]
    %v2495 = vld [vmem:[#allocation8 + $0x1488] sm:$0xff]
    %v2496 = vld [vmem:[#allocation8 + $0x1490] sm:$0xff]
    %v2497 = vld [vmem:[#allocation8 + $0x1498] sm:$0xff]
    %v2498 = vld [vmem:[#allocation8 + $0x14a0] sm:$0xff]
    %v2499 = vld [vmem:[#allocation8 + $0x14a8] sm:$0xff]
    %v2500 = vld [vmem:[#allocation8 + $0x14b0] sm:$0xff]
    %v2501 = vld [vmem:[#allocation8 + $0x14b8] sm:$0xff]
    %v2502 = vld [vmem:[#allocation8 + $0x14c0] sm:$0xff]
    %v2503 = vld [vmem:[#allocation8 + $0x14c8] sm:$0xff]
    %v2504 = vld [vmem:[#allocation8 + $0x14d0] sm:$0xff]
    %v2505 = vld [vmem:[#allocation8 + $0x14d8] sm:$0xff]
    %v2506 = vld [vmem:[#allocation8 + $0x14e0] sm:$0xff]
    %v2507 = vld [vmem:[#allocation8 + $0x14e8] sm:$0xff]
    %v2508 = vld [vmem:[#allocation8 + $0x14f0] sm:$0xff]
    %v2509 = vld [vmem:[#allocation8 + $0x14f8] sm:$0xff]
    %v2510 = vld [vmem:[#allocation8 + $0x1500] sm:$0xff]
    %v2511 = vld [vmem:[#allocation8 + $0x1508] sm:$0xff]
    %v2512 = vld [vmem:[#allocation8 + $0x1510] sm:$0xff]
    %v2513 = vld [vmem:[#allocation8 + $0x1518] sm:$0xff]
    %v2514 = vld [vmem:[#allocation8 + $0x1520] sm:$0xff]
    %v2515 = vld [vmem:[#allocation8 + $0x1528] sm:$0xff]
    %v2516 = vld [vmem:[#allocation8 + $0x1530] sm:$0xff]
    %v2517 = vld [vmem:[#allocation8 + $0x1538] sm:$0xff]
    %v2518 = vld [vmem:[#allocation8 + $0x1540] sm:$0xff]
    %v2519 = vld [vmem:[#allocation8 + $0x1548] sm:$0xff]
    %v2520 = vld [vmem:[#allocation8 + $0x1550] sm:$0xff]
    %v2521 = vld [vmem:[#allocation8 + $0x1558] sm:$0xff]
    %v2522 = vld [vmem:[#allocation8 + $0x1560] sm:$0xff]
    %v2523 = vld [vmem:[#allocation8 + $0x1568] sm:$0xff]
    %v2524 = vld [vmem:[#allocation8 + $0x1570] sm:$0xff]
    %v2525 = vld [vmem:[#allocation8 + $0x1578] sm:$0xff]
    %v2526 = vld [vmem:[#allocation8 + $0x1580] sm:$0xff]
    %v2527 = vld [vmem:[#allocation8 + $0x1588] sm:$0xff]
    %v2528 = vld [vmem:[#allocation8 + $0x1590] sm:$0xff]
    %v2529 = vld [vmem:[#allocation8 + $0x1598] sm:$0xff]
    %v2530 = vld [vmem:[#allocation8 + $0x15a0] sm:$0xff]
    %v2531 = vld [vmem:[#allocation8 + $0x15a8] sm:$0xff]
    %v2532 = vld [vmem:[#allocation8 + $0x15b0] sm:$0xff]
    %v2533 = vld [vmem:[#allocation8 + $0x15b8] sm:$0xff]
    %v2534 = vld [vmem:[#allocation8 + $0x15c0] sm:$0xff]
    %v2535 = vld [vmem:[#allocation8 + $0x15c8] sm:$0xff]
    %v2536 = vld [vmem:[#allocation8 + $0x15d0] sm:$0xff]
    %v2537 = vld [vmem:[#allocation8 + $0x15d8] sm:$0xff]
    %v2538 = vld [vmem:[#allocation8 + $0x15e0] sm:$0xff]
    %v2539 = vld [vmem:[#allocation8 + $0x15e8] sm:$0xff]
    %v2540 = vld [vmem:[#allocation8 + $0x15f0] sm:$0xff]
    %v2541 = vld [vmem:[#allocation8 + $0x15f8] sm:$0xff]
    %v2542 = vld [vmem:[#allocation8 + $0x1600] sm:$0xff]
    %v2543 = vld [vmem:[#allocation8 + $0x1608] sm:$0xff]
    %v2544 = vld [vmem:[#allocation8 + $0x1610] sm:$0xff]
    %v2545 = vld [vmem:[#allocation8 + $0x1618] sm:$0xff]
    %v2546 = vld [vmem:[#allocation8 + $0x1620] sm:$0xff]
    %v2547 = vld [vmem:[#allocation8 + $0x1628] sm:$0xff]
    %v2548 = vld [vmem:[#allocation8 + $0x1630] sm:$0xff]
    %v2549 = vld [vmem:[#allocation8 + $0x1638] sm:$0xff]
    %v2550 = vld [vmem:[#allocation8 + $0x1640] sm:$0xff]
    %v2551 = vld [vmem:[#allocation8 + $0x1648] sm:$0xff]
    %v2552 = vld [vmem:[#allocation8 + $0x1650] sm:$0xff]
    %v2553 = vld [vmem:[#allocation8 + $0x1658] sm:$0xff]
    %v2554 = vld [vmem:[#allocation8 + $0x1660] sm:$0xff]
    %v2555 = vld [vmem:[#allocation8 + $0x1668] sm:$0xff]
    %v2556 = vld [vmem:[#allocation8 + $0x1670] sm:$0xff]
    %v2557 = vld [vmem:[#allocation8 + $0x1678] sm:$0xff]
    %v2558 = vld [vmem:[#allocation8 + $0x1680] sm:$0xff]
    %v2559 = vld [vmem:[#allocation8 + $0x1688] sm:$0xff]
    %v2560 = vld [vmem:[#allocation8 + $0x1690] sm:$0xff]
    %v2561 = vld [vmem:[#allocation8 + $0x1698] sm:$0xff]
    %v2562 = vld [vmem:[#allocation8 + $0x16a0] sm:$0xff]
    %v2563 = vld [vmem:[#allocation8 + $0x16a8] sm:$0xff]
    %v2564 = vld [vmem:[#allocation8 + $0x16b0] sm:$0xff]
    %v2565 = vld [vmem:[#allocation8 + $0x16b8] sm:$0xff]
    %v2566 = vld [vmem:[#allocation8 + $0x16c0] sm:$0xff]
    %v2567 = vld [vmem:[#allocation8 + $0x16c8] sm:$0xff]
    %v2568 = vld [vmem:[#allocation8 + $0x16d0] sm:$0xff]
    %v2569 = vld [vmem:[#allocation8 + $0x16d8] sm:$0xff]
    %v2570 = vld [vmem:[#allocation8 + $0x16e0] sm:$0xff]
    %v2571 = vld [vmem:[#allocation8 + $0x16e8] sm:$0xff]
    %v2572 = vld [vmem:[#allocation8 + $0x16f0] sm:$0xff]
    %v2573 = vld [vmem:[#allocation8 + $0x16f8] sm:$0xff]
    %v2574 = vld [vmem:[#allocation8 + $0x1700] sm:$0xff]
    %v2575 = vld [vmem:[#allocation8 + $0x1708] sm:$0xff]
    %v2576 = vld [vmem:[#allocation8 + $0x1710] sm:$0xff]
    %v2577 = vld [vmem:[#allocation8 + $0x1718] sm:$0xff]
    %v2578 = vld [vmem:[#allocation8 + $0x1720] sm:$0xff]
    %v2579 = vld [vmem:[#allocation8 + $0x1728] sm:$0xff]
    %v2580 = vld [vmem:[#allocation8 + $0x1730] sm:$0xff]
    %v2581 = vld [vmem:[#allocation8 + $0x1738] sm:$0xff]
    %v2582 = vld [vmem:[#allocation8 + $0x1740] sm:$0xff]
    %v2583 = vld [vmem:[#allocation8 + $0x1748] sm:$0xff]
    %v2584 = vld [vmem:[#allocation8 + $0x1750] sm:$0xff]
    %v2585 = vld [vmem:[#allocation8 + $0x1758] sm:$0xff]
    %v2586 = vld [vmem:[#allocation8 + $0x1760] sm:$0xff]
    %v2587 = vld [vmem:[#allocation8 + $0x1768] sm:$0xff]
    %v2588 = vld [vmem:[#allocation8 + $0x1770] sm:$0xff]
    %v2589 = vld [vmem:[#allocation8 + $0x1778] sm:$0xff]
    %v2590 = vld [vmem:[#allocation8 + $0x1780] sm:$0xff]
    %v2591 = vld [vmem:[#allocation8 + $0x1788] sm:$0xff]
    %v2592 = vld [vmem:[#allocation8 + $0x1790] sm:$0xff]
    %v2593 = vld [vmem:[#allocation8 + $0x1798] sm:$0xff]
    %v2594 = vld [vmem:[#allocation8 + $0x17a0] sm:$0xff]
    %v2595 = vld [vmem:[#allocation8 + $0x17a8] sm:$0xff]
    %v2596 = vld [vmem:[#allocation8 + $0x17b0] sm:$0xff]
    %v2597 = vld [vmem:[#allocation8 + $0x17b8] sm:$0xff]
    %v2598 = vld [vmem:[#allocation8 + $0x17c0] sm:$0xff]
    %v2599 = vld [vmem:[#allocation8 + $0x17c8] sm:$0xff]
    %v2600 = vld [vmem:[#allocation8 + $0x17d0] sm:$0xff]
    %v2601 = vld [vmem:[#allocation8 + $0x17d8] sm:$0xff]
    %v2602 = vld [vmem:[#allocation8 + $0x17e0] sm:$0xff]
    %v2603 = vld [vmem:[#allocation8 + $0x17e8] sm:$0xff]
    %v2604 = vld [vmem:[#allocation8 + $0x17f0] sm:$0xff]
    %v2605 = vld [vmem:[#allocation8 + $0x17f8] sm:$0xff]
    %v2606 = vld [vmem:[#allocation8 + $0x1800] sm:$0xff]
    %v2607 = vld [vmem:[#allocation8 + $0x1808] sm:$0xff]
    %v2608 = vld [vmem:[#allocation8 + $0x1810] sm:$0xff]
    %v2609 = vld [vmem:[#allocation8 + $0x1818] sm:$0xff]
    %v2610 = vld [vmem:[#allocation8 + $0x1820] sm:$0xff]
    %v2611 = vld [vmem:[#allocation8 + $0x1828] sm:$0xff]
    %v2612 = vld [vmem:[#allocation8 + $0x1830] sm:$0xff]
    %v2613 = vld [vmem:[#allocation8 + $0x1838] sm:$0xff]
    %v2614 = vld [vmem:[#allocation8 + $0x1840] sm:$0xff]
    %v2615 = vld [vmem:[#allocation8 + $0x1848] sm:$0xff]
    %v2616 = vld [vmem:[#allocation8 + $0x1850] sm:$0xff]
    %v2617 = vld [vmem:[#allocation8 + $0x1858] sm:$0xff]
    %v2618 = vld [vmem:[#allocation8 + $0x1860] sm:$0xff]
    %v2619 = vld [vmem:[#allocation8 + $0x1868] sm:$0xff]
    %v2620 = vld [vmem:[#allocation8 + $0x1870] sm:$0xff]
    %v2621 = vld [vmem:[#allocation8 + $0x1878] sm:$0xff]
    %v2622 = vld [vmem:[#allocation8 + $0x1880] sm:$0xff]
    %v2623 = vld [vmem:[#allocation8 + $0x1888] sm:$0xff]
    %v2624 = vld [vmem:[#allocation8 + $0x1890] sm:$0xff]
    %v2625 = vld [vmem:[#allocation8 + $0x1898] sm:$0xff]
    %v2626 = vld [vmem:[#allocation8 + $0x18a0] sm:$0xff]
    %v2627 = vld [vmem:[#allocation8 + $0x18a8] sm:$0xff]
    %v2628 = vld [vmem:[#allocation8 + $0x18b0] sm:$0xff]
    %v2629 = vld [vmem:[#allocation8 + $0x18b8] sm:$0xff]
    %v2630 = vld [vmem:[#allocation8 + $0x18c0] sm:$0xff]
    %v2631 = vld [vmem:[#allocation8 + $0x18c8] sm:$0xff]
    %v2632 = vld [vmem:[#allocation8 + $0x18d0] sm:$0xff]
    %v2633 = vld [vmem:[#allocation8 + $0x18d8] sm:$0xff]
    %v2634 = vld [vmem:[#allocation8 + $0x18e0] sm:$0xff]
    %v2635 = vld [vmem:[#allocation8 + $0x18e8] sm:$0xff]
    %v2636 = vld [vmem:[#allocation8 + $0x18f0] sm:$0xff]
    %v2637 = vld [vmem:[#allocation8 + $0x18f8] sm:$0xff]
    %v2638 = vld [vmem:[#allocation10] sm:$0xff]
    %v2639 = vld [vmem:[#allocation10 + $0x8] sm:$0x3]
    %v2642 = vlaneseq
    %v2643 = vshrl.u32 %v2642, 7
    %v2644 = vsub.s32 0, %v2643
    %v2645 = vrot.slane %v2638, %v2644
    %v2646 = vlaneseq
    %v2647 = vshrl.u32 %v2646, 7
    %v2648 = vsub.s32 1, %v2647
    %v2649 = vrot.slane %v2638, %v2648
    %v2650 = vlaneseq
    %v2651 = vshrl.u32 %v2650, 7
    %v2652 = vsub.s32 2, %v2651
    %v2653 = vrot.slane %v2638, %v2652
    %v2654 = vlaneseq
    %v2655 = vshrl.u32 %v2654, 7
    %v2656 = vsub.s32 3, %v2655
    %v2657 = vrot.slane %v2638, %v2656
    %v2658 = vlaneseq
    %v2659 = vshrl.u32 %v2658, 7
    %v2660 = vsub.s32 4, %v2659
    %v2661 = vrot.slane %v2638, %v2660
    %v2662 = vlaneseq
    %v2663 = vshrl.u32 %v2662, 7
    %v2664 = vsub.s32 5, %v2663
    %v2665 = vrot.slane %v2638, %v2664
    %v2666 = vlaneseq
    %v2667 = vshrl.u32 %v2666, 7
    %v2668 = vsub.s32 6, %v2667
    %v2669 = vrot.slane %v2638, %v2668
    %v2670 = vlaneseq
    %v2671 = vshrl.u32 %v2670, 7
    %v2672 = vsub.s32 7, %v2671
    %v2673 = vrot.slane %v2638, %v2672
    %v2674 = vlaneseq
    %v2675 = vshrl.u32 %v2674, 7
    %v2676 = vsub.s32 0, %v2675
    %v2677 = vrot.slane %v2639, %v2676
    %v2678 = vlaneseq
    %v2679 = vshrl.u32 %v2678, 7
    %v2680 = vsub.s32 1, %v2679
    %v2681 = vrot.slane %v2639, %v2680
    %v3492 = vunpack.c.l.b16 %v1838
    %v3493 = vunpack.c.h.b16 %v1838
    %v3494 = vunpack.c.l.b16 %v1839
    %v3495 = vunpack.c.h.b16 %v1839
    %v3496 = vunpack.c.l.b16 %v1840
    %v3497 = vunpack.c.h.b16 %v1840
    %v3498 = vunpack.c.l.b16 %v1841
    %v3499 = vunpack.c.h.b16 %v1841
    %v3500 = vunpack.c.l.b16 %v1842
    %v3501 = vunpack.c.h.b16 %v1842
    %v3502 = vunpack.c.l.b16 %v1843
    %v3503 = vunpack.c.h.b16 %v1843
    %v3504 = vunpack.c.l.b16 %v1844
    %v3505 = vunpack.c.h.b16 %v1844
    %v3506 = vunpack.c.l.b16 %v1845
    %v3507 = vunpack.c.h.b16 %v1845
    %v3508 = vunpack.c.l.b16 %v1846
    %v3509 = vunpack.c.h.b16 %v1846
    %v3510 = vunpack.c.l.b16 %v1847
    %v3511 = vunpack.c.h.b16 %v1847
    %v3512 = vunpack.c.l.b16 %v1848
    %v3513 = vunpack.c.h.b16 %v1848
    %v3514 = vunpack.c.l.b16 %v1849
    %v3515 = vunpack.c.h.b16 %v1849
    %v3516 = vunpack.c.l.b16 %v1850
    %v3517 = vunpack.c.h.b16 %v1850
    %v3518 = vunpack.c.l.b16 %v1851
    %v3519 = vunpack.c.h.b16 %v1851
    %v3520 = vunpack.c.l.b16 %v1852
    %v3521 = vunpack.c.h.b16 %v1852
    %v3522 = vunpack.c.l.b16 %v1853
    %v3523 = vunpack.c.h.b16 %v1853
    %v3524 = vunpack.c.l.b16 %v1854
    %v3525 = vunpack.c.h.b16 %v1854
    %v3526 = vunpack.c.l.b16 %v1855
    %v3527 = vunpack.c.h.b16 %v1855
    %v3528 = vunpack.c.l.b16 %v1856
    %v3529 = vunpack.c.h.b16 %v1856
    %v3530 = vunpack.c.l.b16 %v1857
    %v3531 = vunpack.c.h.b16 %v1857
    %v3532 = vunpack.c.l.b16 %v1858
    %v3533 = vunpack.c.h.b16 %v1858
    %v3534 = vunpack.c.l.b16 %v1859
    %v3535 = vunpack.c.h.b16 %v1859
    %v3536 = vunpack.c.l.b16 %v1860
    %v3537 = vunpack.c.h.b16 %v1860
    %v3538 = vunpack.c.l.b16 %v1861
    %v3539 = vunpack.c.h.b16 %v1861
    %v3540 = vunpack.c.l.b16 %v1862
    %v3541 = vunpack.c.h.b16 %v1862
    %v3542 = vunpack.c.l.b16 %v1863
    %v3543 = vunpack.c.h.b16 %v1863
    %v3544 = vunpack.c.l.b16 %v1864
    %v3545 = vunpack.c.h.b16 %v1864
    %v3546 = vunpack.c.l.b16 %v1865
    %v3547 = vunpack.c.h.b16 %v1865
    %v3548 = vunpack.c.l.b16 %v1866
    %v3549 = vunpack.c.h.b16 %v1866
    %v3550 = vunpack.c.l.b16 %v1867
    %v3551 = vunpack.c.h.b16 %v1867
    %v3552 = vunpack.c.l.b16 %v1868
    %v3553 = vunpack.c.h.b16 %v1868
    %v3554 = vunpack.c.l.b16 %v1869
    %v3555 = vunpack.c.h.b16 %v1869
    %v3556 = vunpack.c.l.b16 %v1870
    %v3557 = vunpack.c.h.b16 %v1870
    %v3558 = vunpack.c.l.b16 %v1871
    %v3559 = vunpack.c.h.b16 %v1871
    %v3560 = vunpack.c.l.b16 %v1872
    %v3561 = vunpack.c.h.b16 %v1872
    %v3562 = vunpack.c.l.b16 %v1873
    %v3563 = vunpack.c.h.b16 %v1873
    %v3564 = vunpack.c.l.b16 %v1874
    %v3565 = vunpack.c.h.b16 %v1874
    %v3566 = vunpack.c.l.b16 %v1875
    %v3567 = vunpack.c.h.b16 %v1875
    %v3568 = vunpack.c.l.b16 %v1876
    %v3569 = vunpack.c.h.b16 %v1876
    %v3570 = vunpack.c.l.b16 %v1877
    %v3571 = vunpack.c.h.b16 %v1877
    %v3572 = vunpack.c.l.b16 %v1878
    %v3573 = vunpack.c.h.b16 %v1878
    %v3574 = vunpack.c.l.b16 %v1879
    %v3575 = vunpack.c.h.b16 %v1879
    %v3576 = vunpack.c.l.b16 %v1880
    %v3577 = vunpack.c.h.b16 %v1880
    %v3578 = vunpack.c.l.b16 %v1881
    %v3579 = vunpack.c.h.b16 %v1881
    %v3580 = vunpack.c.l.b16 %v1882
    %v3581 = vunpack.c.h.b16 %v1882
    %v3582 = vunpack.c.l.b16 %v1883
    %v3583 = vunpack.c.h.b16 %v1883
    %v3584 = vunpack.c.l.b16 %v1884
    %v3585 = vunpack.c.h.b16 %v1884
    %v3586 = vunpack.c.l.b16 %v1885
    %v3587 = vunpack.c.h.b16 %v1885
    %v3588 = vunpack.c.l.b16 %v1886
    %v3589 = vunpack.c.h.b16 %v1886
    %v3590 = vunpack.c.l.b16 %v1887
    %v3591 = vunpack.c.h.b16 %v1887
    %v3592 = vunpack.c.l.b16 %v1888
    %v3593 = vunpack.c.h.b16 %v1888
    %v3594 = vunpack.c.l.b16 %v1889
    %v3595 = vunpack.c.h.b16 %v1889
    %v3596 = vunpack.c.l.b16 %v1890
    %v3597 = vunpack.c.h.b16 %v1890
    %v3598 = vunpack.c.l.b16 %v1891
    %v3599 = vunpack.c.h.b16 %v1891
    %v3600 = vunpack.c.l.b16 %v1892
    %v3601 = vunpack.c.h.b16 %v1892
    %v3602 = vunpack.c.l.b16 %v1893
    %v3603 = vunpack.c.h.b16 %v1893
    %v3604 = vunpack.c.l.b16 %v1894
    %v3605 = vunpack.c.h.b16 %v1894
    %v3606 = vunpack.c.l.b16 %v1895
    %v3607 = vunpack.c.h.b16 %v1895
    %v3608 = vunpack.c.l.b16 %v1896
    %v3609 = vunpack.c.h.b16 %v1896
    %v3610 = vunpack.c.l.b16 %v1897
    %v3611 = vunpack.c.h.b16 %v1897
    %v3612 = vunpack.c.l.b16 %v1898
    %v3613 = vunpack.c.h.b16 %v1898
    %v3614 = vunpack.c.l.b16 %v1899
    %v3615 = vunpack.c.h.b16 %v1899
    %v3616 = vunpack.c.l.b16 %v1900
    %v3617 = vunpack.c.h.b16 %v1900
    %v3618 = vunpack.c.l.b16 %v1901
    %v3619 = vunpack.c.h.b16 %v1901
    %v3620 = vunpack.c.l.b16 %v1902
    %v3621 = vunpack.c.h.b16 %v1902
    %v3622 = vunpack.c.l.b16 %v1903
    %v3623 = vunpack.c.h.b16 %v1903
    %v3624 = vunpack.c.l.b16 %v1904
    %v3625 = vunpack.c.h.b16 %v1904
    %v3626 = vunpack.c.l.b16 %v1905
    %v3627 = vunpack.c.h.b16 %v1905
    %v3628 = vunpack.c.l.b16 %v1906
    %v3629 = vunpack.c.h.b16 %v1906
    %v3630 = vunpack.c.l.b16 %v1907
    %v3631 = vunpack.c.h.b16 %v1907
    %v3632 = vunpack.c.l.b16 %v1908
    %v3633 = vunpack.c.h.b16 %v1908
    %v3634 = vunpack.c.l.b16 %v1909
    %v3635 = vunpack.c.h.b16 %v1909
    %v3636 = vunpack.c.l.b16 %v1910
    %v3637 = vunpack.c.h.b16 %v1910
    %v3638 = vunpack.c.l.b16 %v1911
    %v3639 = vunpack.c.h.b16 %v1911
    %v3640 = vunpack.c.l.b16 %v1912
    %v3641 = vunpack.c.h.b16 %v1912
    %v3642 = vunpack.c.l.b16 %v1913
    %v3643 = vunpack.c.h.b16 %v1913
    %v3644 = vunpack.c.l.b16 %v1914
    %v3645 = vunpack.c.h.b16 %v1914
    %v3646 = vunpack.c.l.b16 %v1915
    %v3647 = vunpack.c.h.b16 %v1915
    %v3648 = vunpack.c.l.b16 %v1916
    %v3649 = vunpack.c.h.b16 %v1916
    %v3650 = vunpack.c.l.b16 %v1917
    %v3651 = vunpack.c.h.b16 %v1917
    %v3652 = vunpack.c.l.b16 %v1918
    %v3653 = vunpack.c.h.b16 %v1918
    %v3654 = vunpack.c.l.b16 %v1919
    %v3655 = vunpack.c.h.b16 %v1919
    %v3656 = vunpack.c.l.b16 %v1920
    %v3657 = vunpack.c.h.b16 %v1920
    %v3658 = vunpack.c.l.b16 %v1921
    %v3659 = vunpack.c.h.b16 %v1921
    %v3660 = vunpack.c.l.b16 %v1922
    %v3661 = vunpack.c.h.b16 %v1922
    %v3662 = vunpack.c.l.b16 %v1923
    %v3663 = vunpack.c.h.b16 %v1923
    %v3664 = vunpack.c.l.b16 %v1924
    %v3665 = vunpack.c.h.b16 %v1924
    %v3666 = vunpack.c.l.b16 %v1925
    %v3667 = vunpack.c.h.b16 %v1925
    %v3668 = vunpack.c.l.b16 %v1926
    %v3669 = vunpack.c.h.b16 %v1926
    %v3670 = vunpack.c.l.b16 %v1927
    %v3671 = vunpack.c.h.b16 %v1927
    %v3672 = vunpack.c.l.b16 %v1928
    %v3673 = vunpack.c.h.b16 %v1928
    %v3674 = vunpack.c.l.b16 %v1929
    %v3675 = vunpack.c.h.b16 %v1929
    %v3676 = vunpack.c.l.b16 %v1930
    %v3677 = vunpack.c.h.b16 %v1930
    %v3678 = vunpack.c.l.b16 %v1931
    %v3679 = vunpack.c.h.b16 %v1931
    %v3680 = vunpack.c.l.b16 %v1932
    %v3681 = vunpack.c.h.b16 %v1932
    %v3682 = vunpack.c.l.b16 %v1933
    %v3683 = vunpack.c.h.b16 %v1933
    %v3684 = vunpack.c.l.b16 %v1934
    %v3685 = vunpack.c.h.b16 %v1934
    %v3686 = vunpack.c.l.b16 %v1935
    %v3687 = vunpack.c.h.b16 %v1935
    %v3688 = vunpack.c.l.b16 %v1936
    %v3689 = vunpack.c.h.b16 %v1936
    %v3690 = vunpack.c.l.b16 %v1937
    %v3691 = vunpack.c.h.b16 %v1937
    %v3692 = vunpack.c.l.b16 %v1938
    %v3693 = vunpack.c.h.b16 %v1938
    %v3694 = vunpack.c.l.b16 %v1939
    %v3695 = vunpack.c.h.b16 %v1939
    %v3696 = vunpack.c.l.b16 %v1940
    %v3697 = vunpack.c.h.b16 %v1940
    %v3698 = vunpack.c.l.b16 %v1941
    %v3699 = vunpack.c.h.b16 %v1941
    %v3700 = vunpack.c.l.b16 %v1942
    %v3701 = vunpack.c.h.b16 %v1942
    %v3702 = vunpack.c.l.b16 %v1943
    %v3703 = vunpack.c.h.b16 %v1943
    %v3704 = vunpack.c.l.b16 %v1944
    %v3705 = vunpack.c.h.b16 %v1944
    %v3706 = vunpack.c.l.b16 %v1945
    %v3707 = vunpack.c.h.b16 %v1945
    %v3708 = vunpack.c.l.b16 %v1946
    %v3709 = vunpack.c.h.b16 %v1946
    %v3710 = vunpack.c.l.b16 %v1947
    %v3711 = vunpack.c.h.b16 %v1947
    %v3712 = vunpack.c.l.b16 %v1948
    %v3713 = vunpack.c.h.b16 %v1948
    %v3714 = vunpack.c.l.b16 %v1949
    %v3715 = vunpack.c.h.b16 %v1949
    %v3716 = vunpack.c.l.b16 %v1950
    %v3717 = vunpack.c.h.b16 %v1950
    %v3718 = vunpack.c.l.b16 %v1951
    %v3719 = vunpack.c.h.b16 %v1951
    %v3720 = vunpack.c.l.b16 %v1952
    %v3721 = vunpack.c.h.b16 %v1952
    %v3722 = vunpack.c.l.b16 %v1953
    %v3723 = vunpack.c.h.b16 %v1953
    %v3724 = vunpack.c.l.b16 %v1954
    %v3725 = vunpack.c.h.b16 %v1954
    %v3726 = vunpack.c.l.b16 %v1955
    %v3727 = vunpack.c.h.b16 %v1955
    %v3728 = vunpack.c.l.b16 %v1956
    %v3729 = vunpack.c.h.b16 %v1956
    %v3730 = vunpack.c.l.b16 %v1957
    %v3731 = vunpack.c.h.b16 %v1957
    %v3732 = vunpack.c.l.b16 %v1958
    %v3733 = vunpack.c.h.b16 %v1958
    %v3734 = vunpack.c.l.b16 %v1959
    %v3735 = vunpack.c.h.b16 %v1959
    %v3736 = vunpack.c.l.b16 %v1960
    %v3737 = vunpack.c.h.b16 %v1960
    %v3738 = vunpack.c.l.b16 %v1961
    %v3739 = vunpack.c.h.b16 %v1961
    %v3740 = vunpack.c.l.b16 %v1962
    %v3741 = vunpack.c.h.b16 %v1962
    %v3742 = vunpack.c.l.b16 %v1963
    %v3743 = vunpack.c.h.b16 %v1963
    %v3744 = vunpack.c.l.b16 %v1964
    %v3745 = vunpack.c.h.b16 %v1964
    %v3746 = vunpack.c.l.b16 %v1965
    %v3747 = vunpack.c.h.b16 %v1965
    %v3748 = vunpack.c.l.b16 %v1966
    %v3749 = vunpack.c.h.b16 %v1966
    %v3750 = vunpack.c.l.b16 %v1967
    %v3751 = vunpack.c.h.b16 %v1967
    %v3752 = vunpack.c.l.b16 %v1968
    %v3753 = vunpack.c.h.b16 %v1968
    %v3754 = vunpack.c.l.b16 %v1969
    %v3755 = vunpack.c.h.b16 %v1969
    %v3756 = vunpack.c.l.b16 %v1970
    %v3757 = vunpack.c.h.b16 %v1970
    %v3758 = vunpack.c.l.b16 %v1971
    %v3759 = vunpack.c.h.b16 %v1971
    %v3760 = vunpack.c.l.b16 %v1972
    %v3761 = vunpack.c.h.b16 %v1972
    %v3762 = vunpack.c.l.b16 %v1973
    %v3763 = vunpack.c.h.b16 %v1973
    %v3764 = vunpack.c.l.b16 %v1974
    %v3765 = vunpack.c.h.b16 %v1974
    %v3766 = vunpack.c.l.b16 %v1975
    %v3767 = vunpack.c.h.b16 %v1975
    %v3768 = vunpack.c.l.b16 %v1976
    %v3769 = vunpack.c.h.b16 %v1976
    %v3770 = vunpack.c.l.b16 %v1977
    %v3771 = vunpack.c.h.b16 %v1977
    %v3772 = vunpack.c.l.b16 %v1978
    %v3773 = vunpack.c.h.b16 %v1978
    %v3774 = vunpack.c.l.b16 %v1979
    %v3775 = vunpack.c.h.b16 %v1979
    %v3776 = vunpack.c.l.b16 %v1980
    %v3777 = vunpack.c.h.b16 %v1980
    %v3778 = vunpack.c.l.b16 %v1981
    %v3779 = vunpack.c.h.b16 %v1981
    %v3780 = vunpack.c.l.b16 %v1982
    %v3781 = vunpack.c.h.b16 %v1982
    %v3782 = vunpack.c.l.b16 %v1983
    %v3783 = vunpack.c.h.b16 %v1983
    %v3784 = vunpack.c.l.b16 %v1984
    %v3785 = vunpack.c.h.b16 %v1984
    %v3786 = vunpack.c.l.b16 %v1985
    %v3787 = vunpack.c.h.b16 %v1985
    %v3788 = vunpack.c.l.b16 %v1986
    %v3789 = vunpack.c.h.b16 %v1986
    %v3790 = vunpack.c.l.b16 %v1987
    %v3791 = vunpack.c.h.b16 %v1987
    %v3792 = vunpack.c.l.b16 %v1988
    %v3793 = vunpack.c.h.b16 %v1988
    %v3794 = vunpack.c.l.b16 %v1989
    %v3795 = vunpack.c.h.b16 %v1989
    %v3796 = vunpack.c.l.b16 %v1990
    %v3797 = vunpack.c.h.b16 %v1990
    %v3798 = vunpack.c.l.b16 %v1991
    %v3799 = vunpack.c.h.b16 %v1991
    %v3800 = vunpack.c.l.b16 %v1992
    %v3801 = vunpack.c.h.b16 %v1992
    %v3802 = vunpack.c.l.b16 %v1993
    %v3803 = vunpack.c.h.b16 %v1993
    %v3804 = vunpack.c.l.b16 %v1994
    %v3805 = vunpack.c.h.b16 %v1994
    %v3806 = vunpack.c.l.b16 %v1995
    %v3807 = vunpack.c.h.b16 %v1995
    %v3808 = vunpack.c.l.b16 %v1996
    %v3809 = vunpack.c.h.b16 %v1996
    %v3810 = vunpack.c.l.b16 %v1997
    %v3811 = vunpack.c.h.b16 %v1997
    %v3812 = vunpack.c.l.b16 %v1998
    %v3813 = vunpack.c.h.b16 %v1998
    %v3814 = vunpack.c.l.b16 %v1999
    %v3815 = vunpack.c.h.b16 %v1999
    %v3816 = vunpack.c.l.b16 %v2000
    %v3817 = vunpack.c.h.b16 %v2000
    %v3818 = vunpack.c.l.b16 %v2001
    %v3819 = vunpack.c.h.b16 %v2001
    %v3820 = vunpack.c.l.b16 %v2002
    %v3821 = vunpack.c.h.b16 %v2002
    %v3822 = vunpack.c.l.b16 %v2003
    %v3823 = vunpack.c.h.b16 %v2003
    %v3824 = vunpack.c.l.b16 %v2004
    %v3825 = vunpack.c.h.b16 %v2004
    %v3826 = vunpack.c.l.b16 %v2005
    %v3827 = vunpack.c.h.b16 %v2005
    %v3828 = vunpack.c.l.b16 %v2006
    %v3829 = vunpack.c.h.b16 %v2006
    %v3830 = vunpack.c.l.b16 %v2007
    %v3831 = vunpack.c.h.b16 %v2007
    %v3832 = vunpack.c.l.b16 %v2008
    %v3833 = vunpack.c.h.b16 %v2008
    %v3834 = vunpack.c.l.b16 %v2009
    %v3835 = vunpack.c.h.b16 %v2009
    %v3836 = vunpack.c.l.b16 %v2010
    %v3837 = vunpack.c.h.b16 %v2010
    %v3838 = vunpack.c.l.b16 %v2011
    %v3839 = vunpack.c.h.b16 %v2011
    %v3840 = vunpack.c.l.b16 %v2012
    %v3841 = vunpack.c.h.b16 %v2012
    %v3842 = vunpack.c.l.b16 %v2013
    %v3843 = vunpack.c.h.b16 %v2013
    %v3844 = vunpack.c.l.b16 %v2014
    %v3845 = vunpack.c.h.b16 %v2014
    %v3846 = vunpack.c.l.b16 %v2015
    %v3847 = vunpack.c.h.b16 %v2015
    %v3848 = vunpack.c.l.b16 %v2016
    %v3849 = vunpack.c.h.b16 %v2016
    %v3850 = vunpack.c.l.b16 %v2017
    %v3851 = vunpack.c.h.b16 %v2017
    %v3852 = vunpack.c.l.b16 %v2018
    %v3853 = vunpack.c.h.b16 %v2018
    %v3854 = vunpack.c.l.b16 %v2019
    %v3855 = vunpack.c.h.b16 %v2019
    %v3856 = vunpack.c.l.b16 %v2020
    %v3857 = vunpack.c.h.b16 %v2020
    %v3858 = vunpack.c.l.b16 %v2021
    %v3859 = vunpack.c.h.b16 %v2021
    %v3860 = vunpack.c.l.b16 %v2022
    %v3861 = vunpack.c.h.b16 %v2022
    %v3862 = vunpack.c.l.b16 %v2023
    %v3863 = vunpack.c.h.b16 %v2023
    %v3864 = vunpack.c.l.b16 %v2024
    %v3865 = vunpack.c.h.b16 %v2024
    %v3866 = vunpack.c.l.b16 %v2025
    %v3867 = vunpack.c.h.b16 %v2025
    %v3868 = vunpack.c.l.b16 %v2026
    %v3869 = vunpack.c.h.b16 %v2026
    %v3870 = vunpack.c.l.b16 %v2027
    %v3871 = vunpack.c.h.b16 %v2027
    %v3872 = vunpack.c.l.b16 %v2028
    %v3873 = vunpack.c.h.b16 %v2028
    %v3874 = vunpack.c.l.b16 %v2029
    %v3875 = vunpack.c.h.b16 %v2029
    %v3876 = vunpack.c.l.b16 %v2030
    %v3877 = vunpack.c.h.b16 %v2030
    %v3878 = vunpack.c.l.b16 %v2031
    %v3879 = vunpack.c.h.b16 %v2031
    %v3880 = vunpack.c.l.b16 %v2032
    %v3881 = vunpack.c.h.b16 %v2032
    %v3882 = vunpack.c.l.b16 %v2033
    %v3883 = vunpack.c.h.b16 %v2033
    %v3884 = vunpack.c.l.b16 %v2034
    %v3885 = vunpack.c.h.b16 %v2034
    %v3886 = vunpack.c.l.b16 %v2035
    %v3887 = vunpack.c.h.b16 %v2035
    %v3888 = vunpack.c.l.b16 %v2036
    %v3889 = vunpack.c.h.b16 %v2036
    %v3890 = vunpack.c.l.b16 %v2037
    %v3891 = vunpack.c.h.b16 %v2037
    %v3892 = vunpack.c.l.b16 %v2038
    %v3893 = vunpack.c.h.b16 %v2038
    %v3894 = vunpack.c.l.b16 %v2039
    %v3895 = vunpack.c.h.b16 %v2039
    %v3896 = vunpack.c.l.b16 %v2040
    %v3897 = vunpack.c.h.b16 %v2040
    %v3898 = vunpack.c.l.b16 %v2041
    %v3899 = vunpack.c.h.b16 %v2041
    %v3900 = vunpack.c.l.b16 %v2042
    %v3901 = vunpack.c.h.b16 %v2042
    %v3902 = vunpack.c.l.b16 %v2043
    %v3903 = vunpack.c.h.b16 %v2043
    %v3904 = vunpack.c.l.b16 %v2044
    %v3905 = vunpack.c.h.b16 %v2044
    %v3906 = vunpack.c.l.b16 %v2045
    %v3907 = vunpack.c.h.b16 %v2045
    %v3908 = vunpack.c.l.b16 %v2046
    %v3909 = vunpack.c.h.b16 %v2046
    %v3910 = vunpack.c.l.b16 %v2047
    %v3911 = vunpack.c.h.b16 %v2047
    %v3912 = vunpack.c.l.b16 %v2048
    %v3913 = vunpack.c.h.b16 %v2048
    %v3914 = vunpack.c.l.b16 %v2049
    %v3915 = vunpack.c.h.b16 %v2049
    %v3916 = vunpack.c.l.b16 %v2050
    %v3917 = vunpack.c.h.b16 %v2050
    %v3918 = vunpack.c.l.b16 %v2051
    %v3919 = vunpack.c.h.b16 %v2051
    %v3920 = vunpack.c.l.b16 %v2052
    %v3921 = vunpack.c.h.b16 %v2052
    %v3922 = vunpack.c.l.b16 %v2053
    %v3923 = vunpack.c.h.b16 %v2053
    %v3924 = vunpack.c.l.b16 %v2054
    %v3925 = vunpack.c.h.b16 %v2054
    %v3926 = vunpack.c.l.b16 %v2055
    %v3927 = vunpack.c.h.b16 %v2055
    %v3928 = vunpack.c.l.b16 %v2056
    %v3929 = vunpack.c.h.b16 %v2056
    %v3930 = vunpack.c.l.b16 %v2057
    %v3931 = vunpack.c.h.b16 %v2057
    %v3932 = vunpack.c.l.b16 %v2058
    %v3933 = vunpack.c.h.b16 %v2058
    %v3934 = vunpack.c.l.b16 %v2059
    %v3935 = vunpack.c.h.b16 %v2059
    %v3936 = vunpack.c.l.b16 %v2060
    %v3937 = vunpack.c.h.b16 %v2060
    %v3938 = vunpack.c.l.b16 %v2061
    %v3939 = vunpack.c.h.b16 %v2061
    %v3940 = vunpack.c.l.b16 %v2062
    %v3941 = vunpack.c.h.b16 %v2062
    %v3942 = vunpack.c.l.b16 %v2063
    %v3943 = vunpack.c.h.b16 %v2063
    %v3944 = vunpack.c.l.b16 %v2064
    %v3945 = vunpack.c.h.b16 %v2064
    %v3946 = vunpack.c.l.b16 %v2065
    %v3947 = vunpack.c.h.b16 %v2065
    %v3948 = vunpack.c.l.b16 %v2066
    %v3949 = vunpack.c.h.b16 %v2066
    %v3950 = vunpack.c.l.b16 %v2067
    %v3951 = vunpack.c.h.b16 %v2067
    %v3952 = vunpack.c.l.b16 %v2068
    %v3953 = vunpack.c.h.b16 %v2068
    %v3954 = vunpack.c.l.b16 %v2069
    %v3955 = vunpack.c.h.b16 %v2069
    %v3956 = vunpack.c.l.b16 %v2070
    %v3957 = vunpack.c.h.b16 %v2070
    %v3958 = vunpack.c.l.b16 %v2071
    %v3959 = vunpack.c.h.b16 %v2071
    %v3960 = vunpack.c.l.b16 %v2072
    %v3961 = vunpack.c.h.b16 %v2072
    %v3962 = vunpack.c.l.b16 %v2073
    %v3963 = vunpack.c.h.b16 %v2073
    %v3964 = vunpack.c.l.b16 %v2074
    %v3965 = vunpack.c.h.b16 %v2074
    %v3966 = vunpack.c.l.b16 %v2075
    %v3967 = vunpack.c.h.b16 %v2075
    %v3968 = vunpack.c.l.b16 %v2076
    %v3969 = vunpack.c.h.b16 %v2076
    %v3970 = vunpack.c.l.b16 %v2077
    %v3971 = vunpack.c.h.b16 %v2077
    %v3972 = vunpack.c.l.b16 %v2078
    %v3973 = vunpack.c.h.b16 %v2078
    %v3974 = vunpack.c.l.b16 %v2079
    %v3975 = vunpack.c.h.b16 %v2079
    %v3976 = vunpack.c.l.b16 %v2080
    %v3977 = vunpack.c.h.b16 %v2080
    %v3978 = vunpack.c.l.b16 %v2081
    %v3979 = vunpack.c.h.b16 %v2081
    %v3980 = vunpack.c.l.b16 %v2082
    %v3981 = vunpack.c.h.b16 %v2082
    %v3982 = vunpack.c.l.b16 %v2083
    %v3983 = vunpack.c.h.b16 %v2083
    %v3984 = vunpack.c.l.b16 %v2084
    %v3985 = vunpack.c.h.b16 %v2084
    %v3986 = vunpack.c.l.b16 %v2085
    %v3987 = vunpack.c.h.b16 %v2085
    %v3988 = vunpack.c.l.b16 %v2086
    %v3989 = vunpack.c.h.b16 %v2086
    %v3990 = vunpack.c.l.b16 %v2087
    %v3991 = vunpack.c.h.b16 %v2087
    %v3992 = vunpack.c.l.b16 %v2088
    %v3993 = vunpack.c.h.b16 %v2088
    %v3994 = vunpack.c.l.b16 %v2089
    %v3995 = vunpack.c.h.b16 %v2089
    %v3996 = vunpack.c.l.b16 %v2090
    %v3997 = vunpack.c.h.b16 %v2090
    %v3998 = vunpack.c.l.b16 %v2091
    %v3999 = vunpack.c.h.b16 %v2091
    %v4000 = vunpack.c.l.b16 %v2092
    %v4001 = vunpack.c.h.b16 %v2092
    %v4002 = vunpack.c.l.b16 %v2093
    %v4003 = vunpack.c.h.b16 %v2093
    %v4004 = vunpack.c.l.b16 %v2094
    %v4005 = vunpack.c.h.b16 %v2094
    %v4006 = vunpack.c.l.b16 %v2095
    %v4007 = vunpack.c.h.b16 %v2095
    %v4008 = vunpack.c.l.b16 %v2096
    %v4009 = vunpack.c.h.b16 %v2096
    %v4010 = vunpack.c.l.b16 %v2097
    %v4011 = vunpack.c.h.b16 %v2097
    %v4012 = vunpack.c.l.b16 %v2098
    %v4013 = vunpack.c.h.b16 %v2098
    %v4014 = vunpack.c.l.b16 %v2099
    %v4015 = vunpack.c.h.b16 %v2099
    %v4016 = vunpack.c.l.b16 %v2100
    %v4017 = vunpack.c.h.b16 %v2100
    %v4018 = vunpack.c.l.b16 %v2101
    %v4019 = vunpack.c.h.b16 %v2101
    %v4020 = vunpack.c.l.b16 %v2102
    %v4021 = vunpack.c.h.b16 %v2102
    %v4022 = vunpack.c.l.b16 %v2103
    %v4023 = vunpack.c.h.b16 %v2103
    %v4024 = vunpack.c.l.b16 %v2104
    %v4025 = vunpack.c.h.b16 %v2104
    %v4026 = vunpack.c.l.b16 %v2105
    %v4027 = vunpack.c.h.b16 %v2105
    %v4028 = vunpack.c.l.b16 %v2106
    %v4029 = vunpack.c.h.b16 %v2106
    %v4030 = vunpack.c.l.b16 %v2107
    %v4031 = vunpack.c.h.b16 %v2107
    %v4032 = vunpack.c.l.b16 %v2108
    %v4033 = vunpack.c.h.b16 %v2108
    %v4034 = vunpack.c.l.b16 %v2109
    %v4035 = vunpack.c.h.b16 %v2109
    %v4036 = vunpack.c.l.b16 %v2110
    %v4037 = vunpack.c.h.b16 %v2110
    %v4038 = vunpack.c.l.b16 %v2111
    %v4039 = vunpack.c.h.b16 %v2111
    %v4040 = vunpack.c.l.b16 %v2112
    %v4041 = vunpack.c.h.b16 %v2112
    %v4042 = vunpack.c.l.b16 %v2113
    %v4043 = vunpack.c.h.b16 %v2113
    %v4044 = vunpack.c.l.b16 %v2114
    %v4045 = vunpack.c.h.b16 %v2114
    %v4046 = vunpack.c.l.b16 %v2115
    %v4047 = vunpack.c.h.b16 %v2115
    %v4048 = vunpack.c.l.b16 %v2116
    %v4049 = vunpack.c.h.b16 %v2116
    %v4050 = vunpack.c.l.b16 %v2117
    %v4051 = vunpack.c.h.b16 %v2117
    %v4052 = vunpack.c.l.b16 %v2118
    %v4053 = vunpack.c.h.b16 %v2118
    %v4054 = vunpack.c.l.b16 %v2119
    %v4055 = vunpack.c.h.b16 %v2119
    %v4056 = vunpack.c.l.b16 %v2120
    %v4057 = vunpack.c.h.b16 %v2120
    %v4058 = vunpack.c.l.b16 %v2121
    %v4059 = vunpack.c.h.b16 %v2121
    %v4060 = vunpack.c.l.b16 %v2122
    %v4061 = vunpack.c.h.b16 %v2122
    %v4062 = vunpack.c.l.b16 %v2123
    %v4063 = vunpack.c.h.b16 %v2123
    %v4064 = vunpack.c.l.b16 %v2124
    %v4065 = vunpack.c.h.b16 %v2124
    %v4066 = vunpack.c.l.b16 %v2125
    %v4067 = vunpack.c.h.b16 %v2125
    %v4068 = vunpack.c.l.b16 %v2126
    %v4069 = vunpack.c.h.b16 %v2126
    %v4070 = vunpack.c.l.b16 %v2127
    %v4071 = vunpack.c.h.b16 %v2127
    %v4072 = vunpack.c.l.b16 %v2128
    %v4073 = vunpack.c.h.b16 %v2128
    %v4074 = vunpack.c.l.b16 %v2129
    %v4075 = vunpack.c.h.b16 %v2129
    %v4076 = vunpack.c.l.b16 %v2130
    %v4077 = vunpack.c.h.b16 %v2130
    %v4078 = vunpack.c.l.b16 %v2131
    %v4079 = vunpack.c.h.b16 %v2131
    %v4080 = vunpack.c.l.b16 %v2132
    %v4081 = vunpack.c.h.b16 %v2132
    %v4082 = vunpack.c.l.b16 %v2133
    %v4083 = vunpack.c.h.b16 %v2133
    %v4084 = vunpack.c.l.b16 %v2134
    %v4085 = vunpack.c.h.b16 %v2134
    %v4086 = vunpack.c.l.b16 %v2135
    %v4087 = vunpack.c.h.b16 %v2135
    %v4088 = vunpack.c.l.b16 %v2136
    %v4089 = vunpack.c.h.b16 %v2136
    %v4090 = vunpack.c.l.b16 %v2137
    %v4091 = vunpack.c.h.b16 %v2137
    %v4092 = vunpack.c.l.b16 %v2138
    %v4093 = vunpack.c.h.b16 %v2138
    %v4094 = vunpack.c.l.b16 %v2139
    %v4095 = vunpack.c.h.b16 %v2139
    %v4096 = vunpack.c.l.b16 %v2140
    %v4097 = vunpack.c.h.b16 %v2140
    %v4098 = vunpack.c.l.b16 %v2141
    %v4099 = vunpack.c.h.b16 %v2141
    %v4100 = vunpack.c.l.b16 %v2142
    %v4101 = vunpack.c.h.b16 %v2142
    %v4102 = vunpack.c.l.b16 %v2143
    %v4103 = vunpack.c.h.b16 %v2143
    %v4104 = vunpack.c.l.b16 %v2144
    %v4105 = vunpack.c.h.b16 %v2144
    %v4106 = vunpack.c.l.b16 %v2145
    %v4107 = vunpack.c.h.b16 %v2145
    %v4108 = vunpack.c.l.b16 %v2146
    %v4109 = vunpack.c.h.b16 %v2146
    %v4110 = vunpack.c.l.b16 %v2147
    %v4111 = vunpack.c.h.b16 %v2147
    %v4112 = vunpack.c.l.b16 %v2148
    %v4113 = vunpack.c.h.b16 %v2148
    %v4114 = vunpack.c.l.b16 %v2149
    %v4115 = vunpack.c.h.b16 %v2149
    %v4116 = vunpack.c.l.b16 %v2150
    %v4117 = vunpack.c.h.b16 %v2150
    %v4118 = vunpack.c.l.b16 %v2151
    %v4119 = vunpack.c.h.b16 %v2151
    %v4120 = vunpack.c.l.b16 %v2152
    %v4121 = vunpack.c.h.b16 %v2152
    %v4122 = vunpack.c.l.b16 %v2153
    %v4123 = vunpack.c.h.b16 %v2153
    %v4124 = vunpack.c.l.b16 %v2154
    %v4125 = vunpack.c.h.b16 %v2154
    %v4126 = vunpack.c.l.b16 %v2155
    %v4127 = vunpack.c.h.b16 %v2155
    %v4128 = vunpack.c.l.b16 %v2156
    %v4129 = vunpack.c.h.b16 %v2156
    %v4130 = vunpack.c.l.b16 %v2157
    %v4131 = vunpack.c.h.b16 %v2157
    %v4132 = vunpack.c.l.b16 %v2158
    %v4133 = vunpack.c.h.b16 %v2158
    %v4134 = vunpack.c.l.b16 %v2159
    %v4135 = vunpack.c.h.b16 %v2159
    %v4136 = vunpack.c.l.b16 %v2160
    %v4137 = vunpack.c.h.b16 %v2160
    %v4138 = vunpack.c.l.b16 %v2161
    %v4139 = vunpack.c.h.b16 %v2161
    %v4140 = vunpack.c.l.b16 %v2162
    %v4141 = vunpack.c.h.b16 %v2162
    %v4142 = vunpack.c.l.b16 %v2163
    %v4143 = vunpack.c.h.b16 %v2163
    %v4144 = vunpack.c.l.b16 %v2164
    %v4145 = vunpack.c.h.b16 %v2164
    %v4146 = vunpack.c.l.b16 %v2165
    %v4147 = vunpack.c.h.b16 %v2165
    %v4148 = vunpack.c.l.b16 %v2166
    %v4149 = vunpack.c.h.b16 %v2166
    %v4150 = vunpack.c.l.b16 %v2167
    %v4151 = vunpack.c.h.b16 %v2167
    %v4152 = vunpack.c.l.b16 %v2168
    %v4153 = vunpack.c.h.b16 %v2168
    %v4154 = vunpack.c.l.b16 %v2169
    %v4155 = vunpack.c.h.b16 %v2169
    %v4156 = vunpack.c.l.b16 %v2170
    %v4157 = vunpack.c.h.b16 %v2170
    %v4158 = vunpack.c.l.b16 %v2171
    %v4159 = vunpack.c.h.b16 %v2171
    %v4160 = vunpack.c.l.b16 %v2172
    %v4161 = vunpack.c.h.b16 %v2172
    %v4162 = vunpack.c.l.b16 %v2173
    %v4163 = vunpack.c.h.b16 %v2173
    %v4164 = vunpack.c.l.b16 %v2174
    %v4165 = vunpack.c.h.b16 %v2174
    %v4166 = vunpack.c.l.b16 %v2175
    %v4167 = vunpack.c.h.b16 %v2175
    %v4168 = vunpack.c.l.b16 %v2176
    %v4169 = vunpack.c.h.b16 %v2176
    %v4170 = vunpack.c.l.b16 %v2177
    %v4171 = vunpack.c.h.b16 %v2177
    %v4172 = vunpack.c.l.b16 %v2178
    %v4173 = vunpack.c.h.b16 %v2178
    %v4174 = vunpack.c.l.b16 %v2179
    %v4175 = vunpack.c.h.b16 %v2179
    %v4176 = vunpack.c.l.b16 %v2180
    %v4177 = vunpack.c.h.b16 %v2180
    %v4178 = vunpack.c.l.b16 %v2181
    %v4179 = vunpack.c.h.b16 %v2181
    %v4180 = vunpack.c.l.b16 %v2182
    %v4181 = vunpack.c.h.b16 %v2182
    %v4182 = vunpack.c.l.b16 %v2183
    %v4183 = vunpack.c.h.b16 %v2183
    %v4184 = vunpack.c.l.b16 %v2184
    %v4185 = vunpack.c.h.b16 %v2184
    %v4186 = vunpack.c.l.b16 %v2185
    %v4187 = vunpack.c.h.b16 %v2185
    %v4188 = vunpack.c.l.b16 %v2186
    %v4189 = vunpack.c.h.b16 %v2186
    %v4190 = vunpack.c.l.b16 %v2187
    %v4191 = vunpack.c.h.b16 %v2187
    %v4192 = vunpack.c.l.b16 %v2188
    %v4193 = vunpack.c.h.b16 %v2188
    %v4194 = vunpack.c.l.b16 %v2189
    %v4195 = vunpack.c.h.b16 %v2189
    %v4196 = vunpack.c.l.b16 %v2190
    %v4197 = vunpack.c.h.b16 %v2190
    %v4198 = vunpack.c.l.b16 %v2191
    %v4199 = vunpack.c.h.b16 %v2191
    %v4200 = vunpack.c.l.b16 %v2192
    %v4201 = vunpack.c.h.b16 %v2192
    %v4202 = vunpack.c.l.b16 %v2193
    %v4203 = vunpack.c.h.b16 %v2193
    %v4204 = vunpack.c.l.b16 %v2194
    %v4205 = vunpack.c.h.b16 %v2194
    %v4206 = vunpack.c.l.b16 %v2195
    %v4207 = vunpack.c.h.b16 %v2195
    %v4208 = vunpack.c.l.b16 %v2196
    %v4209 = vunpack.c.h.b16 %v2196
    %v4210 = vunpack.c.l.b16 %v2197
    %v4211 = vunpack.c.h.b16 %v2197
    %v4212 = vunpack.c.l.b16 %v2198
    %v4213 = vunpack.c.h.b16 %v2198
    %v4214 = vunpack.c.l.b16 %v2199
    %v4215 = vunpack.c.h.b16 %v2199
    %v4216 = vunpack.c.l.b16 %v2200
    %v4217 = vunpack.c.h.b16 %v2200
    %v4218 = vunpack.c.l.b16 %v2201
    %v4219 = vunpack.c.h.b16 %v2201
    %v4220 = vunpack.c.l.b16 %v2202
    %v4221 = vunpack.c.h.b16 %v2202
    %v4222 = vunpack.c.l.b16 %v2203
    %v4223 = vunpack.c.h.b16 %v2203
    %v4224 = vunpack.c.l.b16 %v2204
    %v4225 = vunpack.c.h.b16 %v2204
    %v4226 = vunpack.c.l.b16 %v2205
    %v4227 = vunpack.c.h.b16 %v2205
    %v4228 = vunpack.c.l.b16 %v2206
    %v4229 = vunpack.c.h.b16 %v2206
    %v4230 = vunpack.c.l.b16 %v2207
    %v4231 = vunpack.c.h.b16 %v2207
    %v4232 = vunpack.c.l.b16 %v2208
    %v4233 = vunpack.c.h.b16 %v2208
    %v4234 = vunpack.c.l.b16 %v2209
    %v4235 = vunpack.c.h.b16 %v2209
    %v4236 = vunpack.c.l.b16 %v2210
    %v4237 = vunpack.c.h.b16 %v2210
    %v4238 = vunpack.c.l.b16 %v2211
    %v4239 = vunpack.c.h.b16 %v2211
    %v4240 = vunpack.c.l.b16 %v2212
    %v4241 = vunpack.c.h.b16 %v2212
    %v4242 = vunpack.c.l.b16 %v2213
    %v4243 = vunpack.c.h.b16 %v2213
    %v4244 = vunpack.c.l.b16 %v2214
    %v4245 = vunpack.c.h.b16 %v2214
    %v4246 = vunpack.c.l.b16 %v2215
    %v4247 = vunpack.c.h.b16 %v2215
    %v4248 = vunpack.c.l.b16 %v2216
    %v4249 = vunpack.c.h.b16 %v2216
    %v4250 = vunpack.c.l.b16 %v2217
    %v4251 = vunpack.c.h.b16 %v2217
    %v4252 = vunpack.c.l.b16 %v2218
    %v4253 = vunpack.c.h.b16 %v2218
    %v4254 = vunpack.c.l.b16 %v2219
    %v4255 = vunpack.c.h.b16 %v2219
    %v4256 = vunpack.c.l.b16 %v2220
    %v4257 = vunpack.c.h.b16 %v2220
    %v4258 = vunpack.c.l.b16 %v2221
    %v4259 = vunpack.c.h.b16 %v2221
    %v4260 = vunpack.c.l.b16 %v2222
    %v4261 = vunpack.c.h.b16 %v2222
    %v4262 = vunpack.c.l.b16 %v2223
    %v4263 = vunpack.c.h.b16 %v2223
    %v4264 = vunpack.c.l.b16 %v2224
    %v4265 = vunpack.c.h.b16 %v2224
    %v4266 = vunpack.c.l.b16 %v2225
    %v4267 = vunpack.c.h.b16 %v2225
    %v4268 = vunpack.c.l.b16 %v2226
    %v4269 = vunpack.c.h.b16 %v2226
    %v4270 = vunpack.c.l.b16 %v2227
    %v4271 = vunpack.c.h.b16 %v2227
    %v4272 = vunpack.c.l.b16 %v2228
    %v4273 = vunpack.c.h.b16 %v2228
    %v4274 = vunpack.c.l.b16 %v2229
    %v4275 = vunpack.c.h.b16 %v2229
    %v4276 = vunpack.c.l.b16 %v2230
    %v4277 = vunpack.c.h.b16 %v2230
    %v4278 = vunpack.c.l.b16 %v2231
    %v4279 = vunpack.c.h.b16 %v2231
    %v4280 = vunpack.c.l.b16 %v2232
    %v4281 = vunpack.c.h.b16 %v2232
    %v4282 = vunpack.c.l.b16 %v2233
    %v4283 = vunpack.c.h.b16 %v2233
    %v4284 = vunpack.c.l.b16 %v2234
    %v4285 = vunpack.c.h.b16 %v2234
    %v4286 = vunpack.c.l.b16 %v2235
    %v4287 = vunpack.c.h.b16 %v2235
    %v4288 = vunpack.c.l.b16 %v2236
    %v4289 = vunpack.c.h.b16 %v2236
    %v4290 = vunpack.c.l.b16 %v2237
    %v4291 = vunpack.c.h.b16 %v2237
    %v4292 = vunpack.c.l.b16 %v2238
    %v4293 = vunpack.c.h.b16 %v2238
    %v4294 = vunpack.c.l.b16 %v2239
    %v4295 = vunpack.c.h.b16 %v2239
    %v4296 = vunpack.c.l.b16 %v2240
    %v4297 = vunpack.c.h.b16 %v2240
    %v4298 = vunpack.c.l.b16 %v2241
    %v4299 = vunpack.c.h.b16 %v2241
    %v4300 = vunpack.c.l.b16 %v2242
    %v4301 = vunpack.c.h.b16 %v2242
    %v4302 = vunpack.c.l.b16 %v2243
    %v4303 = vunpack.c.h.b16 %v2243
    %v4304 = vunpack.c.l.b16 %v2244
    %v4305 = vunpack.c.h.b16 %v2244
    %v4306 = vunpack.c.l.b16 %v2245
    %v4307 = vunpack.c.h.b16 %v2245
    %v4308 = vunpack.c.l.b16 %v2246
    %v4309 = vunpack.c.h.b16 %v2246
    %v4310 = vunpack.c.l.b16 %v2247
    %v4311 = vunpack.c.h.b16 %v2247
    %v4312 = vunpack.c.l.b16 %v2248
    %v4313 = vunpack.c.h.b16 %v2248
    %v4314 = vunpack.c.l.b16 %v2249
    %v4315 = vunpack.c.h.b16 %v2249
    %v4316 = vunpack.c.l.b16 %v2250
    %v4317 = vunpack.c.h.b16 %v2250
    %v4318 = vunpack.c.l.b16 %v2251
    %v4319 = vunpack.c.h.b16 %v2251
    %v4320 = vunpack.c.l.b16 %v2252
    %v4321 = vunpack.c.h.b16 %v2252
    %v4322 = vunpack.c.l.b16 %v2253
    %v4323 = vunpack.c.h.b16 %v2253
    %v4324 = vunpack.c.l.b16 %v2254
    %v4325 = vunpack.c.h.b16 %v2254
    %v4326 = vunpack.c.l.b16 %v2255
    %v4327 = vunpack.c.h.b16 %v2255
    %v4328 = vunpack.c.l.b16 %v2256
    %v4329 = vunpack.c.h.b16 %v2256
    %v4330 = vunpack.c.l.b16 %v2257
    %v4331 = vunpack.c.h.b16 %v2257
    %v4332 = vunpack.c.l.b16 %v2258
    %v4333 = vunpack.c.h.b16 %v2258
    %v4334 = vunpack.c.l.b16 %v2259
    %v4335 = vunpack.c.h.b16 %v2259
    %v4336 = vunpack.c.l.b16 %v2260
    %v4337 = vunpack.c.h.b16 %v2260
    %v4338 = vunpack.c.l.b16 %v2261
    %v4339 = vunpack.c.h.b16 %v2261
    %v4340 = vunpack.c.l.b16 %v2262
    %v4341 = vunpack.c.h.b16 %v2262
    %v4342 = vunpack.c.l.b16 %v2263
    %v4343 = vunpack.c.h.b16 %v2263
    %v4344 = vunpack.c.l.b16 %v2264
    %v4345 = vunpack.c.h.b16 %v2264
    %v4346 = vunpack.c.l.b16 %v2265
    %v4347 = vunpack.c.h.b16 %v2265
    %v4348 = vunpack.c.l.b16 %v2266
    %v4349 = vunpack.c.h.b16 %v2266
    %v4350 = vunpack.c.l.b16 %v2267
    %v4351 = vunpack.c.h.b16 %v2267
    %v4352 = vunpack.c.l.b16 %v2268
    %v4353 = vunpack.c.h.b16 %v2268
    %v4354 = vunpack.c.l.b16 %v2269
    %v4355 = vunpack.c.h.b16 %v2269
    %v4356 = vunpack.c.l.b16 %v2270
    %v4357 = vunpack.c.h.b16 %v2270
    %v4358 = vunpack.c.l.b16 %v2271
    %v4359 = vunpack.c.h.b16 %v2271
    %v4360 = vunpack.c.l.b16 %v2272
    %v4361 = vunpack.c.h.b16 %v2272
    %v4362 = vunpack.c.l.b16 %v2273
    %v4363 = vunpack.c.h.b16 %v2273
    %v4364 = vunpack.c.l.b16 %v2274
    %v4365 = vunpack.c.h.b16 %v2274
    %v4366 = vunpack.c.l.b16 %v2275
    %v4367 = vunpack.c.h.b16 %v2275
    %v4368 = vunpack.c.l.b16 %v2276
    %v4369 = vunpack.c.h.b16 %v2276
    %v4370 = vunpack.c.l.b16 %v2277
    %v4371 = vunpack.c.h.b16 %v2277
    %v4372 = vunpack.c.l.b16 %v2278
    %v4373 = vunpack.c.h.b16 %v2278
    %v4374 = vunpack.c.l.b16 %v2279
    %v4375 = vunpack.c.h.b16 %v2279
    %v4376 = vunpack.c.l.b16 %v2280
    %v4377 = vunpack.c.h.b16 %v2280
    %v4378 = vunpack.c.l.b16 %v2281
    %v4379 = vunpack.c.h.b16 %v2281
    %v4380 = vunpack.c.l.b16 %v2282
    %v4381 = vunpack.c.h.b16 %v2282
    %v4382 = vunpack.c.l.b16 %v2283
    %v4383 = vunpack.c.h.b16 %v2283
    %v4384 = vunpack.c.l.b16 %v2284
    %v4385 = vunpack.c.h.b16 %v2284
    %v4386 = vunpack.c.l.b16 %v2285
    %v4387 = vunpack.c.h.b16 %v2285
    %v4388 = vunpack.c.l.b16 %v2286
    %v4389 = vunpack.c.h.b16 %v2286
    %v4390 = vunpack.c.l.b16 %v2287
    %v4391 = vunpack.c.h.b16 %v2287
    %v4392 = vunpack.c.l.b16 %v2288
    %v4393 = vunpack.c.h.b16 %v2288
    %v4394 = vunpack.c.l.b16 %v2289
    %v4395 = vunpack.c.h.b16 %v2289
    %v4396 = vunpack.c.l.b16 %v2290
    %v4397 = vunpack.c.h.b16 %v2290
    %v4398 = vunpack.c.l.b16 %v2291
    %v4399 = vunpack.c.h.b16 %v2291
    %v4400 = vunpack.c.l.b16 %v2292
    %v4401 = vunpack.c.h.b16 %v2292
    %v4402 = vunpack.c.l.b16 %v2293
    %v4403 = vunpack.c.h.b16 %v2293
    %v4404 = vunpack.c.l.b16 %v2294
    %v4405 = vunpack.c.h.b16 %v2294
    %v4406 = vunpack.c.l.b16 %v2295
    %v4407 = vunpack.c.h.b16 %v2295
    %v4408 = vunpack.c.l.b16 %v2296
    %v4409 = vunpack.c.h.b16 %v2296
    %v4410 = vunpack.c.l.b16 %v2297
    %v4411 = vunpack.c.h.b16 %v2297
    %v4412 = vunpack.c.l.b16 %v2298
    %v4413 = vunpack.c.h.b16 %v2298
    %v4414 = vunpack.c.l.b16 %v2299
    %v4415 = vunpack.c.h.b16 %v2299
    %v4416 = vunpack.c.l.b16 %v2300
    %v4417 = vunpack.c.h.b16 %v2300
    %v4418 = vunpack.c.l.b16 %v2301
    %v4419 = vunpack.c.h.b16 %v2301
    %v4420 = vunpack.c.l.b16 %v2302
    %v4421 = vunpack.c.h.b16 %v2302
    %v4422 = vunpack.c.l.b16 %v2303
    %v4423 = vunpack.c.h.b16 %v2303
    %v4424 = vunpack.c.l.b16 %v2304
    %v4425 = vunpack.c.h.b16 %v2304
    %v4426 = vunpack.c.l.b16 %v2305
    %v4427 = vunpack.c.h.b16 %v2305
    %v4428 = vunpack.c.l.b16 %v2306
    %v4429 = vunpack.c.h.b16 %v2306
    %v4430 = vunpack.c.l.b16 %v2307
    %v4431 = vunpack.c.h.b16 %v2307
    %v4432 = vunpack.c.l.b16 %v2308
    %v4433 = vunpack.c.h.b16 %v2308
    %v4434 = vunpack.c.l.b16 %v2309
    %v4435 = vunpack.c.h.b16 %v2309
    %v4436 = vunpack.c.l.b16 %v2310
    %v4437 = vunpack.c.h.b16 %v2310
    %v4438 = vunpack.c.l.b16 %v2311
    %v4439 = vunpack.c.h.b16 %v2311
    %v4440 = vunpack.c.l.b16 %v2312
    %v4441 = vunpack.c.h.b16 %v2312
    %v4442 = vunpack.c.l.b16 %v2313
    %v4443 = vunpack.c.h.b16 %v2313
    %v4444 = vunpack.c.l.b16 %v2314
    %v4445 = vunpack.c.h.b16 %v2314
    %v4446 = vunpack.c.l.b16 %v2315
    %v4447 = vunpack.c.h.b16 %v2315
    %v4448 = vunpack.c.l.b16 %v2316
    %v4449 = vunpack.c.h.b16 %v2316
    %v4450 = vunpack.c.l.b16 %v2317
    %v4451 = vunpack.c.h.b16 %v2317
    %v4452 = vunpack.c.l.b16 %v2318
    %v4453 = vunpack.c.h.b16 %v2318
    %v4454 = vunpack.c.l.b16 %v2319
    %v4455 = vunpack.c.h.b16 %v2319
    %v4456 = vunpack.c.l.b16 %v2320
    %v4457 = vunpack.c.h.b16 %v2320
    %v4458 = vunpack.c.l.b16 %v2321
    %v4459 = vunpack.c.h.b16 %v2321
    %v4460 = vunpack.c.l.b16 %v2322
    %v4461 = vunpack.c.h.b16 %v2322
    %v4462 = vunpack.c.l.b16 %v2323
    %v4463 = vunpack.c.h.b16 %v2323
    %v4464 = vunpack.c.l.b16 %v2324
    %v4465 = vunpack.c.h.b16 %v2324
    %v4466 = vunpack.c.l.b16 %v2325
    %v4467 = vunpack.c.h.b16 %v2325
    %v4468 = vunpack.c.l.b16 %v2326
    %v4469 = vunpack.c.h.b16 %v2326
    %v4470 = vunpack.c.l.b16 %v2327
    %v4471 = vunpack.c.h.b16 %v2327
    %v4472 = vunpack.c.l.b16 %v2328
    %v4473 = vunpack.c.h.b16 %v2328
    %v4474 = vunpack.c.l.b16 %v2329
    %v4475 = vunpack.c.h.b16 %v2329
    %v4476 = vunpack.c.l.b16 %v2330
    %v4477 = vunpack.c.h.b16 %v2330
    %v4478 = vunpack.c.l.b16 %v2331
    %v4479 = vunpack.c.h.b16 %v2331
    %v4480 = vunpack.c.l.b16 %v2332
    %v4481 = vunpack.c.h.b16 %v2332
    %v4482 = vunpack.c.l.b16 %v2333
    %v4483 = vunpack.c.h.b16 %v2333
    %v4484 = vunpack.c.l.b16 %v2334
    %v4485 = vunpack.c.h.b16 %v2334
    %v4486 = vunpack.c.l.b16 %v2335
    %v4487 = vunpack.c.h.b16 %v2335
    %v4488 = vunpack.c.l.b16 %v2336
    %v4489 = vunpack.c.h.b16 %v2336
    %v4490 = vunpack.c.l.b16 %v2337
    %v4491 = vunpack.c.h.b16 %v2337
    %v4492 = vunpack.c.l.b16 %v2338
    %v4493 = vunpack.c.h.b16 %v2338
    %v4494 = vunpack.c.l.b16 %v2339
    %v4495 = vunpack.c.h.b16 %v2339
    %v4496 = vunpack.c.l.b16 %v2340
    %v4497 = vunpack.c.h.b16 %v2340
    %v4498 = vunpack.c.l.b16 %v2341
    %v4499 = vunpack.c.h.b16 %v2341
    %v4500 = vunpack.c.l.b16 %v2342
    %v4501 = vunpack.c.h.b16 %v2342
    %v4502 = vunpack.c.l.b16 %v2343
    %v4503 = vunpack.c.h.b16 %v2343
    %v4504 = vunpack.c.l.b16 %v2344
    %v4505 = vunpack.c.h.b16 %v2344
    %v4506 = vunpack.c.l.b16 %v2345
    %v4507 = vunpack.c.h.b16 %v2345
    %v4508 = vunpack.c.l.b16 %v2346
    %v4509 = vunpack.c.h.b16 %v2346
    %v4510 = vunpack.c.l.b16 %v2347
    %v4511 = vunpack.c.h.b16 %v2347
    %v4512 = vunpack.c.l.b16 %v2348
    %v4513 = vunpack.c.h.b16 %v2348
    %v4514 = vunpack.c.l.b16 %v2349
    %v4515 = vunpack.c.h.b16 %v2349
    %v4516 = vunpack.c.l.b16 %v2350
    %v4517 = vunpack.c.h.b16 %v2350
    %v4518 = vunpack.c.l.b16 %v2351
    %v4519 = vunpack.c.h.b16 %v2351
    %v4520 = vunpack.c.l.b16 %v2352
    %v4521 = vunpack.c.h.b16 %v2352
    %v4522 = vunpack.c.l.b16 %v2353
    %v4523 = vunpack.c.h.b16 %v2353
    %v4524 = vunpack.c.l.b16 %v2354
    %v4525 = vunpack.c.h.b16 %v2354
    %v4526 = vunpack.c.l.b16 %v2355
    %v4527 = vunpack.c.h.b16 %v2355
    %v4528 = vunpack.c.l.b16 %v2356
    %v4529 = vunpack.c.h.b16 %v2356
    %v4530 = vunpack.c.l.b16 %v2357
    %v4531 = vunpack.c.h.b16 %v2357
    %v4532 = vunpack.c.l.b16 %v2358
    %v4533 = vunpack.c.h.b16 %v2358
    %v4534 = vunpack.c.l.b16 %v2359
    %v4535 = vunpack.c.h.b16 %v2359
    %v4536 = vunpack.c.l.b16 %v2360
    %v4537 = vunpack.c.h.b16 %v2360
    %v4538 = vunpack.c.l.b16 %v2361
    %v4539 = vunpack.c.h.b16 %v2361
    %v4540 = vunpack.c.l.b16 %v2362
    %v4541 = vunpack.c.h.b16 %v2362
    %v4542 = vunpack.c.l.b16 %v2363
    %v4543 = vunpack.c.h.b16 %v2363
    %v4544 = vunpack.c.l.b16 %v2364
    %v4545 = vunpack.c.h.b16 %v2364
    %v4546 = vunpack.c.l.b16 %v2365
    %v4547 = vunpack.c.h.b16 %v2365
    %v4548 = vunpack.c.l.b16 %v2366
    %v4549 = vunpack.c.h.b16 %v2366
    %v4550 = vunpack.c.l.b16 %v2367
    %v4551 = vunpack.c.h.b16 %v2367
    %v4552 = vunpack.c.l.b16 %v2368
    %v4553 = vunpack.c.h.b16 %v2368
    %v4554 = vunpack.c.l.b16 %v2369
    %v4555 = vunpack.c.h.b16 %v2369
    %v4556 = vunpack.c.l.b16 %v2370
    %v4557 = vunpack.c.h.b16 %v2370
    %v4558 = vunpack.c.l.b16 %v2371
    %v4559 = vunpack.c.h.b16 %v2371
    %v4560 = vunpack.c.l.b16 %v2372
    %v4561 = vunpack.c.h.b16 %v2372
    %v4562 = vunpack.c.l.b16 %v2373
    %v4563 = vunpack.c.h.b16 %v2373
    %v4564 = vunpack.c.l.b16 %v2374
    %v4565 = vunpack.c.h.b16 %v2374
    %v4566 = vunpack.c.l.b16 %v2375
    %v4567 = vunpack.c.h.b16 %v2375
    %v4568 = vunpack.c.l.b16 %v2376
    %v4569 = vunpack.c.h.b16 %v2376
    %v4570 = vunpack.c.l.b16 %v2377
    %v4571 = vunpack.c.h.b16 %v2377
    %v4572 = vunpack.c.l.b16 %v2378
    %v4573 = vunpack.c.h.b16 %v2378
    %v4574 = vunpack.c.l.b16 %v2379
    %v4575 = vunpack.c.h.b16 %v2379
    %v4576 = vunpack.c.l.b16 %v2380
    %v4577 = vunpack.c.h.b16 %v2380
    %v4578 = vunpack.c.l.b16 %v2381
    %v4579 = vunpack.c.h.b16 %v2381
    %v4580 = vunpack.c.l.b16 %v2382
    %v4581 = vunpack.c.h.b16 %v2382
    %v4582 = vunpack.c.l.b16 %v2383
    %v4583 = vunpack.c.h.b16 %v2383
    %v4584 = vunpack.c.l.b16 %v2384
    %v4585 = vunpack.c.h.b16 %v2384
    %v4586 = vunpack.c.l.b16 %v2385
    %v4587 = vunpack.c.h.b16 %v2385
    %v4588 = vunpack.c.l.b16 %v2386
    %v4589 = vunpack.c.h.b16 %v2386
    %v4590 = vunpack.c.l.b16 %v2387
    %v4591 = vunpack.c.h.b16 %v2387
    %v4592 = vunpack.c.l.b16 %v2388
    %v4593 = vunpack.c.h.b16 %v2388
    %v4594 = vunpack.c.l.b16 %v2389
    %v4595 = vunpack.c.h.b16 %v2389
    %v4596 = vunpack.c.l.b16 %v2390
    %v4597 = vunpack.c.h.b16 %v2390
    %v4598 = vunpack.c.l.b16 %v2391
    %v4599 = vunpack.c.h.b16 %v2391
    %v4600 = vunpack.c.l.b16 %v2392
    %v4601 = vunpack.c.h.b16 %v2392
    %v4602 = vunpack.c.l.b16 %v2393
    %v4603 = vunpack.c.h.b16 %v2393
    %v4604 = vunpack.c.l.b16 %v2394
    %v4605 = vunpack.c.h.b16 %v2394
    %v4606 = vunpack.c.l.b16 %v2395
    %v4607 = vunpack.c.h.b16 %v2395
    %v4608 = vunpack.c.l.b16 %v2396
    %v4609 = vunpack.c.h.b16 %v2396
    %v4610 = vunpack.c.l.b16 %v2397
    %v4611 = vunpack.c.h.b16 %v2397
    %v4612 = vunpack.c.l.b16 %v2398
    %v4613 = vunpack.c.h.b16 %v2398
    %v4614 = vunpack.c.l.b16 %v2399
    %v4615 = vunpack.c.h.b16 %v2399
    %v4616 = vunpack.c.l.b16 %v2400
    %v4617 = vunpack.c.h.b16 %v2400
    %v4618 = vunpack.c.l.b16 %v2401
    %v4619 = vunpack.c.h.b16 %v2401
    %v4620 = vunpack.c.l.b16 %v2402
    %v4621 = vunpack.c.h.b16 %v2402
    %v4622 = vunpack.c.l.b16 %v2403
    %v4623 = vunpack.c.h.b16 %v2403
    %v4624 = vunpack.c.l.b16 %v2404
    %v4625 = vunpack.c.h.b16 %v2404
    %v4626 = vunpack.c.l.b16 %v2405
    %v4627 = vunpack.c.h.b16 %v2405
    %v4628 = vunpack.c.l.b16 %v2406
    %v4629 = vunpack.c.h.b16 %v2406
    %v4630 = vunpack.c.l.b16 %v2407
    %v4631 = vunpack.c.h.b16 %v2407
    %v4632 = vunpack.c.l.b16 %v2408
    %v4633 = vunpack.c.h.b16 %v2408
    %v4634 = vunpack.c.l.b16 %v2409
    %v4635 = vunpack.c.h.b16 %v2409
    %v4636 = vunpack.c.l.b16 %v2410
    %v4637 = vunpack.c.h.b16 %v2410
    %v4638 = vunpack.c.l.b16 %v2411
    %v4639 = vunpack.c.h.b16 %v2411
    %v4640 = vunpack.c.l.b16 %v2412
    %v4641 = vunpack.c.h.b16 %v2412
    %v4642 = vunpack.c.l.b16 %v2413
    %v4643 = vunpack.c.h.b16 %v2413
    %v4644 = vunpack.c.l.b16 %v2414
    %v4645 = vunpack.c.h.b16 %v2414
    %v4646 = vunpack.c.l.b16 %v2415
    %v4647 = vunpack.c.h.b16 %v2415
    %v4648 = vunpack.c.l.b16 %v2416
    %v4649 = vunpack.c.h.b16 %v2416
    %v4650 = vunpack.c.l.b16 %v2417
    %v4651 = vunpack.c.h.b16 %v2417
    %v4652 = vunpack.c.l.b16 %v2418
    %v4653 = vunpack.c.h.b16 %v2418
    %v4654 = vunpack.c.l.b16 %v2419
    %v4655 = vunpack.c.h.b16 %v2419
    %v4656 = vunpack.c.l.b16 %v2420
    %v4657 = vunpack.c.h.b16 %v2420
    %v4658 = vunpack.c.l.b16 %v2421
    %v4659 = vunpack.c.h.b16 %v2421
    %v4660 = vunpack.c.l.b16 %v2422
    %v4661 = vunpack.c.h.b16 %v2422
    %v4662 = vunpack.c.l.b16 %v2423
    %v4663 = vunpack.c.h.b16 %v2423
    %v4664 = vunpack.c.l.b16 %v2424
    %v4665 = vunpack.c.h.b16 %v2424
    %v4666 = vunpack.c.l.b16 %v2425
    %v4667 = vunpack.c.h.b16 %v2425
    %v4668 = vunpack.c.l.b16 %v2426
    %v4669 = vunpack.c.h.b16 %v2426
    %v4670 = vunpack.c.l.b16 %v2427
    %v4671 = vunpack.c.h.b16 %v2427
    %v4672 = vunpack.c.l.b16 %v2428
    %v4673 = vunpack.c.h.b16 %v2428
    %v4674 = vunpack.c.l.b16 %v2429
    %v4675 = vunpack.c.h.b16 %v2429
    %v4676 = vunpack.c.l.b16 %v2430
    %v4677 = vunpack.c.h.b16 %v2430
    %v4678 = vunpack.c.l.b16 %v2431
    %v4679 = vunpack.c.h.b16 %v2431
    %v4680 = vunpack.c.l.b16 %v2432
    %v4681 = vunpack.c.h.b16 %v2432
    %v4682 = vunpack.c.l.b16 %v2433
    %v4683 = vunpack.c.h.b16 %v2433
    %v4684 = vunpack.c.l.b16 %v2434
    %v4685 = vunpack.c.h.b16 %v2434
    %v4686 = vunpack.c.l.b16 %v2435
    %v4687 = vunpack.c.h.b16 %v2435
    %v4688 = vunpack.c.l.b16 %v2436
    %v4689 = vunpack.c.h.b16 %v2436
    %v4690 = vunpack.c.l.b16 %v2437
    %v4691 = vunpack.c.h.b16 %v2437
    %v4692 = vunpack.c.l.b16 %v2438
    %v4693 = vunpack.c.h.b16 %v2438
    %v4694 = vunpack.c.l.b16 %v2439
    %v4695 = vunpack.c.h.b16 %v2439
    %v4696 = vunpack.c.l.b16 %v2440
    %v4697 = vunpack.c.h.b16 %v2440
    %v4698 = vunpack.c.l.b16 %v2441
    %v4699 = vunpack.c.h.b16 %v2441
    %v4700 = vunpack.c.l.b16 %v2442
    %v4701 = vunpack.c.h.b16 %v2442
    %v4702 = vunpack.c.l.b16 %v2443
    %v4703 = vunpack.c.h.b16 %v2443
    %v4704 = vunpack.c.l.b16 %v2444
    %v4705 = vunpack.c.h.b16 %v2444
    %v4706 = vunpack.c.l.b16 %v2445
    %v4707 = vunpack.c.h.b16 %v2445
    %v4708 = vunpack.c.l.b16 %v2446
    %v4709 = vunpack.c.h.b16 %v2446
    %v4710 = vunpack.c.l.b16 %v2447
    %v4711 = vunpack.c.h.b16 %v2447
    %v4712 = vunpack.c.l.b16 %v2448
    %v4713 = vunpack.c.h.b16 %v2448
    %v4714 = vunpack.c.l.b16 %v2449
    %v4715 = vunpack.c.h.b16 %v2449
    %v4716 = vunpack.c.l.b16 %v2450
    %v4717 = vunpack.c.h.b16 %v2450
    %v4718 = vunpack.c.l.b16 %v2451
    %v4719 = vunpack.c.h.b16 %v2451
    %v4720 = vunpack.c.l.b16 %v2452
    %v4721 = vunpack.c.h.b16 %v2452
    %v4722 = vunpack.c.l.b16 %v2453
    %v4723 = vunpack.c.h.b16 %v2453
    %v4724 = vunpack.c.l.b16 %v2454
    %v4725 = vunpack.c.h.b16 %v2454
    %v4726 = vunpack.c.l.b16 %v2455
    %v4727 = vunpack.c.h.b16 %v2455
    %v4728 = vunpack.c.l.b16 %v2456
    %v4729 = vunpack.c.h.b16 %v2456
    %v4730 = vunpack.c.l.b16 %v2457
    %v4731 = vunpack.c.h.b16 %v2457
    %v4732 = vunpack.c.l.b16 %v2458
    %v4733 = vunpack.c.h.b16 %v2458
    %v4734 = vunpack.c.l.b16 %v2459
    %v4735 = vunpack.c.h.b16 %v2459
    %v4736 = vunpack.c.l.b16 %v2460
    %v4737 = vunpack.c.h.b16 %v2460
    %v4738 = vunpack.c.l.b16 %v2461
    %v4739 = vunpack.c.h.b16 %v2461
    %v4740 = vunpack.c.l.b16 %v2462
    %v4741 = vunpack.c.h.b16 %v2462
    %v4742 = vunpack.c.l.b16 %v2463
    %v4743 = vunpack.c.h.b16 %v2463
    %v4744 = vunpack.c.l.b16 %v2464
    %v4745 = vunpack.c.h.b16 %v2464
    %v4746 = vunpack.c.l.b16 %v2465
    %v4747 = vunpack.c.h.b16 %v2465
    %v4748 = vunpack.c.l.b16 %v2466
    %v4749 = vunpack.c.h.b16 %v2466
    %v4750 = vunpack.c.l.b16 %v2467
    %v4751 = vunpack.c.h.b16 %v2467
    %v4752 = vunpack.c.l.b16 %v2468
    %v4753 = vunpack.c.h.b16 %v2468
    %v4754 = vunpack.c.l.b16 %v2469
    %v4755 = vunpack.c.h.b16 %v2469
    %v4756 = vunpack.c.l.b16 %v2470
    %v4757 = vunpack.c.h.b16 %v2470
    %v4758 = vunpack.c.l.b16 %v2471
    %v4759 = vunpack.c.h.b16 %v2471
    %v4760 = vunpack.c.l.b16 %v2472
    %v4761 = vunpack.c.h.b16 %v2472
    %v4762 = vunpack.c.l.b16 %v2473
    %v4763 = vunpack.c.h.b16 %v2473
    %v4764 = vunpack.c.l.b16 %v2474
    %v4765 = vunpack.c.h.b16 %v2474
    %v4766 = vunpack.c.l.b16 %v2475
    %v4767 = vunpack.c.h.b16 %v2475
    %v4768 = vunpack.c.l.b16 %v2476
    %v4769 = vunpack.c.h.b16 %v2476
    %v4770 = vunpack.c.l.b16 %v2477
    %v4771 = vunpack.c.h.b16 %v2477
    %v4772 = vunpack.c.l.b16 %v2478
    %v4773 = vunpack.c.h.b16 %v2478
    %v4774 = vunpack.c.l.b16 %v2479
    %v4775 = vunpack.c.h.b16 %v2479
    %v4776 = vunpack.c.l.b16 %v2480
    %v4777 = vunpack.c.h.b16 %v2480
    %v4778 = vunpack.c.l.b16 %v2481
    %v4779 = vunpack.c.h.b16 %v2481
    %v4780 = vunpack.c.l.b16 %v2482
    %v4781 = vunpack.c.h.b16 %v2482
    %v4782 = vunpack.c.l.b16 %v2483
    %v4783 = vunpack.c.h.b16 %v2483
    %v4784 = vunpack.c.l.b16 %v2484
    %v4785 = vunpack.c.h.b16 %v2484
    %v4786 = vunpack.c.l.b16 %v2485
    %v4787 = vunpack.c.h.b16 %v2485
    %v4788 = vunpack.c.l.b16 %v2486
    %v4789 = vunpack.c.h.b16 %v2486
    %v4790 = vunpack.c.l.b16 %v2487
    %v4791 = vunpack.c.h.b16 %v2487
    %v4792 = vunpack.c.l.b16 %v2488
    %v4793 = vunpack.c.h.b16 %v2488
    %v4794 = vunpack.c.l.b16 %v2489
    %v4795 = vunpack.c.h.b16 %v2489
    %v4796 = vunpack.c.l.b16 %v2490
    %v4797 = vunpack.c.h.b16 %v2490
    %v4798 = vunpack.c.l.b16 %v2491
    %v4799 = vunpack.c.h.b16 %v2491
    %v4800 = vunpack.c.l.b16 %v2492
    %v4801 = vunpack.c.h.b16 %v2492
    %v4802 = vunpack.c.l.b16 %v2493
    %v4803 = vunpack.c.h.b16 %v2493
    %v4804 = vunpack.c.l.b16 %v2494
    %v4805 = vunpack.c.h.b16 %v2494
    %v4806 = vunpack.c.l.b16 %v2495
    %v4807 = vunpack.c.h.b16 %v2495
    %v4808 = vunpack.c.l.b16 %v2496
    %v4809 = vunpack.c.h.b16 %v2496
    %v4810 = vunpack.c.l.b16 %v2497
    %v4811 = vunpack.c.h.b16 %v2497
    %v4812 = vunpack.c.l.b16 %v2498
    %v4813 = vunpack.c.h.b16 %v2498
    %v4814 = vunpack.c.l.b16 %v2499
    %v4815 = vunpack.c.h.b16 %v2499
    %v4816 = vunpack.c.l.b16 %v2500
    %v4817 = vunpack.c.h.b16 %v2500
    %v4818 = vunpack.c.l.b16 %v2501
    %v4819 = vunpack.c.h.b16 %v2501
    %v4820 = vunpack.c.l.b16 %v2502
    %v4821 = vunpack.c.h.b16 %v2502
    %v4822 = vunpack.c.l.b16 %v2503
    %v4823 = vunpack.c.h.b16 %v2503
    %v4824 = vunpack.c.l.b16 %v2504
    %v4825 = vunpack.c.h.b16 %v2504
    %v4826 = vunpack.c.l.b16 %v2505
    %v4827 = vunpack.c.h.b16 %v2505
    %v4828 = vunpack.c.l.b16 %v2506
    %v4829 = vunpack.c.h.b16 %v2506
    %v4830 = vunpack.c.l.b16 %v2507
    %v4831 = vunpack.c.h.b16 %v2507
    %v4832 = vunpack.c.l.b16 %v2508
    %v4833 = vunpack.c.h.b16 %v2508
    %v4834 = vunpack.c.l.b16 %v2509
    %v4835 = vunpack.c.h.b16 %v2509
    %v4836 = vunpack.c.l.b16 %v2510
    %v4837 = vunpack.c.h.b16 %v2510
    %v4838 = vunpack.c.l.b16 %v2511
    %v4839 = vunpack.c.h.b16 %v2511
    %v4840 = vunpack.c.l.b16 %v2512
    %v4841 = vunpack.c.h.b16 %v2512
    %v4842 = vunpack.c.l.b16 %v2513
    %v4843 = vunpack.c.h.b16 %v2513
    %v4844 = vunpack.c.l.b16 %v2514
    %v4845 = vunpack.c.h.b16 %v2514
    %v4846 = vunpack.c.l.b16 %v2515
    %v4847 = vunpack.c.h.b16 %v2515
    %v4848 = vunpack.c.l.b16 %v2516
    %v4849 = vunpack.c.h.b16 %v2516
    %v4850 = vunpack.c.l.b16 %v2517
    %v4851 = vunpack.c.h.b16 %v2517
    %v4852 = vunpack.c.l.b16 %v2518
    %v4853 = vunpack.c.h.b16 %v2518
    %v4854 = vunpack.c.l.b16 %v2519
    %v4855 = vunpack.c.h.b16 %v2519
    %v4856 = vunpack.c.l.b16 %v2520
    %v4857 = vunpack.c.h.b16 %v2520
    %v4858 = vunpack.c.l.b16 %v2521
    %v4859 = vunpack.c.h.b16 %v2521
    %v4860 = vunpack.c.l.b16 %v2522
    %v4861 = vunpack.c.h.b16 %v2522
    %v4862 = vunpack.c.l.b16 %v2523
    %v4863 = vunpack.c.h.b16 %v2523
    %v4864 = vunpack.c.l.b16 %v2524
    %v4865 = vunpack.c.h.b16 %v2524
    %v4866 = vunpack.c.l.b16 %v2525
    %v4867 = vunpack.c.h.b16 %v2525
    %v4868 = vunpack.c.l.b16 %v2526
    %v4869 = vunpack.c.h.b16 %v2526
    %v4870 = vunpack.c.l.b16 %v2527
    %v4871 = vunpack.c.h.b16 %v2527
    %v4872 = vunpack.c.l.b16 %v2528
    %v4873 = vunpack.c.h.b16 %v2528
    %v4874 = vunpack.c.l.b16 %v2529
    %v4875 = vunpack.c.h.b16 %v2529
    %v4876 = vunpack.c.l.b16 %v2530
    %v4877 = vunpack.c.h.b16 %v2530
    %v4878 = vunpack.c.l.b16 %v2531
    %v4879 = vunpack.c.h.b16 %v2531
    %v4880 = vunpack.c.l.b16 %v2532
    %v4881 = vunpack.c.h.b16 %v2532
    %v4882 = vunpack.c.l.b16 %v2533
    %v4883 = vunpack.c.h.b16 %v2533
    %v4884 = vunpack.c.l.b16 %v2534
    %v4885 = vunpack.c.h.b16 %v2534
    %v4886 = vunpack.c.l.b16 %v2535
    %v4887 = vunpack.c.h.b16 %v2535
    %v4888 = vunpack.c.l.b16 %v2536
    %v4889 = vunpack.c.h.b16 %v2536
    %v4890 = vunpack.c.l.b16 %v2537
    %v4891 = vunpack.c.h.b16 %v2537
    %v4892 = vunpack.c.l.b16 %v2538
    %v4893 = vunpack.c.h.b16 %v2538
    %v4894 = vunpack.c.l.b16 %v2539
    %v4895 = vunpack.c.h.b16 %v2539
    %v4896 = vunpack.c.l.b16 %v2540
    %v4897 = vunpack.c.h.b16 %v2540
    %v4898 = vunpack.c.l.b16 %v2541
    %v4899 = vunpack.c.h.b16 %v2541
    %v4900 = vunpack.c.l.b16 %v2542
    %v4901 = vunpack.c.h.b16 %v2542
    %v4902 = vunpack.c.l.b16 %v2543
    %v4903 = vunpack.c.h.b16 %v2543
    %v4904 = vunpack.c.l.b16 %v2544
    %v4905 = vunpack.c.h.b16 %v2544
    %v4906 = vunpack.c.l.b16 %v2545
    %v4907 = vunpack.c.h.b16 %v2545
    %v4908 = vunpack.c.l.b16 %v2546
    %v4909 = vunpack.c.h.b16 %v2546
    %v4910 = vunpack.c.l.b16 %v2547
    %v4911 = vunpack.c.h.b16 %v2547
    %v4912 = vunpack.c.l.b16 %v2548
    %v4913 = vunpack.c.h.b16 %v2548
    %v4914 = vunpack.c.l.b16 %v2549
    %v4915 = vunpack.c.h.b16 %v2549
    %v4916 = vunpack.c.l.b16 %v2550
    %v4917 = vunpack.c.h.b16 %v2550
    %v4918 = vunpack.c.l.b16 %v2551
    %v4919 = vunpack.c.h.b16 %v2551
    %v4920 = vunpack.c.l.b16 %v2552
    %v4921 = vunpack.c.h.b16 %v2552
    %v4922 = vunpack.c.l.b16 %v2553
    %v4923 = vunpack.c.h.b16 %v2553
    %v4924 = vunpack.c.l.b16 %v2554
    %v4925 = vunpack.c.h.b16 %v2554
    %v4926 = vunpack.c.l.b16 %v2555
    %v4927 = vunpack.c.h.b16 %v2555
    %v4928 = vunpack.c.l.b16 %v2556
    %v4929 = vunpack.c.h.b16 %v2556
    %v4930 = vunpack.c.l.b16 %v2557
    %v4931 = vunpack.c.h.b16 %v2557
    %v4932 = vunpack.c.l.b16 %v2558
    %v4933 = vunpack.c.h.b16 %v2558
    %v4934 = vunpack.c.l.b16 %v2559
    %v4935 = vunpack.c.h.b16 %v2559
    %v4936 = vunpack.c.l.b16 %v2560
    %v4937 = vunpack.c.h.b16 %v2560
    %v4938 = vunpack.c.l.b16 %v2561
    %v4939 = vunpack.c.h.b16 %v2561
    %v4940 = vunpack.c.l.b16 %v2562
    %v4941 = vunpack.c.h.b16 %v2562
    %v4942 = vunpack.c.l.b16 %v2563
    %v4943 = vunpack.c.h.b16 %v2563
    %v4944 = vunpack.c.l.b16 %v2564
    %v4945 = vunpack.c.h.b16 %v2564
    %v4946 = vunpack.c.l.b16 %v2565
    %v4947 = vunpack.c.h.b16 %v2565
    %v4948 = vunpack.c.l.b16 %v2566
    %v4949 = vunpack.c.h.b16 %v2566
    %v4950 = vunpack.c.l.b16 %v2567
    %v4951 = vunpack.c.h.b16 %v2567
    %v4952 = vunpack.c.l.b16 %v2568
    %v4953 = vunpack.c.h.b16 %v2568
    %v4954 = vunpack.c.l.b16 %v2569
    %v4955 = vunpack.c.h.b16 %v2569
    %v4956 = vunpack.c.l.b16 %v2570
    %v4957 = vunpack.c.h.b16 %v2570
    %v4958 = vunpack.c.l.b16 %v2571
    %v4959 = vunpack.c.h.b16 %v2571
    %v4960 = vunpack.c.l.b16 %v2572
    %v4961 = vunpack.c.h.b16 %v2572
    %v4962 = vunpack.c.l.b16 %v2573
    %v4963 = vunpack.c.h.b16 %v2573
    %v4964 = vunpack.c.l.b16 %v2574
    %v4965 = vunpack.c.h.b16 %v2574
    %v4966 = vunpack.c.l.b16 %v2575
    %v4967 = vunpack.c.h.b16 %v2575
    %v4968 = vunpack.c.l.b16 %v2576
    %v4969 = vunpack.c.h.b16 %v2576
    %v4970 = vunpack.c.l.b16 %v2577
    %v4971 = vunpack.c.h.b16 %v2577
    %v4972 = vunpack.c.l.b16 %v2578
    %v4973 = vunpack.c.h.b16 %v2578
    %v4974 = vunpack.c.l.b16 %v2579
    %v4975 = vunpack.c.h.b16 %v2579
    %v4976 = vunpack.c.l.b16 %v2580
    %v4977 = vunpack.c.h.b16 %v2580
    %v4978 = vunpack.c.l.b16 %v2581
    %v4979 = vunpack.c.h.b16 %v2581
    %v4980 = vunpack.c.l.b16 %v2582
    %v4981 = vunpack.c.h.b16 %v2582
    %v4982 = vunpack.c.l.b16 %v2583
    %v4983 = vunpack.c.h.b16 %v2583
    %v4984 = vunpack.c.l.b16 %v2584
    %v4985 = vunpack.c.h.b16 %v2584
    %v4986 = vunpack.c.l.b16 %v2585
    %v4987 = vunpack.c.h.b16 %v2585
    %v4988 = vunpack.c.l.b16 %v2586
    %v4989 = vunpack.c.h.b16 %v2586
    %v4990 = vunpack.c.l.b16 %v2587
    %v4991 = vunpack.c.h.b16 %v2587
    %v4992 = vunpack.c.l.b16 %v2588
    %v4993 = vunpack.c.h.b16 %v2588
    %v4994 = vunpack.c.l.b16 %v2589
    %v4995 = vunpack.c.h.b16 %v2589
    %v4996 = vunpack.c.l.b16 %v2590
    %v4997 = vunpack.c.h.b16 %v2590
    %v4998 = vunpack.c.l.b16 %v2591
    %v4999 = vunpack.c.h.b16 %v2591
    %v5000 = vunpack.c.l.b16 %v2592
    %v5001 = vunpack.c.h.b16 %v2592
    %v5002 = vunpack.c.l.b16 %v2593
    %v5003 = vunpack.c.h.b16 %v2593
    %v5004 = vunpack.c.l.b16 %v2594
    %v5005 = vunpack.c.h.b16 %v2594
    %v5006 = vunpack.c.l.b16 %v2595
    %v5007 = vunpack.c.h.b16 %v2595
    %v5008 = vunpack.c.l.b16 %v2596
    %v5009 = vunpack.c.h.b16 %v2596
    %v5010 = vunpack.c.l.b16 %v2597
    %v5011 = vunpack.c.h.b16 %v2597
    %v5012 = vunpack.c.l.b16 %v2598
    %v5013 = vunpack.c.h.b16 %v2598
    %v5014 = vunpack.c.l.b16 %v2599
    %v5015 = vunpack.c.h.b16 %v2599
    %v5016 = vunpack.c.l.b16 %v2600
    %v5017 = vunpack.c.h.b16 %v2600
    %v5018 = vunpack.c.l.b16 %v2601
    %v5019 = vunpack.c.h.b16 %v2601
    %v5020 = vunpack.c.l.b16 %v2602
    %v5021 = vunpack.c.h.b16 %v2602
    %v5022 = vunpack.c.l.b16 %v2603
    %v5023 = vunpack.c.h.b16 %v2603
    %v5024 = vunpack.c.l.b16 %v2604
    %v5025 = vunpack.c.h.b16 %v2604
    %v5026 = vunpack.c.l.b16 %v2605
    %v5027 = vunpack.c.h.b16 %v2605
    %v5028 = vunpack.c.l.b16 %v2606
    %v5029 = vunpack.c.h.b16 %v2606
    %v5030 = vunpack.c.l.b16 %v2607
    %v5031 = vunpack.c.h.b16 %v2607
    %v5032 = vunpack.c.l.b16 %v2608
    %v5033 = vunpack.c.h.b16 %v2608
    %v5034 = vunpack.c.l.b16 %v2609
    %v5035 = vunpack.c.h.b16 %v2609
    %v5036 = vunpack.c.l.b16 %v2610
    %v5037 = vunpack.c.h.b16 %v2610
    %v5038 = vunpack.c.l.b16 %v2611
    %v5039 = vunpack.c.h.b16 %v2611
    %v5040 = vunpack.c.l.b16 %v2612
    %v5041 = vunpack.c.h.b16 %v2612
    %v5042 = vunpack.c.l.b16 %v2613
    %v5043 = vunpack.c.h.b16 %v2613
    %v5044 = vunpack.c.l.b16 %v2614
    %v5045 = vunpack.c.h.b16 %v2614
    %v5046 = vunpack.c.l.b16 %v2615
    %v5047 = vunpack.c.h.b16 %v2615
    %v5048 = vunpack.c.l.b16 %v2616
    %v5049 = vunpack.c.h.b16 %v2616
    %v5050 = vunpack.c.l.b16 %v2617
    %v5051 = vunpack.c.h.b16 %v2617
    %v5052 = vunpack.c.l.b16 %v2618
    %v5053 = vunpack.c.h.b16 %v2618
    %v5054 = vunpack.c.l.b16 %v2619
    %v5055 = vunpack.c.h.b16 %v2619
    %v5056 = vunpack.c.l.b16 %v2620
    %v5057 = vunpack.c.h.b16 %v2620
    %v5058 = vunpack.c.l.b16 %v2621
    %v5059 = vunpack.c.h.b16 %v2621
    %v5060 = vunpack.c.l.b16 %v2622
    %v5061 = vunpack.c.h.b16 %v2622
    %v5062 = vunpack.c.l.b16 %v2623
    %v5063 = vunpack.c.h.b16 %v2623
    %v5064 = vunpack.c.l.b16 %v2624
    %v5065 = vunpack.c.h.b16 %v2624
    %v5066 = vunpack.c.l.b16 %v2625
    %v5067 = vunpack.c.h.b16 %v2625
    %v5068 = vunpack.c.l.b16 %v2626
    %v5069 = vunpack.c.h.b16 %v2626
    %v5070 = vunpack.c.l.b16 %v2627
    %v5071 = vunpack.c.h.b16 %v2627
    %v5072 = vunpack.c.l.b16 %v2628
    %v5073 = vunpack.c.h.b16 %v2628
    %v5074 = vunpack.c.l.b16 %v2629
    %v5075 = vunpack.c.h.b16 %v2629
    %v5076 = vunpack.c.l.b16 %v2630
    %v5077 = vunpack.c.h.b16 %v2630
    %v5078 = vunpack.c.l.b16 %v2631
    %v5079 = vunpack.c.h.b16 %v2631
    %v5080 = vunpack.c.l.b16 %v2632
    %v5081 = vunpack.c.h.b16 %v2632
    %v5082 = vunpack.c.l.b16 %v2633
    %v5083 = vunpack.c.h.b16 %v2633
    %v5084 = vunpack.c.l.b16 %v2634
    %v5085 = vunpack.c.h.b16 %v2634
    %v5086 = vunpack.c.l.b16 %v2635
    %v5087 = vunpack.c.h.b16 %v2635
    %v5088 = vunpack.c.l.b16 %v2636
    %v5089 = vunpack.c.h.b16 %v2636
    %v5090 = vunpack.c.l.b16 %v2637
    %v5091 = vunpack.c.h.b16 %v2637
    %v5092 = vpack.c.b16 %v3502, %v3492
    %v5093 = vpack.c.b16 %v3503, %v3493
    %v5094 = vpack.c.b16 %v3504, %v3494
    %v5095 = vpack.c.b16 %v3505, %v3495
    %v5096 = vpack.c.b16 %v3506, %v3496
    %v5097 = vpack.c.b16 %v3507, %v3497
    %v5098 = vpack.c.b16 %v3508, %v3498
    %v5099 = vpack.c.b16 %v3509, %v3499
    %v5100 = vpack.c.b16 %v3510, %v3500
    %v5101 = vpack.c.b16 %v3511, %v3501
    %v5102 = vpack.c.b16 %v3522, %v3512
    %v5103 = vpack.c.b16 %v3523, %v3513
    %v5104 = vpack.c.b16 %v3524, %v3514
    %v5105 = vpack.c.b16 %v3525, %v3515
    %v5106 = vpack.c.b16 %v3526, %v3516
    %v5107 = vpack.c.b16 %v3527, %v3517
    %v5108 = vpack.c.b16 %v3528, %v3518
    %v5109 = vpack.c.b16 %v3529, %v3519
    %v5110 = vpack.c.b16 %v3530, %v3520
    %v5111 = vpack.c.b16 %v3531, %v3521
    %v5112 = vpack.c.b16 %v3542, %v3532
    %v5113 = vpack.c.b16 %v3543, %v3533
    %v5114 = vpack.c.b16 %v3544, %v3534
    %v5115 = vpack.c.b16 %v3545, %v3535
    %v5116 = vpack.c.b16 %v3546, %v3536
    %v5117 = vpack.c.b16 %v3547, %v3537
    %v5118 = vpack.c.b16 %v3548, %v3538
    %v5119 = vpack.c.b16 %v3549, %v3539
    %v5120 = vpack.c.b16 %v3550, %v3540
    %v5121 = vpack.c.b16 %v3551, %v3541
    %v5122 = vpack.c.b16 %v3562, %v3552
    %v5123 = vpack.c.b16 %v3563, %v3553
    %v5124 = vpack.c.b16 %v3564, %v3554
    %v5125 = vpack.c.b16 %v3565, %v3555
    %v5126 = vpack.c.b16 %v3566, %v3556
    %v5127 = vpack.c.b16 %v3567, %v3557
    %v5128 = vpack.c.b16 %v3568, %v3558
    %v5129 = vpack.c.b16 %v3569, %v3559
    %v5130 = vpack.c.b16 %v3570, %v3560
    %v5131 = vpack.c.b16 %v3571, %v3561
    %v5132 = vpack.c.b16 %v3582, %v3572
    %v5133 = vpack.c.b16 %v3583, %v3573
    %v5134 = vpack.c.b16 %v3584, %v3574
    %v5135 = vpack.c.b16 %v3585, %v3575
    %v5136 = vpack.c.b16 %v3586, %v3576
    %v5137 = vpack.c.b16 %v3587, %v3577
    %v5138 = vpack.c.b16 %v3588, %v3578
    %v5139 = vpack.c.b16 %v3589, %v3579
    %v5140 = vpack.c.b16 %v3590, %v3580
    %v5141 = vpack.c.b16 %v3591, %v3581
    %v5142 = vpack.c.b16 %v3602, %v3592
    %v5143 = vpack.c.b16 %v3603, %v3593
    %v5144 = vpack.c.b16 %v3604, %v3594
    %v5145 = vpack.c.b16 %v3605, %v3595
    %v5146 = vpack.c.b16 %v3606, %v3596
    %v5147 = vpack.c.b16 %v3607, %v3597
    %v5148 = vpack.c.b16 %v3608, %v3598
    %v5149 = vpack.c.b16 %v3609, %v3599
    %v5150 = vpack.c.b16 %v3610, %v3600
    %v5151 = vpack.c.b16 %v3611, %v3601
    %v5152 = vpack.c.b16 %v3622, %v3612
    %v5153 = vpack.c.b16 %v3623, %v3613
    %v5154 = vpack.c.b16 %v3624, %v3614
    %v5155 = vpack.c.b16 %v3625, %v3615
    %v5156 = vpack.c.b16 %v3626, %v3616
    %v5157 = vpack.c.b16 %v3627, %v3617
    %v5158 = vpack.c.b16 %v3628, %v3618
    %v5159 = vpack.c.b16 %v3629, %v3619
    %v5160 = vpack.c.b16 %v3630, %v3620
    %v5161 = vpack.c.b16 %v3631, %v3621
    %v5162 = vpack.c.b16 %v3642, %v3632
    %v5163 = vpack.c.b16 %v3643, %v3633
    %v5164 = vpack.c.b16 %v3644, %v3634
    %v5165 = vpack.c.b16 %v3645, %v3635
    %v5166 = vpack.c.b16 %v3646, %v3636
    %v5167 = vpack.c.b16 %v3647, %v3637
    %v5168 = vpack.c.b16 %v3648, %v3638
    %v5169 = vpack.c.b16 %v3649, %v3639
    %v5170 = vpack.c.b16 %v3650, %v3640
    %v5171 = vpack.c.b16 %v3651, %v3641
    %v5172 = vpack.c.b16 %v3662, %v3652
    %v5173 = vpack.c.b16 %v3663, %v3653
    %v5174 = vpack.c.b16 %v3664, %v3654
    %v5175 = vpack.c.b16 %v3665, %v3655
    %v5176 = vpack.c.b16 %v3666, %v3656
    %v5177 = vpack.c.b16 %v3667, %v3657
    %v5178 = vpack.c.b16 %v3668, %v3658
    %v5179 = vpack.c.b16 %v3669, %v3659
    %v5180 = vpack.c.b16 %v3670, %v3660
    %v5181 = vpack.c.b16 %v3671, %v3661
    %v5182 = vpack.c.b16 %v3682, %v3672
    %v5183 = vpack.c.b16 %v3683, %v3673
    %v5184 = vpack.c.b16 %v3684, %v3674
    %v5185 = vpack.c.b16 %v3685, %v3675
    %v5186 = vpack.c.b16 %v3686, %v3676
    %v5187 = vpack.c.b16 %v3687, %v3677
    %v5188 = vpack.c.b16 %v3688, %v3678
    %v5189 = vpack.c.b16 %v3689, %v3679
    %v5190 = vpack.c.b16 %v3690, %v3680
    %v5191 = vpack.c.b16 %v3691, %v3681
    %v5192 = vpack.c.b16 %v3702, %v3692
    %v5193 = vpack.c.b16 %v3703, %v3693
    %v5194 = vpack.c.b16 %v3704, %v3694
    %v5195 = vpack.c.b16 %v3705, %v3695
    %v5196 = vpack.c.b16 %v3706, %v3696
    %v5197 = vpack.c.b16 %v3707, %v3697
    %v5198 = vpack.c.b16 %v3708, %v3698
    %v5199 = vpack.c.b16 %v3709, %v3699
    %v5200 = vpack.c.b16 %v3710, %v3700
    %v5201 = vpack.c.b16 %v3711, %v3701
    %v5202 = vpack.c.b16 %v3722, %v3712
    %v5203 = vpack.c.b16 %v3723, %v3713
    %v5204 = vpack.c.b16 %v3724, %v3714
    %v5205 = vpack.c.b16 %v3725, %v3715
    %v5206 = vpack.c.b16 %v3726, %v3716
    %v5207 = vpack.c.b16 %v3727, %v3717
    %v5208 = vpack.c.b16 %v3728, %v3718
    %v5209 = vpack.c.b16 %v3729, %v3719
    %v5210 = vpack.c.b16 %v3730, %v3720
    %v5211 = vpack.c.b16 %v3731, %v3721
    %v5212 = vpack.c.b16 %v3742, %v3732
    %v5213 = vpack.c.b16 %v3743, %v3733
    %v5214 = vpack.c.b16 %v3744, %v3734
    %v5215 = vpack.c.b16 %v3745, %v3735
    %v5216 = vpack.c.b16 %v3746, %v3736
    %v5217 = vpack.c.b16 %v3747, %v3737
    %v5218 = vpack.c.b16 %v3748, %v3738
    %v5219 = vpack.c.b16 %v3749, %v3739
    %v5220 = vpack.c.b16 %v3750, %v3740
    %v5221 = vpack.c.b16 %v3751, %v3741
    %v5222 = vpack.c.b16 %v3762, %v3752
    %v5223 = vpack.c.b16 %v3763, %v3753
    %v5224 = vpack.c.b16 %v3764, %v3754
    %v5225 = vpack.c.b16 %v3765, %v3755
    %v5226 = vpack.c.b16 %v3766, %v3756
    %v5227 = vpack.c.b16 %v3767, %v3757
    %v5228 = vpack.c.b16 %v3768, %v3758
    %v5229 = vpack.c.b16 %v3769, %v3759
    %v5230 = vpack.c.b16 %v3770, %v3760
    %v5231 = vpack.c.b16 %v3771, %v3761
    %v5232 = vpack.c.b16 %v3782, %v3772
    %v5233 = vpack.c.b16 %v3783, %v3773
    %v5234 = vpack.c.b16 %v3784, %v3774
    %v5235 = vpack.c.b16 %v3785, %v3775
    %v5236 = vpack.c.b16 %v3786, %v3776
    %v5237 = vpack.c.b16 %v3787, %v3777
    %v5238 = vpack.c.b16 %v3788, %v3778
    %v5239 = vpack.c.b16 %v3789, %v3779
    %v5240 = vpack.c.b16 %v3790, %v3780
    %v5241 = vpack.c.b16 %v3791, %v3781
    %v5242 = vpack.c.b16 %v3802, %v3792
    %v5243 = vpack.c.b16 %v3803, %v3793
    %v5244 = vpack.c.b16 %v3804, %v3794
    %v5245 = vpack.c.b16 %v3805, %v3795
    %v5246 = vpack.c.b16 %v3806, %v3796
    %v5247 = vpack.c.b16 %v3807, %v3797
    %v5248 = vpack.c.b16 %v3808, %v3798
    %v5249 = vpack.c.b16 %v3809, %v3799
    %v5250 = vpack.c.b16 %v3810, %v3800
    %v5251 = vpack.c.b16 %v3811, %v3801
    %v5252 = vpack.c.b16 %v3822, %v3812
    %v5253 = vpack.c.b16 %v3823, %v3813
    %v5254 = vpack.c.b16 %v3824, %v3814
    %v5255 = vpack.c.b16 %v3825, %v3815
    %v5256 = vpack.c.b16 %v3826, %v3816
    %v5257 = vpack.c.b16 %v3827, %v3817
    %v5258 = vpack.c.b16 %v3828, %v3818
    %v5259 = vpack.c.b16 %v3829, %v3819
    %v5260 = vpack.c.b16 %v3830, %v3820
    %v5261 = vpack.c.b16 %v3831, %v3821
    %v5262 = vpack.c.b16 %v3842, %v3832
    %v5263 = vpack.c.b16 %v3843, %v3833
    %v5264 = vpack.c.b16 %v3844, %v3834
    %v5265 = vpack.c.b16 %v3845, %v3835
    %v5266 = vpack.c.b16 %v3846, %v3836
    %v5267 = vpack.c.b16 %v3847, %v3837
    %v5268 = vpack.c.b16 %v3848, %v3838
    %v5269 = vpack.c.b16 %v3849, %v3839
    %v5270 = vpack.c.b16 %v3850, %v3840
    %v5271 = vpack.c.b16 %v3851, %v3841
    %v5272 = vpack.c.b16 %v3862, %v3852
    %v5273 = vpack.c.b16 %v3863, %v3853
    %v5274 = vpack.c.b16 %v3864, %v3854
    %v5275 = vpack.c.b16 %v3865, %v3855
    %v5276 = vpack.c.b16 %v3866, %v3856
    %v5277 = vpack.c.b16 %v3867, %v3857
    %v5278 = vpack.c.b16 %v3868, %v3858
    %v5279 = vpack.c.b16 %v3869, %v3859
    %v5280 = vpack.c.b16 %v3870, %v3860
    %v5281 = vpack.c.b16 %v3871, %v3861
    %v5282 = vpack.c.b16 %v3882, %v3872
    %v5283 = vpack.c.b16 %v3883, %v3873
    %v5284 = vpack.c.b16 %v3884, %v3874
    %v5285 = vpack.c.b16 %v3885, %v3875
    %v5286 = vpack.c.b16 %v3886, %v3876
    %v5287 = vpack.c.b16 %v3887, %v3877
    %v5288 = vpack.c.b16 %v3888, %v3878
    %v5289 = vpack.c.b16 %v3889, %v3879
    %v5290 = vpack.c.b16 %v3890, %v3880
    %v5291 = vpack.c.b16 %v3891, %v3881
    %v5292 = vpack.c.b16 %v3902, %v3892
    %v5293 = vpack.c.b16 %v3903, %v3893
    %v5294 = vpack.c.b16 %v3904, %v3894
    %v5295 = vpack.c.b16 %v3905, %v3895
    %v5296 = vpack.c.b16 %v3906, %v3896
    %v5297 = vpack.c.b16 %v3907, %v3897
    %v5298 = vpack.c.b16 %v3908, %v3898
    %v5299 = vpack.c.b16 %v3909, %v3899
    %v5300 = vpack.c.b16 %v3910, %v3900
    %v5301 = vpack.c.b16 %v3911, %v3901
    %v5302 = vpack.c.b16 %v3922, %v3912
    %v5303 = vpack.c.b16 %v3923, %v3913
    %v5304 = vpack.c.b16 %v3924, %v3914
    %v5305 = vpack.c.b16 %v3925, %v3915
    %v5306 = vpack.c.b16 %v3926, %v3916
    %v5307 = vpack.c.b16 %v3927, %v3917
    %v5308 = vpack.c.b16 %v3928, %v3918
    %v5309 = vpack.c.b16 %v3929, %v3919
    %v5310 = vpack.c.b16 %v3930, %v3920
    %v5311 = vpack.c.b16 %v3931, %v3921
    %v5312 = vpack.c.b16 %v3942, %v3932
    %v5313 = vpack.c.b16 %v3943, %v3933
    %v5314 = vpack.c.b16 %v3944, %v3934
    %v5315 = vpack.c.b16 %v3945, %v3935
    %v5316 = vpack.c.b16 %v3946, %v3936
    %v5317 = vpack.c.b16 %v3947, %v3937
    %v5318 = vpack.c.b16 %v3948, %v3938
    %v5319 = vpack.c.b16 %v3949, %v3939
    %v5320 = vpack.c.b16 %v3950, %v3940
    %v5321 = vpack.c.b16 %v3951, %v3941
    %v5322 = vpack.c.b16 %v3962, %v3952
    %v5323 = vpack.c.b16 %v3963, %v3953
    %v5324 = vpack.c.b16 %v3964, %v3954
    %v5325 = vpack.c.b16 %v3965, %v3955
    %v5326 = vpack.c.b16 %v3966, %v3956
    %v5327 = vpack.c.b16 %v3967, %v3957
    %v5328 = vpack.c.b16 %v3968, %v3958
    %v5329 = vpack.c.b16 %v3969, %v3959
    %v5330 = vpack.c.b16 %v3970, %v3960
    %v5331 = vpack.c.b16 %v3971, %v3961
    %v5332 = vpack.c.b16 %v3982, %v3972
    %v5333 = vpack.c.b16 %v3983, %v3973
    %v5334 = vpack.c.b16 %v3984, %v3974
    %v5335 = vpack.c.b16 %v3985, %v3975
    %v5336 = vpack.c.b16 %v3986, %v3976
    %v5337 = vpack.c.b16 %v3987, %v3977
    %v5338 = vpack.c.b16 %v3988, %v3978
    %v5339 = vpack.c.b16 %v3989, %v3979
    %v5340 = vpack.c.b16 %v3990, %v3980
    %v5341 = vpack.c.b16 %v3991, %v3981
    %v5342 = vpack.c.b16 %v4002, %v3992
    %v5343 = vpack.c.b16 %v4003, %v3993
    %v5344 = vpack.c.b16 %v4004, %v3994
    %v5345 = vpack.c.b16 %v4005, %v3995
    %v5346 = vpack.c.b16 %v4006, %v3996
    %v5347 = vpack.c.b16 %v4007, %v3997
    %v5348 = vpack.c.b16 %v4008, %v3998
    %v5349 = vpack.c.b16 %v4009, %v3999
    %v5350 = vpack.c.b16 %v4010, %v4000
    %v5351 = vpack.c.b16 %v4011, %v4001
    %v5352 = vpack.c.b16 %v4022, %v4012
    %v5353 = vpack.c.b16 %v4023, %v4013
    %v5354 = vpack.c.b16 %v4024, %v4014
    %v5355 = vpack.c.b16 %v4025, %v4015
    %v5356 = vpack.c.b16 %v4026, %v4016
    %v5357 = vpack.c.b16 %v4027, %v4017
    %v5358 = vpack.c.b16 %v4028, %v4018
    %v5359 = vpack.c.b16 %v4029, %v4019
    %v5360 = vpack.c.b16 %v4030, %v4020
    %v5361 = vpack.c.b16 %v4031, %v4021
    %v5362 = vpack.c.b16 %v4042, %v4032
    %v5363 = vpack.c.b16 %v4043, %v4033
    %v5364 = vpack.c.b16 %v4044, %v4034
    %v5365 = vpack.c.b16 %v4045, %v4035
    %v5366 = vpack.c.b16 %v4046, %v4036
    %v5367 = vpack.c.b16 %v4047, %v4037
    %v5368 = vpack.c.b16 %v4048, %v4038
    %v5369 = vpack.c.b16 %v4049, %v4039
    %v5370 = vpack.c.b16 %v4050, %v4040
    %v5371 = vpack.c.b16 %v4051, %v4041
    %v5372 = vpack.c.b16 %v4062, %v4052
    %v5373 = vpack.c.b16 %v4063, %v4053
    %v5374 = vpack.c.b16 %v4064, %v4054
    %v5375 = vpack.c.b16 %v4065, %v4055
    %v5376 = vpack.c.b16 %v4066, %v4056
    %v5377 = vpack.c.b16 %v4067, %v4057
    %v5378 = vpack.c.b16 %v4068, %v4058
    %v5379 = vpack.c.b16 %v4069, %v4059
    %v5380 = vpack.c.b16 %v4070, %v4060
    %v5381 = vpack.c.b16 %v4071, %v4061
    %v5382 = vpack.c.b16 %v4082, %v4072
    %v5383 = vpack.c.b16 %v4083, %v4073
    %v5384 = vpack.c.b16 %v4084, %v4074
    %v5385 = vpack.c.b16 %v4085, %v4075
    %v5386 = vpack.c.b16 %v4086, %v4076
    %v5387 = vpack.c.b16 %v4087, %v4077
    %v5388 = vpack.c.b16 %v4088, %v4078
    %v5389 = vpack.c.b16 %v4089, %v4079
    %v5390 = vpack.c.b16 %v4090, %v4080
    %v5391 = vpack.c.b16 %v4091, %v4081
    %v5392 = vpack.c.b16 %v4102, %v4092
    %v5393 = vpack.c.b16 %v4103, %v4093
    %v5394 = vpack.c.b16 %v4104, %v4094
    %v5395 = vpack.c.b16 %v4105, %v4095
    %v5396 = vpack.c.b16 %v4106, %v4096
    %v5397 = vpack.c.b16 %v4107, %v4097
    %v5398 = vpack.c.b16 %v4108, %v4098
    %v5399 = vpack.c.b16 %v4109, %v4099
    %v5400 = vpack.c.b16 %v4110, %v4100
    %v5401 = vpack.c.b16 %v4111, %v4101
    %v5402 = vpack.c.b16 %v4122, %v4112
    %v5403 = vpack.c.b16 %v4123, %v4113
    %v5404 = vpack.c.b16 %v4124, %v4114
    %v5405 = vpack.c.b16 %v4125, %v4115
    %v5406 = vpack.c.b16 %v4126, %v4116
    %v5407 = vpack.c.b16 %v4127, %v4117
    %v5408 = vpack.c.b16 %v4128, %v4118
    %v5409 = vpack.c.b16 %v4129, %v4119
    %v5410 = vpack.c.b16 %v4130, %v4120
    %v5411 = vpack.c.b16 %v4131, %v4121
    %v5412 = vpack.c.b16 %v4142, %v4132
    %v5413 = vpack.c.b16 %v4143, %v4133
    %v5414 = vpack.c.b16 %v4144, %v4134
    %v5415 = vpack.c.b16 %v4145, %v4135
    %v5416 = vpack.c.b16 %v4146, %v4136
    %v5417 = vpack.c.b16 %v4147, %v4137
    %v5418 = vpack.c.b16 %v4148, %v4138
    %v5419 = vpack.c.b16 %v4149, %v4139
    %v5420 = vpack.c.b16 %v4150, %v4140
    %v5421 = vpack.c.b16 %v4151, %v4141
    %v5422 = vpack.c.b16 %v4162, %v4152
    %v5423 = vpack.c.b16 %v4163, %v4153
    %v5424 = vpack.c.b16 %v4164, %v4154
    %v5425 = vpack.c.b16 %v4165, %v4155
    %v5426 = vpack.c.b16 %v4166, %v4156
    %v5427 = vpack.c.b16 %v4167, %v4157
    %v5428 = vpack.c.b16 %v4168, %v4158
    %v5429 = vpack.c.b16 %v4169, %v4159
    %v5430 = vpack.c.b16 %v4170, %v4160
    %v5431 = vpack.c.b16 %v4171, %v4161
    %v5432 = vpack.c.b16 %v4182, %v4172
    %v5433 = vpack.c.b16 %v4183, %v4173
    %v5434 = vpack.c.b16 %v4184, %v4174
    %v5435 = vpack.c.b16 %v4185, %v4175
    %v5436 = vpack.c.b16 %v4186, %v4176
    %v5437 = vpack.c.b16 %v4187, %v4177
    %v5438 = vpack.c.b16 %v4188, %v4178
    %v5439 = vpack.c.b16 %v4189, %v4179
    %v5440 = vpack.c.b16 %v4190, %v4180
    %v5441 = vpack.c.b16 %v4191, %v4181
    %v5442 = vpack.c.b16 %v4202, %v4192
    %v5443 = vpack.c.b16 %v4203, %v4193
    %v5444 = vpack.c.b16 %v4204, %v4194
    %v5445 = vpack.c.b16 %v4205, %v4195
    %v5446 = vpack.c.b16 %v4206, %v4196
    %v5447 = vpack.c.b16 %v4207, %v4197
    %v5448 = vpack.c.b16 %v4208, %v4198
    %v5449 = vpack.c.b16 %v4209, %v4199
    %v5450 = vpack.c.b16 %v4210, %v4200
    %v5451 = vpack.c.b16 %v4211, %v4201
    %v5452 = vpack.c.b16 %v4222, %v4212
    %v5453 = vpack.c.b16 %v4223, %v4213
    %v5454 = vpack.c.b16 %v4224, %v4214
    %v5455 = vpack.c.b16 %v4225, %v4215
    %v5456 = vpack.c.b16 %v4226, %v4216
    %v5457 = vpack.c.b16 %v4227, %v4217
    %v5458 = vpack.c.b16 %v4228, %v4218
    %v5459 = vpack.c.b16 %v4229, %v4219
    %v5460 = vpack.c.b16 %v4230, %v4220
    %v5461 = vpack.c.b16 %v4231, %v4221
    %v5462 = vpack.c.b16 %v4242, %v4232
    %v5463 = vpack.c.b16 %v4243, %v4233
    %v5464 = vpack.c.b16 %v4244, %v4234
    %v5465 = vpack.c.b16 %v4245, %v4235
    %v5466 = vpack.c.b16 %v4246, %v4236
    %v5467 = vpack.c.b16 %v4247, %v4237
    %v5468 = vpack.c.b16 %v4248, %v4238
    %v5469 = vpack.c.b16 %v4249, %v4239
    %v5470 = vpack.c.b16 %v4250, %v4240
    %v5471 = vpack.c.b16 %v4251, %v4241
    %v5472 = vpack.c.b16 %v4262, %v4252
    %v5473 = vpack.c.b16 %v4263, %v4253
    %v5474 = vpack.c.b16 %v4264, %v4254
    %v5475 = vpack.c.b16 %v4265, %v4255
    %v5476 = vpack.c.b16 %v4266, %v4256
    %v5477 = vpack.c.b16 %v4267, %v4257
    %v5478 = vpack.c.b16 %v4268, %v4258
    %v5479 = vpack.c.b16 %v4269, %v4259
    %v5480 = vpack.c.b16 %v4270, %v4260
    %v5481 = vpack.c.b16 %v4271, %v4261
    %v5482 = vpack.c.b16 %v4282, %v4272
    %v5483 = vpack.c.b16 %v4283, %v4273
    %v5484 = vpack.c.b16 %v4284, %v4274
    %v5485 = vpack.c.b16 %v4285, %v4275
    %v5486 = vpack.c.b16 %v4286, %v4276
    %v5487 = vpack.c.b16 %v4287, %v4277
    %v5488 = vpack.c.b16 %v4288, %v4278
    %v5489 = vpack.c.b16 %v4289, %v4279
    %v5490 = vpack.c.b16 %v4290, %v4280
    %v5491 = vpack.c.b16 %v4291, %v4281
    %v5492 = vpack.c.b16 %v4302, %v4292
    %v5493 = vpack.c.b16 %v4303, %v4293
    %v5494 = vpack.c.b16 %v4304, %v4294
    %v5495 = vpack.c.b16 %v4305, %v4295
    %v5496 = vpack.c.b16 %v4306, %v4296
    %v5497 = vpack.c.b16 %v4307, %v4297
    %v5498 = vpack.c.b16 %v4308, %v4298
    %v5499 = vpack.c.b16 %v4309, %v4299
    %v5500 = vpack.c.b16 %v4310, %v4300
    %v5501 = vpack.c.b16 %v4311, %v4301
    %v5502 = vpack.c.b16 %v4322, %v4312
    %v5503 = vpack.c.b16 %v4323, %v4313
    %v5504 = vpack.c.b16 %v4324, %v4314
    %v5505 = vpack.c.b16 %v4325, %v4315
    %v5506 = vpack.c.b16 %v4326, %v4316
    %v5507 = vpack.c.b16 %v4327, %v4317
    %v5508 = vpack.c.b16 %v4328, %v4318
    %v5509 = vpack.c.b16 %v4329, %v4319
    %v5510 = vpack.c.b16 %v4330, %v4320
    %v5511 = vpack.c.b16 %v4331, %v4321
    %v5512 = vpack.c.b16 %v4342, %v4332
    %v5513 = vpack.c.b16 %v4343, %v4333
    %v5514 = vpack.c.b16 %v4344, %v4334
    %v5515 = vpack.c.b16 %v4345, %v4335
    %v5516 = vpack.c.b16 %v4346, %v4336
    %v5517 = vpack.c.b16 %v4347, %v4337
    %v5518 = vpack.c.b16 %v4348, %v4338
    %v5519 = vpack.c.b16 %v4349, %v4339
    %v5520 = vpack.c.b16 %v4350, %v4340
    %v5521 = vpack.c.b16 %v4351, %v4341
    %v5522 = vpack.c.b16 %v4362, %v4352
    %v5523 = vpack.c.b16 %v4363, %v4353
    %v5524 = vpack.c.b16 %v4364, %v4354
    %v5525 = vpack.c.b16 %v4365, %v4355
    %v5526 = vpack.c.b16 %v4366, %v4356
    %v5527 = vpack.c.b16 %v4367, %v4357
    %v5528 = vpack.c.b16 %v4368, %v4358
    %v5529 = vpack.c.b16 %v4369, %v4359
    %v5530 = vpack.c.b16 %v4370, %v4360
    %v5531 = vpack.c.b16 %v4371, %v4361
    %v5532 = vpack.c.b16 %v4382, %v4372
    %v5533 = vpack.c.b16 %v4383, %v4373
    %v5534 = vpack.c.b16 %v4384, %v4374
    %v5535 = vpack.c.b16 %v4385, %v4375
    %v5536 = vpack.c.b16 %v4386, %v4376
    %v5537 = vpack.c.b16 %v4387, %v4377
    %v5538 = vpack.c.b16 %v4388, %v4378
    %v5539 = vpack.c.b16 %v4389, %v4379
    %v5540 = vpack.c.b16 %v4390, %v4380
    %v5541 = vpack.c.b16 %v4391, %v4381
    %v5542 = vpack.c.b16 %v4402, %v4392
    %v5543 = vpack.c.b16 %v4403, %v4393
    %v5544 = vpack.c.b16 %v4404, %v4394
    %v5545 = vpack.c.b16 %v4405, %v4395
    %v5546 = vpack.c.b16 %v4406, %v4396
    %v5547 = vpack.c.b16 %v4407, %v4397
    %v5548 = vpack.c.b16 %v4408, %v4398
    %v5549 = vpack.c.b16 %v4409, %v4399
    %v5550 = vpack.c.b16 %v4410, %v4400
    %v5551 = vpack.c.b16 %v4411, %v4401
    %v5552 = vpack.c.b16 %v4422, %v4412
    %v5553 = vpack.c.b16 %v4423, %v4413
    %v5554 = vpack.c.b16 %v4424, %v4414
    %v5555 = vpack.c.b16 %v4425, %v4415
    %v5556 = vpack.c.b16 %v4426, %v4416
    %v5557 = vpack.c.b16 %v4427, %v4417
    %v5558 = vpack.c.b16 %v4428, %v4418
    %v5559 = vpack.c.b16 %v4429, %v4419
    %v5560 = vpack.c.b16 %v4430, %v4420
    %v5561 = vpack.c.b16 %v4431, %v4421
    %v5562 = vpack.c.b16 %v4442, %v4432
    %v5563 = vpack.c.b16 %v4443, %v4433
    %v5564 = vpack.c.b16 %v4444, %v4434
    %v5565 = vpack.c.b16 %v4445, %v4435
    %v5566 = vpack.c.b16 %v4446, %v4436
    %v5567 = vpack.c.b16 %v4447, %v4437
    %v5568 = vpack.c.b16 %v4448, %v4438
    %v5569 = vpack.c.b16 %v4449, %v4439
    %v5570 = vpack.c.b16 %v4450, %v4440
    %v5571 = vpack.c.b16 %v4451, %v4441
    %v5572 = vpack.c.b16 %v4462, %v4452
    %v5573 = vpack.c.b16 %v4463, %v4453
    %v5574 = vpack.c.b16 %v4464, %v4454
    %v5575 = vpack.c.b16 %v4465, %v4455
    %v5576 = vpack.c.b16 %v4466, %v4456
    %v5577 = vpack.c.b16 %v4467, %v4457
    %v5578 = vpack.c.b16 %v4468, %v4458
    %v5579 = vpack.c.b16 %v4469, %v4459
    %v5580 = vpack.c.b16 %v4470, %v4460
    %v5581 = vpack.c.b16 %v4471, %v4461
    %v5582 = vpack.c.b16 %v4482, %v4472
    %v5583 = vpack.c.b16 %v4483, %v4473
    %v5584 = vpack.c.b16 %v4484, %v4474
    %v5585 = vpack.c.b16 %v4485, %v4475
    %v5586 = vpack.c.b16 %v4486, %v4476
    %v5587 = vpack.c.b16 %v4487, %v4477
    %v5588 = vpack.c.b16 %v4488, %v4478
    %v5589 = vpack.c.b16 %v4489, %v4479
    %v5590 = vpack.c.b16 %v4490, %v4480
    %v5591 = vpack.c.b16 %v4491, %v4481
    %v5592 = vpack.c.b16 %v4502, %v4492
    %v5593 = vpack.c.b16 %v4503, %v4493
    %v5594 = vpack.c.b16 %v4504, %v4494
    %v5595 = vpack.c.b16 %v4505, %v4495
    %v5596 = vpack.c.b16 %v4506, %v4496
    %v5597 = vpack.c.b16 %v4507, %v4497
    %v5598 = vpack.c.b16 %v4508, %v4498
    %v5599 = vpack.c.b16 %v4509, %v4499
    %v5600 = vpack.c.b16 %v4510, %v4500
    %v5601 = vpack.c.b16 %v4511, %v4501
    %v5602 = vpack.c.b16 %v4522, %v4512
    %v5603 = vpack.c.b16 %v4523, %v4513
    %v5604 = vpack.c.b16 %v4524, %v4514
    %v5605 = vpack.c.b16 %v4525, %v4515
    %v5606 = vpack.c.b16 %v4526, %v4516
    %v5607 = vpack.c.b16 %v4527, %v4517
    %v5608 = vpack.c.b16 %v4528, %v4518
    %v5609 = vpack.c.b16 %v4529, %v4519
    %v5610 = vpack.c.b16 %v4530, %v4520
    %v5611 = vpack.c.b16 %v4531, %v4521
    %v5612 = vpack.c.b16 %v4542, %v4532
    %v5613 = vpack.c.b16 %v4543, %v4533
    %v5614 = vpack.c.b16 %v4544, %v4534
    %v5615 = vpack.c.b16 %v4545, %v4535
    %v5616 = vpack.c.b16 %v4546, %v4536
    %v5617 = vpack.c.b16 %v4547, %v4537
    %v5618 = vpack.c.b16 %v4548, %v4538
    %v5619 = vpack.c.b16 %v4549, %v4539
    %v5620 = vpack.c.b16 %v4550, %v4540
    %v5621 = vpack.c.b16 %v4551, %v4541
    %v5622 = vpack.c.b16 %v4562, %v4552
    %v5623 = vpack.c.b16 %v4563, %v4553
    %v5624 = vpack.c.b16 %v4564, %v4554
    %v5625 = vpack.c.b16 %v4565, %v4555
    %v5626 = vpack.c.b16 %v4566, %v4556
    %v5627 = vpack.c.b16 %v4567, %v4557
    %v5628 = vpack.c.b16 %v4568, %v4558
    %v5629 = vpack.c.b16 %v4569, %v4559
    %v5630 = vpack.c.b16 %v4570, %v4560
    %v5631 = vpack.c.b16 %v4571, %v4561
    %v5632 = vpack.c.b16 %v4582, %v4572
    %v5633 = vpack.c.b16 %v4583, %v4573
    %v5634 = vpack.c.b16 %v4584, %v4574
    %v5635 = vpack.c.b16 %v4585, %v4575
    %v5636 = vpack.c.b16 %v4586, %v4576
    %v5637 = vpack.c.b16 %v4587, %v4577
    %v5638 = vpack.c.b16 %v4588, %v4578
    %v5639 = vpack.c.b16 %v4589, %v4579
    %v5640 = vpack.c.b16 %v4590, %v4580
    %v5641 = vpack.c.b16 %v4591, %v4581
    %v5642 = vpack.c.b16 %v4602, %v4592
    %v5643 = vpack.c.b16 %v4603, %v4593
    %v5644 = vpack.c.b16 %v4604, %v4594
    %v5645 = vpack.c.b16 %v4605, %v4595
    %v5646 = vpack.c.b16 %v4606, %v4596
    %v5647 = vpack.c.b16 %v4607, %v4597
    %v5648 = vpack.c.b16 %v4608, %v4598
    %v5649 = vpack.c.b16 %v4609, %v4599
    %v5650 = vpack.c.b16 %v4610, %v4600
    %v5651 = vpack.c.b16 %v4611, %v4601
    %v5652 = vpack.c.b16 %v4622, %v4612
    %v5653 = vpack.c.b16 %v4623, %v4613
    %v5654 = vpack.c.b16 %v4624, %v4614
    %v5655 = vpack.c.b16 %v4625, %v4615
    %v5656 = vpack.c.b16 %v4626, %v4616
    %v5657 = vpack.c.b16 %v4627, %v4617
    %v5658 = vpack.c.b16 %v4628, %v4618
    %v5659 = vpack.c.b16 %v4629, %v4619
    %v5660 = vpack.c.b16 %v4630, %v4620
    %v5661 = vpack.c.b16 %v4631, %v4621
    %v5662 = vpack.c.b16 %v4642, %v4632
    %v5663 = vpack.c.b16 %v4643, %v4633
    %v5664 = vpack.c.b16 %v4644, %v4634
    %v5665 = vpack.c.b16 %v4645, %v4635
    %v5666 = vpack.c.b16 %v4646, %v4636
    %v5667 = vpack.c.b16 %v4647, %v4637
    %v5668 = vpack.c.b16 %v4648, %v4638
    %v5669 = vpack.c.b16 %v4649, %v4639
    %v5670 = vpack.c.b16 %v4650, %v4640
    %v5671 = vpack.c.b16 %v4651, %v4641
    %v5672 = vpack.c.b16 %v4662, %v4652
    %v5673 = vpack.c.b16 %v4663, %v4653
    %v5674 = vpack.c.b16 %v4664, %v4654
    %v5675 = vpack.c.b16 %v4665, %v4655
    %v5676 = vpack.c.b16 %v4666, %v4656
    %v5677 = vpack.c.b16 %v4667, %v4657
    %v5678 = vpack.c.b16 %v4668, %v4658
    %v5679 = vpack.c.b16 %v4669, %v4659
    %v5680 = vpack.c.b16 %v4670, %v4660
    %v5681 = vpack.c.b16 %v4671, %v4661
    %v5682 = vpack.c.b16 %v4682, %v4672
    %v5683 = vpack.c.b16 %v4683, %v4673
    %v5684 = vpack.c.b16 %v4684, %v4674
    %v5685 = vpack.c.b16 %v4685, %v4675
    %v5686 = vpack.c.b16 %v4686, %v4676
    %v5687 = vpack.c.b16 %v4687, %v4677
    %v5688 = vpack.c.b16 %v4688, %v4678
    %v5689 = vpack.c.b16 %v4689, %v4679
    %v5690 = vpack.c.b16 %v4690, %v4680
    %v5691 = vpack.c.b16 %v4691, %v4681
    %v5692 = vpack.c.b16 %v4702, %v4692
    %v5693 = vpack.c.b16 %v4703, %v4693
    %v5694 = vpack.c.b16 %v4704, %v4694
    %v5695 = vpack.c.b16 %v4705, %v4695
    %v5696 = vpack.c.b16 %v4706, %v4696
    %v5697 = vpack.c.b16 %v4707, %v4697
    %v5698 = vpack.c.b16 %v4708, %v4698
    %v5699 = vpack.c.b16 %v4709, %v4699
    %v5700 = vpack.c.b16 %v4710, %v4700
    %v5701 = vpack.c.b16 %v4711, %v4701
    %v5702 = vpack.c.b16 %v4722, %v4712
    %v5703 = vpack.c.b16 %v4723, %v4713
    %v5704 = vpack.c.b16 %v4724, %v4714
    %v5705 = vpack.c.b16 %v4725, %v4715
    %v5706 = vpack.c.b16 %v4726, %v4716
    %v5707 = vpack.c.b16 %v4727, %v4717
    %v5708 = vpack.c.b16 %v4728, %v4718
    %v5709 = vpack.c.b16 %v4729, %v4719
    %v5710 = vpack.c.b16 %v4730, %v4720
    %v5711 = vpack.c.b16 %v4731, %v4721
    %v5712 = vpack.c.b16 %v4742, %v4732
    %v5713 = vpack.c.b16 %v4743, %v4733
    %v5714 = vpack.c.b16 %v4744, %v4734
    %v5715 = vpack.c.b16 %v4745, %v4735
    %v5716 = vpack.c.b16 %v4746, %v4736
    %v5717 = vpack.c.b16 %v4747, %v4737
    %v5718 = vpack.c.b16 %v4748, %v4738
    %v5719 = vpack.c.b16 %v4749, %v4739
    %v5720 = vpack.c.b16 %v4750, %v4740
    %v5721 = vpack.c.b16 %v4751, %v4741
    %v5722 = vpack.c.b16 %v4762, %v4752
    %v5723 = vpack.c.b16 %v4763, %v4753
    %v5724 = vpack.c.b16 %v4764, %v4754
    %v5725 = vpack.c.b16 %v4765, %v4755
    %v5726 = vpack.c.b16 %v4766, %v4756
    %v5727 = vpack.c.b16 %v4767, %v4757
    %v5728 = vpack.c.b16 %v4768, %v4758
    %v5729 = vpack.c.b16 %v4769, %v4759
    %v5730 = vpack.c.b16 %v4770, %v4760
    %v5731 = vpack.c.b16 %v4771, %v4761
    %v5732 = vpack.c.b16 %v4782, %v4772
    %v5733 = vpack.c.b16 %v4783, %v4773
    %v5734 = vpack.c.b16 %v4784, %v4774
    %v5735 = vpack.c.b16 %v4785, %v4775
    %v5736 = vpack.c.b16 %v4786, %v4776
    %v5737 = vpack.c.b16 %v4787, %v4777
    %v5738 = vpack.c.b16 %v4788, %v4778
    %v5739 = vpack.c.b16 %v4789, %v4779
    %v5740 = vpack.c.b16 %v4790, %v4780
    %v5741 = vpack.c.b16 %v4791, %v4781
    %v5742 = vpack.c.b16 %v4802, %v4792
    %v5743 = vpack.c.b16 %v4803, %v4793
    %v5744 = vpack.c.b16 %v4804, %v4794
    %v5745 = vpack.c.b16 %v4805, %v4795
    %v5746 = vpack.c.b16 %v4806, %v4796
    %v5747 = vpack.c.b16 %v4807, %v4797
    %v5748 = vpack.c.b16 %v4808, %v4798
    %v5749 = vpack.c.b16 %v4809, %v4799
    %v5750 = vpack.c.b16 %v4810, %v4800
    %v5751 = vpack.c.b16 %v4811, %v4801
    %v5752 = vpack.c.b16 %v4822, %v4812
    %v5753 = vpack.c.b16 %v4823, %v4813
    %v5754 = vpack.c.b16 %v4824, %v4814
    %v5755 = vpack.c.b16 %v4825, %v4815
    %v5756 = vpack.c.b16 %v4826, %v4816
    %v5757 = vpack.c.b16 %v4827, %v4817
    %v5758 = vpack.c.b16 %v4828, %v4818
    %v5759 = vpack.c.b16 %v4829, %v4819
    %v5760 = vpack.c.b16 %v4830, %v4820
    %v5761 = vpack.c.b16 %v4831, %v4821
    %v5762 = vpack.c.b16 %v4842, %v4832
    %v5763 = vpack.c.b16 %v4843, %v4833
    %v5764 = vpack.c.b16 %v4844, %v4834
    %v5765 = vpack.c.b16 %v4845, %v4835
    %v5766 = vpack.c.b16 %v4846, %v4836
    %v5767 = vpack.c.b16 %v4847, %v4837
    %v5768 = vpack.c.b16 %v4848, %v4838
    %v5769 = vpack.c.b16 %v4849, %v4839
    %v5770 = vpack.c.b16 %v4850, %v4840
    %v5771 = vpack.c.b16 %v4851, %v4841
    %v5772 = vpack.c.b16 %v4862, %v4852
    %v5773 = vpack.c.b16 %v4863, %v4853
    %v5774 = vpack.c.b16 %v4864, %v4854
    %v5775 = vpack.c.b16 %v4865, %v4855
    %v5776 = vpack.c.b16 %v4866, %v4856
    %v5777 = vpack.c.b16 %v4867, %v4857
    %v5778 = vpack.c.b16 %v4868, %v4858
    %v5779 = vpack.c.b16 %v4869, %v4859
    %v5780 = vpack.c.b16 %v4870, %v4860
    %v5781 = vpack.c.b16 %v4871, %v4861
    %v5782 = vpack.c.b16 %v4882, %v4872
    %v5783 = vpack.c.b16 %v4883, %v4873
    %v5784 = vpack.c.b16 %v4884, %v4874
    %v5785 = vpack.c.b16 %v4885, %v4875
    %v5786 = vpack.c.b16 %v4886, %v4876
    %v5787 = vpack.c.b16 %v4887, %v4877
    %v5788 = vpack.c.b16 %v4888, %v4878
    %v5789 = vpack.c.b16 %v4889, %v4879
    %v5790 = vpack.c.b16 %v4890, %v4880
    %v5791 = vpack.c.b16 %v4891, %v4881
    %v5792 = vpack.c.b16 %v4902, %v4892
    %v5793 = vpack.c.b16 %v4903, %v4893
    %v5794 = vpack.c.b16 %v4904, %v4894
    %v5795 = vpack.c.b16 %v4905, %v4895
    %v5796 = vpack.c.b16 %v4906, %v4896
    %v5797 = vpack.c.b16 %v4907, %v4897
    %v5798 = vpack.c.b16 %v4908, %v4898
    %v5799 = vpack.c.b16 %v4909, %v4899
    %v5800 = vpack.c.b16 %v4910, %v4900
    %v5801 = vpack.c.b16 %v4911, %v4901
    %v5802 = vpack.c.b16 %v4922, %v4912
    %v5803 = vpack.c.b16 %v4923, %v4913
    %v5804 = vpack.c.b16 %v4924, %v4914
    %v5805 = vpack.c.b16 %v4925, %v4915
    %v5806 = vpack.c.b16 %v4926, %v4916
    %v5807 = vpack.c.b16 %v4927, %v4917
    %v5808 = vpack.c.b16 %v4928, %v4918
    %v5809 = vpack.c.b16 %v4929, %v4919
    %v5810 = vpack.c.b16 %v4930, %v4920
    %v5811 = vpack.c.b16 %v4931, %v4921
    %v5812 = vpack.c.b16 %v4942, %v4932
    %v5813 = vpack.c.b16 %v4943, %v4933
    %v5814 = vpack.c.b16 %v4944, %v4934
    %v5815 = vpack.c.b16 %v4945, %v4935
    %v5816 = vpack.c.b16 %v4946, %v4936
    %v5817 = vpack.c.b16 %v4947, %v4937
    %v5818 = vpack.c.b16 %v4948, %v4938
    %v5819 = vpack.c.b16 %v4949, %v4939
    %v5820 = vpack.c.b16 %v4950, %v4940
    %v5821 = vpack.c.b16 %v4951, %v4941
    %v5822 = vpack.c.b16 %v4962, %v4952
    %v5823 = vpack.c.b16 %v4963, %v4953
    %v5824 = vpack.c.b16 %v4964, %v4954
    %v5825 = vpack.c.b16 %v4965, %v4955
    %v5826 = vpack.c.b16 %v4966, %v4956
    %v5827 = vpack.c.b16 %v4967, %v4957
    %v5828 = vpack.c.b16 %v4968, %v4958
    %v5829 = vpack.c.b16 %v4969, %v4959
    %v5830 = vpack.c.b16 %v4970, %v4960
    %v5831 = vpack.c.b16 %v4971, %v4961
    %v5832 = vpack.c.b16 %v4982, %v4972
    %v5833 = vpack.c.b16 %v4983, %v4973
    %v5834 = vpack.c.b16 %v4984, %v4974
    %v5835 = vpack.c.b16 %v4985, %v4975
    %v5836 = vpack.c.b16 %v4986, %v4976
    %v5837 = vpack.c.b16 %v4987, %v4977
    %v5838 = vpack.c.b16 %v4988, %v4978
    %v5839 = vpack.c.b16 %v4989, %v4979
    %v5840 = vpack.c.b16 %v4990, %v4980
    %v5841 = vpack.c.b16 %v4991, %v4981
    %v5842 = vpack.c.b16 %v5002, %v4992
    %v5843 = vpack.c.b16 %v5003, %v4993
    %v5844 = vpack.c.b16 %v5004, %v4994
    %v5845 = vpack.c.b16 %v5005, %v4995
    %v5846 = vpack.c.b16 %v5006, %v4996
    %v5847 = vpack.c.b16 %v5007, %v4997
    %v5848 = vpack.c.b16 %v5008, %v4998
    %v5849 = vpack.c.b16 %v5009, %v4999
    %v5850 = vpack.c.b16 %v5010, %v5000
    %v5851 = vpack.c.b16 %v5011, %v5001
    %v5852 = vpack.c.b16 %v5022, %v5012
    %v5853 = vpack.c.b16 %v5023, %v5013
    %v5854 = vpack.c.b16 %v5024, %v5014
    %v5855 = vpack.c.b16 %v5025, %v5015
    %v5856 = vpack.c.b16 %v5026, %v5016
    %v5857 = vpack.c.b16 %v5027, %v5017
    %v5858 = vpack.c.b16 %v5028, %v5018
    %v5859 = vpack.c.b16 %v5029, %v5019
    %v5860 = vpack.c.b16 %v5030, %v5020
    %v5861 = vpack.c.b16 %v5031, %v5021
    %v5862 = vpack.c.b16 %v5042, %v5032
    %v5863 = vpack.c.b16 %v5043, %v5033
    %v5864 = vpack.c.b16 %v5044, %v5034
    %v5865 = vpack.c.b16 %v5045, %v5035
    %v5866 = vpack.c.b16 %v5046, %v5036
    %v5867 = vpack.c.b16 %v5047, %v5037
    %v5868 = vpack.c.b16 %v5048, %v5038
    %v5869 = vpack.c.b16 %v5049, %v5039
    %v5870 = vpack.c.b16 %v5050, %v5040
    %v5871 = vpack.c.b16 %v5051, %v5041
    %v5872 = vpack.c.b16 %v5062, %v5052
    %v5873 = vpack.c.b16 %v5063, %v5053
    %v5874 = vpack.c.b16 %v5064, %v5054
    %v5875 = vpack.c.b16 %v5065, %v5055
    %v5876 = vpack.c.b16 %v5066, %v5056
    %v5877 = vpack.c.b16 %v5067, %v5057
    %v5878 = vpack.c.b16 %v5068, %v5058
    %v5879 = vpack.c.b16 %v5069, %v5059
    %v5880 = vpack.c.b16 %v5070, %v5060
    %v5881 = vpack.c.b16 %v5071, %v5061
    %v5882 = vpack.c.b16 %v5082, %v5072
    %v5883 = vpack.c.b16 %v5083, %v5073
    %v5884 = vpack.c.b16 %v5084, %v5074
    %v5885 = vpack.c.b16 %v5085, %v5075
    %v5886 = vpack.c.b16 %v5086, %v5076
    %v5887 = vpack.c.b16 %v5087, %v5077
    %v5888 = vpack.c.b16 %v5088, %v5078
    %v5889 = vpack.c.b16 %v5089, %v5079
    %v5890 = vpack.c.b16 %v5090, %v5080
    %v5891 = vpack.c.b16 %v5091, %v5081
    %6692 = vmatprep.subr.bf16.mxu0 %v5093
    %6693 = vmatpush1.bf16.msra.mxu0 %v5092
    %6694 = vmatprep.subr.bf16.mxu0 %v5103
    %6695 = vmatpush1.bf16.msra.mxu0 %v5102
    %6696 = vmatprep.subr.bf16.mxu0 %v5113
    %6697 = vmatpush1.bf16.msra.mxu0 %v5112
    %6698 = vmatprep.subr.bf16.mxu0 %v5123
    %6699 = vmatpush1.bf16.msra.mxu0 %v5122
    %6700 = vmatprep.subr.bf16.mxu0 %v5133
    %6701 = vmatpush1.bf16.msra.mxu0 %v5132
    %6702 = vmatprep.subr.bf16.mxu0 %v5143
    %6703 = vmatpush1.bf16.msra.mxu0 %v5142
    %6704 = vmatprep.subr.bf16.mxu0 %v5153
    %6705 = vmatpush1.bf16.msra.mxu0 %v5152
    %6706 = vmatprep.subr.bf16.mxu0 %v5163
    %6707 = vmatpush1.bf16.msra.mxu0 %v5162
    %6708 = vmatprep.subr.bf16.mxu0 %v5173
    %6709 = vmatpush1.bf16.msra.mxu0 %v5172
    %6710 = vmatprep.subr.bf16.mxu0 %v5183
    %6711 = vmatpush1.bf16.msra.mxu0 %v5182
    %6712 = vmatprep.subr.bf16.mxu0 %v5193
    %6713 = vmatpush1.bf16.msra.mxu0 %v5192
    %6714 = vmatprep.subr.bf16.mxu0 %v5203
    %6715 = vmatpush1.bf16.msra.mxu0 %v5202
    %6716 = vmatprep.subr.bf16.mxu0 %v5213
    %6717 = vmatpush1.bf16.msra.mxu0 %v5212
    %6718 = vmatprep.subr.bf16.mxu0 %v5223
    %6719 = vmatpush1.bf16.msra.mxu0 %v5222
    %6720 = vmatprep.subr.bf16.mxu0 %v5233
    %6721 = vmatpush1.bf16.msra.mxu0 %v5232
    %6722 = vmatprep.subr.bf16.mxu0 %v5243
    %6723 = vmatpush1.bf16.msra.mxu0 %v5242
    %6724 = vmatprep.mubr.bf16.mxu0 %v1829
    %6725 = vmatmul.mubr.bf16.gmra.mrb[0].mxu0 %v1828
    %v6726 = vpop.f32.mrb[0].mxu0
    %v6727 = vadd.f32 %v2645, %v6726
    %v6728 = vpop.f32.mrb[0].mxu0
    %v6729 = vadd.f32 %v2649, %v6728
    %v6730 = vpop.f32.mrb[0].mxu0
    %v6731 = vpop.f32.mrb[0].mxu0
    %6732 = vdwg.mxu0
    %6733 = vmatprep.subr.bf16.mxu0 %v5253
    %6734 = vmatpush1.bf16.msra.mxu0 %v5252
    %6735 = vmatprep.subr.bf16.mxu0 %v5263
    %6736 = vmatpush1.bf16.msra.mxu0 %v5262
    %6737 = vmatprep.subr.bf16.mxu0 %v5273
    %6738 = vmatpush1.bf16.msra.mxu0 %v5272
    %6739 = vmatprep.subr.bf16.mxu0 %v5283
    %6740 = vmatpush1.bf16.msra.mxu0 %v5282
    %6741 = vmatprep.subr.bf16.mxu0 %v5293
    %6742 = vmatpush1.bf16.msra.mxu0 %v5292
    %6743 = vmatprep.subr.bf16.mxu0 %v5303
    %6744 = vmatpush1.bf16.msra.mxu0 %v5302
    %6745 = vmatprep.subr.bf16.mxu0 %v5313
    %6746 = vmatpush1.bf16.msra.mxu0 %v5312
    %6747 = vmatprep.subr.bf16.mxu0 %v5323
    %6748 = vmatpush1.bf16.msra.mxu0 %v5322
    %6749 = vmatprep.subr.bf16.mxu0 %v5333
    %6750 = vmatpush1.bf16.msra.mxu0 %v5332
    %6751 = vmatprep.subr.bf16.mxu0 %v5343
    %6752 = vmatpush1.bf16.msra.mxu0 %v5342
    %6753 = vmatprep.subr.bf16.mxu0 %v5353
    %6754 = vmatpush1.bf16.msra.mxu0 %v5352
    %6755 = vmatprep.subr.bf16.mxu0 %v5363
    %6756 = vmatpush1.bf16.msra.mxu0 %v5362
    %6757 = vmatprep.subr.bf16.mxu0 %v5373
    %6758 = vmatpush1.bf16.msra.mxu0 %v5372
    %6759 = vmatprep.subr.bf16.mxu0 %v5383
    %6760 = vmatpush1.bf16.msra.mxu0 %v5382
    %6761 = vmatprep.subr.bf16.mxu0 %v5393
    %6762 = vmatpush1.bf16.msra.mxu0 %v5392
    %6763 = vmatprep.subr.bf16.mxu0 %v5403
    %6764 = vmatpush1.bf16.msra.mxu0 %v5402
    %6765 = vmatprep.mubr.bf16.mxu0 %v1831
    %6766 = vmatmul.mubr.bf16.gmra.mrb[0].mxu0 %v1830
    %v6767 = vpop.f32.mrb[0].mxu0
    %v6768 = vadd.f32 %v6727, %v6767
    %v6769 = vpop.f32.mrb[0].mxu0
    %v6770 = vadd.f32 %v6729, %v6769
    %v6771 = vpop.f32.mrb[0].mxu0
    %v6772 = vpop.f32.mrb[0].mxu0
    %6773 = vdwg.mxu0
    %6774 = vmatprep.subr.bf16.mxu0 %v5413
    %6775 = vmatpush1.bf16.msra.mxu0 %v5412
    %6776 = vmatprep.subr.bf16.mxu0 %v5423
    %6777 = vmatpush1.bf16.msra.mxu0 %v5422
    %6778 = vmatprep.subr.bf16.mxu0 %v5433
    %6779 = vmatpush1.bf16.msra.mxu0 %v5432
    %6780 = vmatprep.subr.bf16.mxu0 %v5443
    %6781 = vmatpush1.bf16.msra.mxu0 %v5442
    %6782 = vmatprep.subr.bf16.mxu0 %v5453
    %6783 = vmatpush1.bf16.msra.mxu0 %v5452
    %6784 = vmatprep.subr.bf16.mxu0 %v5463
    %6785 = vmatpush1.bf16.msra.mxu0 %v5462
    %6786 = vmatprep.subr.bf16.mxu0 %v5473
    %6787 = vmatpush1.bf16.msra.mxu0 %v5472
    %6788 = vmatprep.subr.bf16.mxu0 %v5483
    %6789 = vmatpush1.bf16.msra.mxu0 %v5482
    %6790 = vmatprep.subr.bf16.mxu0 %v5493
    %6791 = vmatpush1.bf16.msra.mxu0 %v5492
    %6792 = vmatprep.subr.bf16.mxu0 %v5503
    %6793 = vmatpush1.bf16.msra.mxu0 %v5502
    %6794 = vmatprep.subr.bf16.mxu0 %v5513
    %6795 = vmatpush1.bf16.msra.mxu0 %v5512
    %6796 = vmatprep.subr.bf16.mxu0 %v5523
    %6797 = vmatpush1.bf16.msra.mxu0 %v5522
    %6798 = vmatprep.subr.bf16.mxu0 %v5533
    %6799 = vmatpush1.bf16.msra.mxu0 %v5532
    %6800 = vmatprep.subr.bf16.mxu0 %v5543
    %6801 = vmatpush1.bf16.msra.mxu0 %v5542
    %6802 = vmatprep.subr.bf16.mxu0 %v5553
    %6803 = vmatpush1.bf16.msra.mxu0 %v5552
    %6804 = vmatprep.subr.bf16.mxu0 %v5563
    %6805 = vmatpush1.bf16.msra.mxu0 %v5562
    %6806 = vmatprep.mubr.bf16.mxu0 %v1833
    %6807 = vmatmul.mubr.bf16.gmra.mrb[0].mxu0 %v1832
    %v6808 = vpop.f32.mrb[0].mxu0
    %v6809 = vadd.f32 %v6768, %v6808
    %v6810 = vpop.f32.mrb[0].mxu0
    %v6811 = vadd.f32 %v6770, %v6810
    %v6812 = vpop.f32.mrb[0].mxu0
    %v6813 = vpop.f32.mrb[0].mxu0
    %6814 = vdwg.mxu0
    %6815 = vmatprep.subr.bf16.mxu0 %v5573
    %6816 = vmatpush1.bf16.msra.mxu0 %v5572
    %6817 = vmatprep.subr.bf16.mxu0 %v5583
    %6818 = vmatpush1.bf16.msra.mxu0 %v5582
    %6819 = vmatprep.subr.bf16.mxu0 %v5593
    %6820 = vmatpush1.bf16.msra.mxu0 %v5592
    %6821 = vmatprep.subr.bf16.mxu0 %v5603
    %6822 = vmatpush1.bf16.msra.mxu0 %v5602
    %6823 = vmatprep.subr.bf16.mxu0 %v5613
    %6824 = vmatpush1.bf16.msra.mxu0 %v5612
    %6825 = vmatprep.subr.bf16.mxu0 %v5623
    %6826 = vmatpush1.bf16.msra.mxu0 %v5622
    %6827 = vmatprep.subr.bf16.mxu0 %v5633
    %6828 = vmatpush1.bf16.msra.mxu0 %v5632
    %6829 = vmatprep.subr.bf16.mxu0 %v5643
    %6830 = vmatpush1.bf16.msra.mxu0 %v5642
    %6831 = vmatprep.subr.bf16.mxu0 %v5653
    %6832 = vmatpush1.bf16.msra.mxu0 %v5652
    %6833 = vmatprep.subr.bf16.mxu0 %v5663
    %6834 = vmatpush1.bf16.msra.mxu0 %v5662
    %6835 = vmatprep.subr.bf16.mxu0 %v5673
    %6836 = vmatpush1.bf16.msra.mxu0 %v5672
    %6837 = vmatprep.subr.bf16.mxu0 %v5683
    %6838 = vmatpush1.bf16.msra.mxu0 %v5682
    %6839 = vmatprep.subr.bf16.mxu0 %v5693
    %6840 = vmatpush1.bf16.msra.mxu0 %v5692
    %6841 = vmatprep.subr.bf16.mxu0 %v5703
    %6842 = vmatpush1.bf16.msra.mxu0 %v5702
    %6843 = vmatprep.subr.bf16.mxu0 %v5713
    %6844 = vmatpush1.bf16.msra.mxu0 %v5712
    %6845 = vmatprep.subr.bf16.mxu0 %v5723
    %6846 = vmatpush1.bf16.msra.mxu0 %v5722
    %6847 = vmatprep.mubr.bf16.mxu0 %v1835
    %6848 = vmatmul.mubr.bf16.gmra.mrb[0].mxu0 %v1834
    %v6849 = vpop.f32.mrb[0].mxu0
    %v6850 = vadd.f32 %v6809, %v6849
    %v6851 = vpop.f32.mrb[0].mxu0
    %v6852 = vadd.f32 %v6811, %v6851
    %v6853 = vpop.f32.mrb[0].mxu0
    %v6854 = vpop.f32.mrb[0].mxu0
    %6855 = vdwg.mxu0
    %6856 = vmatprep.subr.bf16.mxu0 %v5733
    %6857 = vmatpush1.bf16.msra.mxu0 %v5732
    %6858 = vmatprep.subr.bf16.mxu0 %v5743
    %6859 = vmatpush1.bf16.msra.mxu0 %v5742
    %6860 = vmatprep.subr.bf16.mxu0 %v5753
    %6861 = vmatpush1.bf16.msra.mxu0 %v5752
    %6862 = vmatprep.subr.bf16.mxu0 %v5763
    %6863 = vmatpush1.bf16.msra.mxu0 %v5762
    %6864 = vmatprep.subr.bf16.mxu0 %v5773
    %6865 = vmatpush1.bf16.msra.mxu0 %v5772
    %6866 = vmatprep.subr.bf16.mxu0 %v5783
    %6867 = vmatpush1.bf16.msra.mxu0 %v5782
    %6868 = vmatprep.subr.bf16.mxu0 %v5793
    %6869 = vmatpush1.bf16.msra.mxu0 %v5792
    %6870 = vmatprep.subr.bf16.mxu0 %v5803
    %6871 = vmatpush1.bf16.msra.mxu0 %v5802
    %6872 = vmatprep.subr.bf16.mxu0 %v5813
    %6873 = vmatpush1.bf16.msra.mxu0 %v5812
    %6874 = vmatprep.subr.bf16.mxu0 %v5823
    %6875 = vmatpush1.bf16.msra.mxu0 %v5822
    %6876 = vmatprep.subr.bf16.mxu0 %v5833
    %6877 = vmatpush1.bf16.msra.mxu0 %v5832
    %6878 = vmatprep.subr.bf16.mxu0 %v5843
    %6879 = vmatpush1.bf16.msra.mxu0 %v5842
    %6880 = vmatprep.subr.bf16.mxu0 %v5853
    %6881 = vmatpush1.bf16.msra.mxu0 %v5852
    %6882 = vmatprep.subr.bf16.mxu0 %v5863
    %6883 = vmatpush1.bf16.msra.mxu0 %v5862
    %6884 = vmatprep.subr.bf16.mxu0 %v5873
    %6885 = vmatpush1.bf16.msra.mxu0 %v5872
    %6886 = vmatprep.subr.bf16.mxu0 %v5883
    %6887 = vmatpush1.bf16.msra.mxu0 %v5882
    %6888 = vmatprep.mubr.bf16.mxu0 %v1837
    %6889 = vmatmul.mubr.bf16.gmra.mrb[0].mxu0 %v1836
    %v6890 = vpop.f32.mrb[0].mxu0
    %v6891 = vadd.f32 %v6850, %v6890
    %v6892 = vpop.f32.mrb[0].mxu0
    %v6893 = vadd.f32 %v6852, %v6892
    %v6894 = vpop.f32.mrb[0].mxu0
    %v6895 = vpop.f32.mrb[0].mxu0
    %6896 = vdwg.mxu0
    %6897 = vmatprep.subr.bf16.mxu0 %v5095
    %6898 = vmatpush1.bf16.msra.mxu0 %v5094
    %6899 = vmatprep.subr.bf16.mxu0 %v5105
    %6900 = vmatpush1.bf16.msra.mxu0 %v5104
    %6901 = vmatprep.subr.bf16.mxu0 %v5115
    %6902 = vmatpush1.bf16.msra.mxu0 %v5114
    %6903 = vmatprep.subr.bf16.mxu0 %v5125
    %6904 = vmatpush1.bf16.msra.mxu0 %v5124
    %6905 = vmatprep.subr.bf16.mxu0 %v5135
    %6906 = vmatpush1.bf16.msra.mxu0 %v5134
    %6907 = vmatprep.subr.bf16.mxu0 %v5145
    %6908 = vmatpush1.bf16.msra.mxu0 %v5144
    %6909 = vmatprep.subr.bf16.mxu0 %v5155
    %6910 = vmatpush1.bf16.msra.mxu0 %v5154
    %6911 = vmatprep.subr.bf16.mxu0 %v5165
    %6912 = vmatpush1.bf16.msra.mxu0 %v5164
    %6913 = vmatprep.subr.bf16.mxu0 %v5175
    %6914 = vmatpush1.bf16.msra.mxu0 %v5174
    %6915 = vmatprep.subr.bf16.mxu0 %v5185
    %6916 = vmatpush1.bf16.msra.mxu0 %v5184
    %6917 = vmatprep.subr.bf16.mxu0 %v5195
    %6918 = vmatpush1.bf16.msra.mxu0 %v5194
    %6919 = vmatprep.subr.bf16.mxu0 %v5205
    %6920 = vmatpush1.bf16.msra.mxu0 %v5204
    %6921 = vmatprep.subr.bf16.mxu0 %v5215
    %6922 = vmatpush1.bf16.msra.mxu0 %v5214
    %6923 = vmatprep.subr.bf16.mxu0 %v5225
    %6924 = vmatpush1.bf16.msra.mxu0 %v5224
    %6925 = vmatprep.subr.bf16.mxu0 %v5235
    %6926 = vmatpush1.bf16.msra.mxu0 %v5234
    %6927 = vmatprep.subr.bf16.mxu0 %v5245
    %6928 = vmatpush1.bf16.msra.mxu0 %v5244
    %6929 = vmatprep.mubr.bf16.mxu0 %v1829
    %6930 = vmatmul.mubr.bf16.gmra.mrb[0].mxu0 %v1828
    %v6931 = vpop.f32.mrb[0].mxu0
    %v6932 = vadd.f32 %v2653, %v6931
    %v6933 = vpop.f32.mrb[0].mxu0
    %v6934 = vadd.f32 %v2657, %v6933
    %v6935 = vpop.f32.mrb[0].mxu0
    %v6936 = vpop.f32.mrb[0].mxu0
    %6937 = vdwg.mxu0
    %6938 = vmatprep.subr.bf16.mxu0 %v5255
    %6939 = vmatpush1.bf16.msra.mxu0 %v5254
    %6940 = vmatprep.subr.bf16.mxu0 %v5265
    %6941 = vmatpush1.bf16.msra.mxu0 %v5264
    %6942 = vmatprep.subr.bf16.mxu0 %v5275
    %6943 = vmatpush1.bf16.msra.mxu0 %v5274
    %6944 = vmatprep.subr.bf16.mxu0 %v5285
    %6945 = vmatpush1.bf16.msra.mxu0 %v5284
    %6946 = vmatprep.subr.bf16.mxu0 %v5295
    %6947 = vmatpush1.bf16.msra.mxu0 %v5294
    %6948 = vmatprep.subr.bf16.mxu0 %v5305
    %6949 = vmatpush1.bf16.msra.mxu0 %v5304
    %6950 = vmatprep.subr.bf16.mxu0 %v5315
    %6951 = vmatpush1.bf16.msra.mxu0 %v5314
    %6952 = vmatprep.subr.bf16.mxu0 %v5325
    %6953 = vmatpush1.bf16.msra.mxu0 %v5324
    %6954 = vmatprep.subr.bf16.mxu0 %v5335
    %6955 = vmatpush1.bf16.msra.mxu0 %v5334
    %6956 = vmatprep.subr.bf16.mxu0 %v5345
    %6957 = vmatpush1.bf16.msra.mxu0 %v5344
    %6958 = vmatprep.subr.bf16.mxu0 %v5355
    %6959 = vmatpush1.bf16.msra.mxu0 %v5354
    %6960 = vmatprep.subr.bf16.mxu0 %v5365
    %6961 = vmatpush1.bf16.msra.mxu0 %v5364
    %6962 = vmatprep.subr.bf16.mxu0 %v5375
    %6963 = vmatpush1.bf16.msra.mxu0 %v5374
    %6964 = vmatprep.subr.bf16.mxu0 %v5385
    %6965 = vmatpush1.bf16.msra.mxu0 %v5384
    %6966 = vmatprep.subr.bf16.mxu0 %v5395
    %6967 = vmatpush1.bf16.msra.mxu0 %v5394
    %6968 = vmatprep.subr.bf16.mxu0 %v5405
    %6969 = vmatpush1.bf16.msra.mxu0 %v5404
    %6970 = vmatprep.mubr.bf16.mxu0 %v1831
    %6971 = vmatmul.mubr.bf16.gmra.mrb[0].mxu0 %v1830
    %v6972 = vpop.f32.mrb[0].mxu0
    %v6973 = vadd.f32 %v6932, %v6972
    %v6974 = vpop.f32.mrb[0].mxu0
    %v6975 = vadd.f32 %v6934, %v6974
    %v6976 = vpop.f32.mrb[0].mxu0
    %v6977 = vpop.f32.mrb[0].mxu0
    %6978 = vdwg.mxu0
    %6979 = vmatprep.subr.bf16.mxu0 %v5415
    %6980 = vmatpush1.bf16.msra.mxu0 %v5414
    %6981 = vmatprep.subr.bf16.mxu0 %v5425
    %6982 = vmatpush1.bf16.msra.mxu0 %v5424
    %6983 = vmatprep.subr.bf16.mxu0 %v5435
    %6984 = vmatpush1.bf16.msra.mxu0 %v5434
    %6985 = vmatprep.subr.bf16.mxu0 %v5445
    %6986 = vmatpush1.bf16.msra.mxu0 %v5444
    %6987 = vmatprep.subr.bf16.mxu0 %v5455
    %6988 = vmatpush1.bf16.msra.mxu0 %v5454
    %6989 = vmatprep.subr.bf16.mxu0 %v5465
    %6990 = vmatpush1.bf16.msra.mxu0 %v5464
    %6991 = vmatprep.subr.bf16.mxu0 %v5475
    %6992 = vmatpush1.bf16.msra.mxu0 %v5474
    %6993 = vmatprep.subr.bf16.mxu0 %v5485
    %6994 = vmatpush1.bf16.msra.mxu0 %v5484
    %6995 = vmatprep.subr.bf16.mxu0 %v5495
    %6996 = vmatpush1.bf16.msra.mxu0 %v5494
    %6997 = vmatprep.subr.bf16.mxu0 %v5505
    %6998 = vmatpush1.bf16.msra.mxu0 %v5504
    %6999 = vmatprep.subr.bf16.mxu0 %v5515
    %7000 = vmatpush1.bf16.msra.mxu0 %v5514
    %7001 = vmatprep.subr.bf16.mxu0 %v5525
    %7002 = vmatpush1.bf16.msra.mxu0 %v5524
    %7003 = vmatprep.subr.bf16.mxu0 %v5535
    %7004 = vmatpush1.bf16.msra.mxu0 %v5534
    %7005 = vmatprep.subr.bf16.mxu0 %v5545
    %7006 = vmatpush1.bf16.msra.mxu0 %v5544
    %7007 = vmatprep.subr.bf16.mxu0 %v5555
    %7008 = vmatpush1.bf16.msra.mxu0 %v5554
    %7009 = vmatprep.subr.bf16.mxu0 %v5565
    %7010 = vmatpush1.bf16.msra.mxu0 %v5564
    %7011 = vmatprep.mubr.bf16.mxu0 %v1833
    %7012 = vmatmul.mubr.bf16.gmra.mrb[0].mxu0 %v1832
    %v7013 = vpop.f32.mrb[0].mxu0
    %v7014 = vadd.f32 %v6973, %v7013
    %v7015 = vpop.f32.mrb[0].mxu0
    %v7016 = vadd.f32 %v6975, %v7015
    %v7017 = vpop.f32.mrb[0].mxu0
    %v7018 = vpop.f32.mrb[0].mxu0
    %7019 = vdwg.mxu0
    %7020 = vmatprep.subr.bf16.mxu0 %v5575
    %7021 = vmatpush1.bf16.msra.mxu0 %v5574
    %7022 = vmatprep.subr.bf16.mxu0 %v5585
    %7023 = vmatpush1.bf16.msra.mxu0 %v5584
    %7024 = vmatprep.subr.bf16.mxu0 %v5595
    %7025 = vmatpush1.bf16.msra.mxu0 %v5594
    %7026 = vmatprep.subr.bf16.mxu0 %v5605
    %7027 = vmatpush1.bf16.msra.mxu0 %v5604
    %7028 = vmatprep.subr.bf16.mxu0 %v5615
    %7029 = vmatpush1.bf16.msra.mxu0 %v5614
    %7030 = vmatprep.subr.bf16.mxu0 %v5625
    %7031 = vmatpush1.bf16.msra.mxu0 %v5624
    %7032 = vmatprep.subr.bf16.mxu0 %v5635
    %7033 = vmatpush1.bf16.msra.mxu0 %v5634
    %7034 = vmatprep.subr.bf16.mxu0 %v5645
    %7035 = vmatpush1.bf16.msra.mxu0 %v5644
    %7036 = vmatprep.subr.bf16.mxu0 %v5655
    %7037 = vmatpush1.bf16.msra.mxu0 %v5654
    %7038 = vmatprep.subr.bf16.mxu0 %v5665
    %7039 = vmatpush1.bf16.msra.mxu0 %v5664
    %7040 = vmatprep.subr.bf16.mxu0 %v5675
    %7041 = vmatpush1.bf16.msra.mxu0 %v5674
    %7042 = vmatprep.subr.bf16.mxu0 %v5685
    %7043 = vmatpush1.bf16.msra.mxu0 %v5684
    %7044 = vmatprep.subr.bf16.mxu0 %v5695
    %7045 = vmatpush1.bf16.msra.mxu0 %v5694
    %7046 = vmatprep.subr.bf16.mxu0 %v5705
    %7047 = vmatpush1.bf16.msra.mxu0 %v5704
    %7048 = vmatprep.subr.bf16.mxu0 %v5715
    %7049 = vmatpush1.bf16.msra.mxu0 %v5714
    %7050 = vmatprep.subr.bf16.mxu0 %v5725
    %7051 = vmatpush1.bf16.msra.mxu0 %v5724
    %7052 = vmatprep.mubr.bf16.mxu0 %v1835
    %7053 = vmatmul.mubr.bf16.gmra.mrb[0].mxu0 %v1834
    %v7054 = vpop.f32.mrb[0].mxu0
    %v7055 = vadd.f32 %v7014, %v7054
    %v7056 = vpop.f32.mrb[0].mxu0
    %v7057 = vadd.f32 %v7016, %v7056
    %v7058 = vpop.f32.mrb[0].mxu0
    %v7059 = vpop.f32.mrb[0].mxu0
    %7060 = vdwg.mxu0
    %7061 = vmatprep.subr.bf16.mxu0 %v5735
    %7062 = vmatpush1.bf16.msra.mxu0 %v5734
    %7063 = vmatprep.subr.bf16.mxu0 %v5745
    %7064 = vmatpush1.bf16.msra.mxu0 %v5744
    %7065 = vmatprep.subr.bf16.mxu0 %v5755
    %7066 = vmatpush1.bf16.msra.mxu0 %v5754
    %7067 = vmatprep.subr.bf16.mxu0 %v5765
    %7068 = vmatpush1.bf16.msra.mxu0 %v5764
    %7069 = vmatprep.subr.bf16.mxu0 %v5775
    %7070 = vmatpush1.bf16.msra.mxu0 %v5774
    %7071 = vmatprep.subr.bf16.mxu0 %v5785
    %7072 = vmatpush1.bf16.msra.mxu0 %v5784
    %7073 = vmatprep.subr.bf16.mxu0 %v5795
    %7074 = vmatpush1.bf16.msra.mxu0 %v5794
    %7075 = vmatprep.subr.bf16.mxu0 %v5805
    %7076 = vmatpush1.bf16.msra.mxu0 %v5804
    %7077 = vmatprep.subr.bf16.mxu0 %v5815
    %7078 = vmatpush1.bf16.msra.mxu0 %v5814
    %7079 = vmatprep.subr.bf16.mxu0 %v5825
    %7080 = vmatpush1.bf16.msra.mxu0 %v5824
    %7081 = vmatprep.subr.bf16.mxu0 %v5835
    %7082 = vmatpush1.bf16.msra.mxu0 %v5834
    %7083 = vmatprep.subr.bf16.mxu0 %v5845
    %7084 = vmatpush1.bf16.msra.mxu0 %v5844
    %7085 = vmatprep.subr.bf16.mxu0 %v5855
    %7086 = vmatpush1.bf16.msra.mxu0 %v5854
    %7087 = vmatprep.subr.bf16.mxu0 %v5865
    %7088 = vmatpush1.bf16.msra.mxu0 %v5864
    %7089 = vmatprep.subr.bf16.mxu0 %v5875
    %7090 = vmatpush1.bf16.msra.mxu0 %v5874
    %7091 = vmatprep.subr.bf16.mxu0 %v5885
    %7092 = vmatpush1.bf16.msra.mxu0 %v5884
    %7093 = vmatprep.mubr.bf16.mxu0 %v1837
    %7094 = vmatmul.mubr.bf16.gmra.mrb[0].mxu0 %v1836
    %v7095 = vpop.f32.mrb[0].mxu0
    %v7096 = vadd.f32 %v7055, %v7095
    %v7097 = vpop.f32.mrb[0].mxu0
    %v7098 = vadd.f32 %v7057, %v7097
    %v7099 = vpop.f32.mrb[0].mxu0
    %v7100 = vpop.f32.mrb[0].mxu0
    %7101 = vdwg.mxu0
    %7102 = vmatprep.subr.bf16.mxu0 %v5097
    %7103 = vmatpush1.bf16.msra.mxu0 %v5096
    %7104 = vmatprep.subr.bf16.mxu0 %v5107
    %7105 = vmatpush1.bf16.msra.mxu0 %v5106
    %7106 = vmatprep.subr.bf16.mxu0 %v5117
    %7107 = vmatpush1.bf16.msra.mxu0 %v5116
    %7108 = vmatprep.subr.bf16.mxu0 %v5127
    %7109 = vmatpush1.bf16.msra.mxu0 %v5126
    %7110 = vmatprep.subr.bf16.mxu0 %v5137
    %7111 = vmatpush1.bf16.msra.mxu0 %v5136
    %7112 = vmatprep.subr.bf16.mxu0 %v5147
    %7113 = vmatpush1.bf16.msra.mxu0 %v5146
    %7114 = vmatprep.subr.bf16.mxu0 %v5157
    %7115 = vmatpush1.bf16.msra.mxu0 %v5156
    %7116 = vmatprep.subr.bf16.mxu0 %v5167
    %7117 = vmatpush1.bf16.msra.mxu0 %v5166
    %7118 = vmatprep.subr.bf16.mxu0 %v5177
    %7119 = vmatpush1.bf16.msra.mxu0 %v5176
    %7120 = vmatprep.subr.bf16.mxu0 %v5187
    %7121 = vmatpush1.bf16.msra.mxu0 %v5186
    %7122 = vmatprep.subr.bf16.mxu0 %v5197
    %7123 = vmatpush1.bf16.msra.mxu0 %v5196
    %7124 = vmatprep.subr.bf16.mxu0 %v5207
    %7125 = vmatpush1.bf16.msra.mxu0 %v5206
    %7126 = vmatprep.subr.bf16.mxu0 %v5217
    %7127 = vmatpush1.bf16.msra.mxu0 %v5216
    %7128 = vmatprep.subr.bf16.mxu0 %v5227
    %7129 = vmatpush1.bf16.msra.mxu0 %v5226
    %7130 = vmatprep.subr.bf16.mxu0 %v5237
    %7131 = vmatpush1.bf16.msra.mxu0 %v5236
    %7132 = vmatprep.subr.bf16.mxu0 %v5247
    %7133 = vmatpush1.bf16.msra.mxu0 %v5246
    %7134 = vmatprep.mubr.bf16.mxu0 %v1829
    %7135 = vmatmul.mubr.bf16.gmra.mrb[0].mxu0 %v1828
    %v7136 = vpop.f32.mrb[0].mxu0
    %v7137 = vadd.f32 %v2661, %v7136
    %v7138 = vpop.f32.mrb[0].mxu0
    %v7139 = vadd.f32 %v2665, %v7138
    %v7140 = vpop.f32.mrb[0].mxu0
    %v7141 = vpop.f32.mrb[0].mxu0
    %7142 = vdwg.mxu0
    %7143 = vmatprep.subr.bf16.mxu0 %v5257
    %7144 = vmatpush1.bf16.msra.mxu0 %v5256
    %7145 = vmatprep.subr.bf16.mxu0 %v5267
    %7146 = vmatpush1.bf16.msra.mxu0 %v5266
    %7147 = vmatprep.subr.bf16.mxu0 %v5277
    %7148 = vmatpush1.bf16.msra.mxu0 %v5276
    %7149 = vmatprep.subr.bf16.mxu0 %v5287
    %7150 = vmatpush1.bf16.msra.mxu0 %v5286
    %7151 = vmatprep.subr.bf16.mxu0 %v5297
    %7152 = vmatpush1.bf16.msra.mxu0 %v5296
    %7153 = vmatprep.subr.bf16.mxu0 %v5307
    %7154 = vmatpush1.bf16.msra.mxu0 %v5306
    %7155 = vmatprep.subr.bf16.mxu0 %v5317
    %7156 = vmatpush1.bf16.msra.mxu0 %v5316
    %7157 = vmatprep.subr.bf16.mxu0 %v5327
    %7158 = vmatpush1.bf16.msra.mxu0 %v5326
    %7159 = vmatprep.subr.bf16.mxu0 %v5337
    %7160 = vmatpush1.bf16.msra.mxu0 %v5336
    %7161 = vmatprep.subr.bf16.mxu0 %v5347
    %7162 = vmatpush1.bf16.msra.mxu0 %v5346
    %7163 = vmatprep.subr.bf16.mxu0 %v5357
    %7164 = vmatpush1.bf16.msra.mxu0 %v5356
    %7165 = vmatprep.subr.bf16.mxu0 %v5367
    %7166 = vmatpush1.bf16.msra.mxu0 %v5366
    %7167 = vmatprep.subr.bf16.mxu0 %v5377
    %7168 = vmatpush1.bf16.msra.mxu0 %v5376
    %7169 = vmatprep.subr.bf16.mxu0 %v5387
    %7170 = vmatpush1.bf16.msra.mxu0 %v5386
    %7171 = vmatprep.subr.bf16.mxu0 %v5397
    %7172 = vmatpush1.bf16.msra.mxu0 %v5396
    %7173 = vmatprep.subr.bf16.mxu0 %v5407
    %7174 = vmatpush1.bf16.msra.mxu0 %v5406
    %7175 = vmatprep.mubr.bf16.mxu0 %v1831
    %7176 = vmatmul.mubr.bf16.gmra.mrb[0].mxu0 %v1830
    %v7177 = vpop.f32.mrb[0].mxu0
    %v7178 = vadd.f32 %v7137, %v7177
    %v7179 = vpop.f32.mrb[0].mxu0
    %v7180 = vadd.f32 %v7139, %v7179
    %v7181 = vpop.f32.mrb[0].mxu0
    %v7182 = vpop.f32.mrb[0].mxu0
    %7183 = vdwg.mxu0
    %7184 = vmatprep.subr.bf16.mxu0 %v5417
    %7185 = vmatpush1.bf16.msra.mxu0 %v5416
    %7186 = vmatprep.subr.bf16.mxu0 %v5427
    %7187 = vmatpush1.bf16.msra.mxu0 %v5426
    %7188 = vmatprep.subr.bf16.mxu0 %v5437
    %7189 = vmatpush1.bf16.msra.mxu0 %v5436
    %7190 = vmatprep.subr.bf16.mxu0 %v5447
    %7191 = vmatpush1.bf16.msra.mxu0 %v5446
    %7192 = vmatprep.subr.bf16.mxu0 %v5457
    %7193 = vmatpush1.bf16.msra.mxu0 %v5456
    %7194 = vmatprep.subr.bf16.mxu0 %v5467
    %7195 = vmatpush1.bf16.msra.mxu0 %v5466
    %7196 = vmatprep.subr.bf16.mxu0 %v5477
    %7197 = vmatpush1.bf16.msra.mxu0 %v5476
    %7198 = vmatprep.subr.bf16.mxu0 %v5487
    %7199 = vmatpush1.bf16.msra.mxu0 %v5486
    %7200 = vmatprep.subr.bf16.mxu0 %v5497
    %7201 = vmatpush1.bf16.msra.mxu0 %v5496
    %7202 = vmatprep.subr.bf16.mxu0 %v5507
    %7203 = vmatpush1.bf16.msra.mxu0 %v5506
    %7204 = vmatprep.subr.bf16.mxu0 %v5517
    %7205 = vmatpush1.bf16.msra.mxu0 %v5516
    %7206 = vmatprep.subr.bf16.mxu0 %v5527
    %7207 = vmatpush1.bf16.msra.mxu0 %v5526
    %7208 = vmatprep.subr.bf16.mxu0 %v5537
    %7209 = vmatpush1.bf16.msra.mxu0 %v5536
    %7210 = vmatprep.subr.bf16.mxu0 %v5547
    %7211 = vmatpush1.bf16.msra.mxu0 %v5546
    %7212 = vmatprep.subr.bf16.mxu0 %v5557
    %7213 = vmatpush1.bf16.msra.mxu0 %v5556
    %7214 = vmatprep.subr.bf16.mxu0 %v5567
    %7215 = vmatpush1.bf16.msra.mxu0 %v5566
    %7216 = vmatprep.mubr.bf16.mxu0 %v1833
    %7217 = vmatmul.mubr.bf16.gmra.mrb[0].mxu0 %v1832
    %v7218 = vpop.f32.mrb[0].mxu0
    %v7219 = vadd.f32 %v7178, %v7218
    %v7220 = vpop.f32.mrb[0].mxu0
    %v7221 = vadd.f32 %v7180, %v7220
    %v7222 = vpop.f32.mrb[0].mxu0
    %v7223 = vpop.f32.mrb[0].mxu0
    %7224 = vdwg.mxu0
    %7225 = vmatprep.subr.bf16.mxu0 %v5577
    %7226 = vmatpush1.bf16.msra.mxu0 %v5576
    %7227 = vmatprep.subr.bf16.mxu0 %v5587
    %7228 = vmatpush1.bf16.msra.mxu0 %v5586
    %7229 = vmatprep.subr.bf16.mxu0 %v5597
    %7230 = vmatpush1.bf16.msra.mxu0 %v5596
    %7231 = vmatprep.subr.bf16.mxu0 %v5607
    %7232 = vmatpush1.bf16.msra.mxu0 %v5606
    %7233 = vmatprep.subr.bf16.mxu0 %v5617
    %7234 = vmatpush1.bf16.msra.mxu0 %v5616
    %7235 = vmatprep.subr.bf16.mxu0 %v5627
    %7236 = vmatpush1.bf16.msra.mxu0 %v5626
    %7237 = vmatprep.subr.bf16.mxu0 %v5637
    %7238 = vmatpush1.bf16.msra.mxu0 %v5636
    %7239 = vmatprep.subr.bf16.mxu0 %v5647
    %7240 = vmatpush1.bf16.msra.mxu0 %v5646
    %7241 = vmatprep.subr.bf16.mxu0 %v5657
    %7242 = vmatpush1.bf16.msra.mxu0 %v5656
    %7243 = vmatprep.subr.bf16.mxu0 %v5667
    %7244 = vmatpush1.bf16.msra.mxu0 %v5666
    %7245 = vmatprep.subr.bf16.mxu0 %v5677
    %7246 = vmatpush1.bf16.msra.mxu0 %v5676
    %7247 = vmatprep.subr.bf16.mxu0 %v5687
    %7248 = vmatpush1.bf16.msra.mxu0 %v5686
    %7249 = vmatprep.subr.bf16.mxu0 %v5697
    %7250 = vmatpush1.bf16.msra.mxu0 %v5696
    %7251 = vmatprep.subr.bf16.mxu0 %v5707
    %7252 = vmatpush1.bf16.msra.mxu0 %v5706
    %7253 = vmatprep.subr.bf16.mxu0 %v5717
    %7254 = vmatpush1.bf16.msra.mxu0 %v5716
    %7255 = vmatprep.subr.bf16.mxu0 %v5727
    %7256 = vmatpush1.bf16.msra.mxu0 %v5726
    %7257 = vmatprep.mubr.bf16.mxu0 %v1835
    %7258 = vmatmul.mubr.bf16.gmra.mrb[0].mxu0 %v1834
    %v7259 = vpop.f32.mrb[0].mxu0
    %v7260 = vadd.f32 %v7219, %v7259
    %v7261 = vpop.f32.mrb[0].mxu0
    %v7262 = vadd.f32 %v7221, %v7261
    %v7263 = vpop.f32.mrb[0].mxu0
    %v7264 = vpop.f32.mrb[0].mxu0
    %7265 = vdwg.mxu0
    %7266 = vmatprep.subr.bf16.mxu0 %v5737
    %7267 = vmatpush1.bf16.msra.mxu0 %v5736
    %7268 = vmatprep.subr.bf16.mxu0 %v5747
    %7269 = vmatpush1.bf16.msra.mxu0 %v5746
    %7270 = vmatprep.subr.bf16.mxu0 %v5757
    %7271 = vmatpush1.bf16.msra.mxu0 %v5756
    %7272 = vmatprep.subr.bf16.mxu0 %v5767
    %7273 = vmatpush1.bf16.msra.mxu0 %v5766
    %7274 = vmatprep.subr.bf16.mxu0 %v5777
    %7275 = vmatpush1.bf16.msra.mxu0 %v5776
    %7276 = vmatprep.subr.bf16.mxu0 %v5787
    %7277 = vmatpush1.bf16.msra.mxu0 %v5786
    %7278 = vmatprep.subr.bf16.mxu0 %v5797
    %7279 = vmatpush1.bf16.msra.mxu0 %v5796
    %7280 = vmatprep.subr.bf16.mxu0 %v5807
    %7281 = vmatpush1.bf16.msra.mxu0 %v5806
    %7282 = vmatprep.subr.bf16.mxu0 %v5817
    %7283 = vmatpush1.bf16.msra.mxu0 %v5816
    %7284 = vmatprep.subr.bf16.mxu0 %v5827
    %7285 = vmatpush1.bf16.msra.mxu0 %v5826
    %7286 = vmatprep.subr.bf16.mxu0 %v5837
    %7287 = vmatpush1.bf16.msra.mxu0 %v5836
    %7288 = vmatprep.subr.bf16.mxu0 %v5847
    %7289 = vmatpush1.bf16.msra.mxu0 %v5846
    %7290 = vmatprep.subr.bf16.mxu0 %v5857
    %7291 = vmatpush1.bf16.msra.mxu0 %v5856
    %7292 = vmatprep.subr.bf16.mxu0 %v5867
    %7293 = vmatpush1.bf16.msra.mxu0 %v5866
    %7294 = vmatprep.subr.bf16.mxu0 %v5877
    %7295 = vmatpush1.bf16.msra.mxu0 %v5876
    %7296 = vmatprep.subr.bf16.mxu0 %v5887
    %7297 = vmatpush1.bf16.msra.mxu0 %v5886
    %7298 = vmatprep.mubr.bf16.mxu0 %v1837
    %7299 = vmatmul.mubr.bf16.gmra.mrb[0].mxu0 %v1836
    %v7300 = vpop.f32.mrb[0].mxu0
    %v7301 = vadd.f32 %v7260, %v7300
    %v7302 = vpop.f32.mrb[0].mxu0
    %v7303 = vadd.f32 %v7262, %v7302
    %v7304 = vpop.f32.mrb[0].mxu0
    %v7305 = vpop.f32.mrb[0].mxu0
    %7306 = vdwg.mxu0
    %7307 = vmatprep.subr.bf16.mxu0 %v5099
    %7308 = vmatpush1.bf16.msra.mxu0 %v5098
    %7309 = vmatprep.subr.bf16.mxu0 %v5109
    %7310 = vmatpush1.bf16.msra.mxu0 %v5108
    %7311 = vmatprep.subr.bf16.mxu0 %v5119
    %7312 = vmatpush1.bf16.msra.mxu0 %v5118
    %7313 = vmatprep.subr.bf16.mxu0 %v5129
    %7314 = vmatpush1.bf16.msra.mxu0 %v5128
    %7315 = vmatprep.subr.bf16.mxu0 %v5139
    %7316 = vmatpush1.bf16.msra.mxu0 %v5138
    %7317 = vmatprep.subr.bf16.mxu0 %v5149
    %7318 = vmatpush1.bf16.msra.mxu0 %v5148
    %7319 = vmatprep.subr.bf16.mxu0 %v5159
    %7320 = vmatpush1.bf16.msra.mxu0 %v5158
    %7321 = vmatprep.subr.bf16.mxu0 %v5169
    %7322 = vmatpush1.bf16.msra.mxu0 %v5168
    %7323 = vmatprep.subr.bf16.mxu0 %v5179
    %7324 = vmatpush1.bf16.msra.mxu0 %v5178
    %7325 = vmatprep.subr.bf16.mxu0 %v5189
    %7326 = vmatpush1.bf16.msra.mxu0 %v5188
    %7327 = vmatprep.subr.bf16.mxu0 %v5199
    %7328 = vmatpush1.bf16.msra.mxu0 %v5198
    %7329 = vmatprep.subr.bf16.mxu0 %v5209
    %7330 = vmatpush1.bf16.msra.mxu0 %v5208
    %7331 = vmatprep.subr.bf16.mxu0 %v5219
    %7332 = vmatpush1.bf16.msra.mxu0 %v5218
    %7333 = vmatprep.subr.bf16.mxu0 %v5229
    %7334 = vmatpush1.bf16.msra.mxu0 %v5228
    %7335 = vmatprep.subr.bf16.mxu0 %v5239
    %7336 = vmatpush1.bf16.msra.mxu0 %v5238
    %7337 = vmatprep.subr.bf16.mxu0 %v5249
    %7338 = vmatpush1.bf16.msra.mxu0 %v5248
    %7339 = vmatprep.mubr.bf16.mxu0 %v1829
    %7340 = vmatmul.mubr.bf16.gmra.mrb[0].mxu0 %v1828
    %v7341 = vpop.f32.mrb[0].mxu0
    %v7342 = vadd.f32 %v2669, %v7341
    %v7343 = vpop.f32.mrb[0].mxu0
    %v7344 = vadd.f32 %v2673, %v7343
    %v7345 = vpop.f32.mrb[0].mxu0
    %v7346 = vpop.f32.mrb[0].mxu0
    %7347 = vdwg.mxu0
    %7348 = vmatprep.subr.bf16.mxu0 %v5259
    %7349 = vmatpush1.bf16.msra.mxu0 %v5258
    %7350 = vmatprep.subr.bf16.mxu0 %v5269
    %7351 = vmatpush1.bf16.msra.mxu0 %v5268
    %7352 = vmatprep.subr.bf16.mxu0 %v5279
    %7353 = vmatpush1.bf16.msra.mxu0 %v5278
    %7354 = vmatprep.subr.bf16.mxu0 %v5289
    %7355 = vmatpush1.bf16.msra.mxu0 %v5288
    %7356 = vmatprep.subr.bf16.mxu0 %v5299
    %7357 = vmatpush1.bf16.msra.mxu0 %v5298
    %7358 = vmatprep.subr.bf16.mxu0 %v5309
    %7359 = vmatpush1.bf16.msra.mxu0 %v5308
    %7360 = vmatprep.subr.bf16.mxu0 %v5319
    %7361 = vmatpush1.bf16.msra.mxu0 %v5318
    %7362 = vmatprep.subr.bf16.mxu0 %v5329
    %7363 = vmatpush1.bf16.msra.mxu0 %v5328
    %7364 = vmatprep.subr.bf16.mxu0 %v5339
    %7365 = vmatpush1.bf16.msra.mxu0 %v5338
    %7366 = vmatprep.subr.bf16.mxu0 %v5349
    %7367 = vmatpush1.bf16.msra.mxu0 %v5348
    %7368 = vmatprep.subr.bf16.mxu0 %v5359
    %7369 = vmatpush1.bf16.msra.mxu0 %v5358
    %7370 = vmatprep.subr.bf16.mxu0 %v5369
    %7371 = vmatpush1.bf16.msra.mxu0 %v5368
    %7372 = vmatprep.subr.bf16.mxu0 %v5379
    %7373 = vmatpush1.bf16.msra.mxu0 %v5378
    %7374 = vmatprep.subr.bf16.mxu0 %v5389
    %7375 = vmatpush1.bf16.msra.mxu0 %v5388
    %7376 = vmatprep.subr.bf16.mxu0 %v5399
    %7377 = vmatpush1.bf16.msra.mxu0 %v5398
    %7378 = vmatprep.subr.bf16.mxu0 %v5409
    %7379 = vmatpush1.bf16.msra.mxu0 %v5408
    %7380 = vmatprep.mubr.bf16.mxu0 %v1831
    %7381 = vmatmul.mubr.bf16.gmra.mrb[0].mxu0 %v1830
    %v7382 = vpop.f32.mrb[0].mxu0
    %v7383 = vadd.f32 %v7342, %v7382
    %v7384 = vpop.f32.mrb[0].mxu0
    %v7385 = vadd.f32 %v7344, %v7384
    %v7386 = vpop.f32.mrb[0].mxu0
    %v7387 = vpop.f32.mrb[0].mxu0
    %7388 = vdwg.mxu0
    %7389 = vmatprep.subr.bf16.mxu0 %v5419
    %7390 = vmatpush1.bf16.msra.mxu0 %v5418
    %7391 = vmatprep.subr.bf16.mxu0 %v5429
    %7392 = vmatpush1.bf16.msra.mxu0 %v5428
    %7393 = vmatprep.subr.bf16.mxu0 %v5439
    %7394 = vmatpush1.bf16.msra.mxu0 %v5438
    %7395 = vmatprep.subr.bf16.mxu0 %v5449
    %7396 = vmatpush1.bf16.msra.mxu0 %v5448
    %7397 = vmatprep.subr.bf16.mxu0 %v5459
    %7398 = vmatpush1.bf16.msra.mxu0 %v5458
    %7399 = vmatprep.subr.bf16.mxu0 %v5469
    %7400 = vmatpush1.bf16.msra.mxu0 %v5468
    %7401 = vmatprep.subr.bf16.mxu0 %v5479
    %7402 = vmatpush1.bf16.msra.mxu0 %v5478
    %7403 = vmatprep.subr.bf16.mxu0 %v5489
    %7404 = vmatpush1.bf16.msra.mxu0 %v5488
    %7405 = vmatprep.subr.bf16.mxu0 %v5499
    %7406 = vmatpush1.bf16.msra.mxu0 %v5498
    %7407 = vmatprep.subr.bf16.mxu0 %v5509
    %7408 = vmatpush1.bf16.msra.mxu0 %v5508
    %7409 = vmatprep.subr.bf16.mxu0 %v5519
    %7410 = vmatpush1.bf16.msra.mxu0 %v5518
    %7411 = vmatprep.subr.bf16.mxu0 %v5529
    %7412 = vmatpush1.bf16.msra.mxu0 %v5528
    %7413 = vmatprep.subr.bf16.mxu0 %v5539
    %7414 = vmatpush1.bf16.msra.mxu0 %v5538
    %7415 = vmatprep.subr.bf16.mxu0 %v5549
    %7416 = vmatpush1.bf16.msra.mxu0 %v5548
    %7417 = vmatprep.subr.bf16.mxu0 %v5559
    %7418 = vmatpush1.bf16.msra.mxu0 %v5558
    %7419 = vmatprep.subr.bf16.mxu0 %v5569
    %7420 = vmatpush1.bf16.msra.mxu0 %v5568
    %7421 = vmatprep.mubr.bf16.mxu0 %v1833
    %7422 = vmatmul.mubr.bf16.gmra.mrb[0].mxu0 %v1832
    %v7423 = vpop.f32.mrb[0].mxu0
    %v7424 = vadd.f32 %v7383, %v7423
    %v7425 = vpop.f32.mrb[0].mxu0
    %v7426 = vadd.f32 %v7385, %v7425
    %v7427 = vpop.f32.mrb[0].mxu0
    %v7428 = vpop.f32.mrb[0].mxu0
    %7429 = vdwg.mxu0
    %7430 = vmatprep.subr.bf16.mxu0 %v5579
    %7431 = vmatpush1.bf16.msra.mxu0 %v5578
    %7432 = vmatprep.subr.bf16.mxu0 %v5589
    %7433 = vmatpush1.bf16.msra.mxu0 %v5588
    %7434 = vmatprep.subr.bf16.mxu0 %v5599
    %7435 = vmatpush1.bf16.msra.mxu0 %v5598
    %7436 = vmatprep.subr.bf16.mxu0 %v5609
    %7437 = vmatpush1.bf16.msra.mxu0 %v5608
    %7438 = vmatprep.subr.bf16.mxu0 %v5619
    %7439 = vmatpush1.bf16.msra.mxu0 %v5618
    %7440 = vmatprep.subr.bf16.mxu0 %v5629
    %7441 = vmatpush1.bf16.msra.mxu0 %v5628
    %7442 = vmatprep.subr.bf16.mxu0 %v5639
    %7443 = vmatpush1.bf16.msra.mxu0 %v5638
    %7444 = vmatprep.subr.bf16.mxu0 %v5649
    %7445 = vmatpush1.bf16.msra.mxu0 %v5648
    %7446 = vmatprep.subr.bf16.mxu0 %v5659
    %7447 = vmatpush1.bf16.msra.mxu0 %v5658
    %7448 = vmatprep.subr.bf16.mxu0 %v5669
    %7449 = vmatpush1.bf16.msra.mxu0 %v5668
    %7450 = vmatprep.subr.bf16.mxu0 %v5679
    %7451 = vmatpush1.bf16.msra.mxu0 %v5678
    %7452 = vmatprep.subr.bf16.mxu0 %v5689
    %7453 = vmatpush1.bf16.msra.mxu0 %v5688
    %7454 = vmatprep.subr.bf16.mxu0 %v5699
    %7455 = vmatpush1.bf16.msra.mxu0 %v5698
    %7456 = vmatprep.subr.bf16.mxu0 %v5709
    %7457 = vmatpush1.bf16.msra.mxu0 %v5708
    %7458 = vmatprep.subr.bf16.mxu0 %v5719
    %7459 = vmatpush1.bf16.msra.mxu0 %v5718
    %7460 = vmatprep.subr.bf16.mxu0 %v5729
    %7461 = vmatpush1.bf16.msra.mxu0 %v5728
    %7462 = vmatprep.mubr.bf16.mxu0 %v1835
    %7463 = vmatmul.mubr.bf16.gmra.mrb[0].mxu0 %v1834
    %v7464 = vpop.f32.mrb[0].mxu0
    %v7465 = vadd.f32 %v7424, %v7464
    %v7466 = vpop.f32.mrb[0].mxu0
    %v7467 = vadd.f32 %v7426, %v7466
    %v7468 = vpop.f32.mrb[0].mxu0
    %v7469 = vpop.f32.mrb[0].mxu0
    %7470 = vdwg.mxu0
    %7471 = vmatprep.subr.bf16.mxu0 %v5739
    %7472 = vmatpush1.bf16.msra.mxu0 %v5738
    %7473 = vmatprep.subr.bf16.mxu0 %v5749
    %7474 = vmatpush1.bf16.msra.mxu0 %v5748
    %7475 = vmatprep.subr.bf16.mxu0 %v5759
    %7476 = vmatpush1.bf16.msra.mxu0 %v5758
    %7477 = vmatprep.subr.bf16.mxu0 %v5769
    %7478 = vmatpush1.bf16.msra.mxu0 %v5768
    %7479 = vmatprep.subr.bf16.mxu0 %v5779
    %7480 = vmatpush1.bf16.msra.mxu0 %v5778
    %7481 = vmatprep.subr.bf16.mxu0 %v5789
    %7482 = vmatpush1.bf16.msra.mxu0 %v5788
    %7483 = vmatprep.subr.bf16.mxu0 %v5799
    %7484 = vmatpush1.bf16.msra.mxu0 %v5798
    %7485 = vmatprep.subr.bf16.mxu0 %v5809
    %7486 = vmatpush1.bf16.msra.mxu0 %v5808
    %7487 = vmatprep.subr.bf16.mxu0 %v5819
    %7488 = vmatpush1.bf16.msra.mxu0 %v5818
    %7489 = vmatprep.subr.bf16.mxu0 %v5829
    %7490 = vmatpush1.bf16.msra.mxu0 %v5828
    %7491 = vmatprep.subr.bf16.mxu0 %v5839
    %7492 = vmatpush1.bf16.msra.mxu0 %v5838
    %7493 = vmatprep.subr.bf16.mxu0 %v5849
    %7494 = vmatpush1.bf16.msra.mxu0 %v5848
    %7495 = vmatprep.subr.bf16.mxu0 %v5859
    %7496 = vmatpush1.bf16.msra.mxu0 %v5858
    %7497 = vmatprep.subr.bf16.mxu0 %v5869
    %7498 = vmatpush1.bf16.msra.mxu0 %v5868
    %7499 = vmatprep.subr.bf16.mxu0 %v5879
    %7500 = vmatpush1.bf16.msra.mxu0 %v5878
    %7501 = vmatprep.subr.bf16.mxu0 %v5889
    %7502 = vmatpush1.bf16.msra.mxu0 %v5888
    %7503 = vmatprep.mubr.bf16.mxu0 %v1837
    %7504 = vmatmul.mubr.bf16.gmra.mrb[0].mxu0 %v1836
    %v7505 = vpop.f32.mrb[0].mxu0
    %v7506 = vadd.f32 %v7465, %v7505
    %v7507 = vpop.f32.mrb[0].mxu0
    %v7508 = vadd.f32 %v7467, %v7507
    %v7509 = vpop.f32.mrb[0].mxu0
    %v7510 = vpop.f32.mrb[0].mxu0
    %7511 = vdwg.mxu0
    %7512 = vmatprep.subr.bf16.mxu0 %v5101
    %7513 = vmatpush1.bf16.msra.mxu0 %v5100
    %7514 = vmatprep.subr.bf16.mxu0 %v5111
    %7515 = vmatpush1.bf16.msra.mxu0 %v5110
    %7516 = vmatprep.subr.bf16.mxu0 %v5121
    %7517 = vmatpush1.bf16.msra.mxu0 %v5120
    %7518 = vmatprep.subr.bf16.mxu0 %v5131
    %7519 = vmatpush1.bf16.msra.mxu0 %v5130
    %7520 = vmatprep.subr.bf16.mxu0 %v5141
    %7521 = vmatpush1.bf16.msra.mxu0 %v5140
    %7522 = vmatprep.subr.bf16.mxu0 %v5151
    %7523 = vmatpush1.bf16.msra.mxu0 %v5150
    %7524 = vmatprep.subr.bf16.mxu0 %v5161
    %7525 = vmatpush1.bf16.msra.mxu0 %v5160
    %7526 = vmatprep.subr.bf16.mxu0 %v5171
    %7527 = vmatpush1.bf16.msra.mxu0 %v5170
    %7528 = vmatprep.subr.bf16.mxu0 %v5181
    %7529 = vmatpush1.bf16.msra.mxu0 %v5180
    %7530 = vmatprep.subr.bf16.mxu0 %v5191
    %7531 = vmatpush1.bf16.msra.mxu0 %v5190
    %7532 = vmatprep.subr.bf16.mxu0 %v5201
    %7533 = vmatpush1.bf16.msra.mxu0 %v5200
    %7534 = vmatprep.subr.bf16.mxu0 %v5211
    %7535 = vmatpush1.bf16.msra.mxu0 %v5210
    %7536 = vmatprep.subr.bf16.mxu0 %v5221
    %7537 = vmatpush1.bf16.msra.mxu0 %v5220
    %7538 = vmatprep.subr.bf16.mxu0 %v5231
    %7539 = vmatpush1.bf16.msra.mxu0 %v5230
    %7540 = vmatprep.subr.bf16.mxu0 %v5241
    %7541 = vmatpush1.bf16.msra.mxu0 %v5240
    %7542 = vmatprep.subr.bf16.mxu0 %v5251
    %7543 = vmatpush1.bf16.msra.mxu0 %v5250
    %7544 = vmatprep.mubr.bf16.mxu0 %v1829
    %7545 = vmatmul.mubr.bf16.gmra.mrb[0].mxu0 %v1828
    %v7546 = vpop.f32.mrb[0].mxu0
    %v7547 = vadd.f32 %v2677, %v7546
    %v7548 = vpop.f32.mrb[0].mxu0
    %v7549 = vadd.f32 %v2681, %v7548
    %v7550 = vpop.f32.mrb[0].mxu0
    %v7551 = vpop.f32.mrb[0].mxu0
    %7552 = vdwg.mxu0
    %7553 = vmatprep.subr.bf16.mxu0 %v5261
    %7554 = vmatpush1.bf16.msra.mxu0 %v5260
    %7555 = vmatprep.subr.bf16.mxu0 %v5271
    %7556 = vmatpush1.bf16.msra.mxu0 %v5270
    %7557 = vmatprep.subr.bf16.mxu0 %v5281
    %7558 = vmatpush1.bf16.msra.mxu0 %v5280
    %7559 = vmatprep.subr.bf16.mxu0 %v5291
    %7560 = vmatpush1.bf16.msra.mxu0 %v5290
    %7561 = vmatprep.subr.bf16.mxu0 %v5301
    %7562 = vmatpush1.bf16.msra.mxu0 %v5300
    %7563 = vmatprep.subr.bf16.mxu0 %v5311
    %7564 = vmatpush1.bf16.msra.mxu0 %v5310
    %7565 = vmatprep.subr.bf16.mxu0 %v5321
    %7566 = vmatpush1.bf16.msra.mxu0 %v5320
    %7567 = vmatprep.subr.bf16.mxu0 %v5331
    %7568 = vmatpush1.bf16.msra.mxu0 %v5330
    %7569 = vmatprep.subr.bf16.mxu0 %v5341
    %7570 = vmatpush1.bf16.msra.mxu0 %v5340
    %7571 = vmatprep.subr.bf16.mxu0 %v5351
    %7572 = vmatpush1.bf16.msra.mxu0 %v5350
    %7573 = vmatprep.subr.bf16.mxu0 %v5361
    %7574 = vmatpush1.bf16.msra.mxu0 %v5360
    %7575 = vmatprep.subr.bf16.mxu0 %v5371
    %7576 = vmatpush1.bf16.msra.mxu0 %v5370
    %7577 = vmatprep.subr.bf16.mxu0 %v5381
    %7578 = vmatpush1.bf16.msra.mxu0 %v5380
    %7579 = vmatprep.subr.bf16.mxu0 %v5391
    %7580 = vmatpush1.bf16.msra.mxu0 %v5390
    %7581 = vmatprep.subr.bf16.mxu0 %v5401
    %7582 = vmatpush1.bf16.msra.mxu0 %v5400
    %7583 = vmatprep.subr.bf16.mxu0 %v5411
    %7584 = vmatpush1.bf16.msra.mxu0 %v5410
    %7585 = vmatprep.mubr.bf16.mxu0 %v1831
    %7586 = vmatmul.mubr.bf16.gmra.mrb[0].mxu0 %v1830
    %v7587 = vpop.f32.mrb[0].mxu0
    %v7588 = vadd.f32 %v7547, %v7587
    %v7589 = vpop.f32.mrb[0].mxu0
    %v7590 = vadd.f32 %v7549, %v7589
    %v7591 = vpop.f32.mrb[0].mxu0
    %v7592 = vpop.f32.mrb[0].mxu0
    %7593 = vdwg.mxu0
    %7594 = vmatprep.subr.bf16.mxu0 %v5421
    %7595 = vmatpush1.bf16.msra.mxu0 %v5420
    %7596 = vmatprep.subr.bf16.mxu0 %v5431
    %7597 = vmatpush1.bf16.msra.mxu0 %v5430
    %7598 = vmatprep.subr.bf16.mxu0 %v5441
    %7599 = vmatpush1.bf16.msra.mxu0 %v5440
    %7600 = vmatprep.subr.bf16.mxu0 %v5451
    %7601 = vmatpush1.bf16.msra.mxu0 %v5450
    %7602 = vmatprep.subr.bf16.mxu0 %v5461
    %7603 = vmatpush1.bf16.msra.mxu0 %v5460
    %7604 = vmatprep.subr.bf16.mxu0 %v5471
    %7605 = vmatpush1.bf16.msra.mxu0 %v5470
    %7606 = vmatprep.subr.bf16.mxu0 %v5481
    %7607 = vmatpush1.bf16.msra.mxu0 %v5480
    %7608 = vmatprep.subr.bf16.mxu0 %v5491
    %7609 = vmatpush1.bf16.msra.mxu0 %v5490
    %7610 = vmatprep.subr.bf16.mxu0 %v5501
    %7611 = vmatpush1.bf16.msra.mxu0 %v5500
    %7612 = vmatprep.subr.bf16.mxu0 %v5511
    %7613 = vmatpush1.bf16.msra.mxu0 %v5510
    %7614 = vmatprep.subr.bf16.mxu0 %v5521
    %7615 = vmatpush1.bf16.msra.mxu0 %v5520
    %7616 = vmatprep.subr.bf16.mxu0 %v5531
    %7617 = vmatpush1.bf16.msra.mxu0 %v5530
    %7618 = vmatprep.subr.bf16.mxu0 %v5541
    %7619 = vmatpush1.bf16.msra.mxu0 %v5540
    %7620 = vmatprep.subr.bf16.mxu0 %v5551
    %7621 = vmatpush1.bf16.msra.mxu0 %v5550
    %7622 = vmatprep.subr.bf16.mxu0 %v5561
    %7623 = vmatpush1.bf16.msra.mxu0 %v5560
    %7624 = vmatprep.subr.bf16.mxu0 %v5571
    %7625 = vmatpush1.bf16.msra.mxu0 %v5570
    %7626 = vmatprep.mubr.bf16.mxu0 %v1833
    %7627 = vmatmul.mubr.bf16.gmra.mrb[0].mxu0 %v1832
    %v7628 = vpop.f32.mrb[0].mxu0
    %v7629 = vadd.f32 %v7588, %v7628
    %v7630 = vpop.f32.mrb[0].mxu0
    %v7631 = vadd.f32 %v7590, %v7630
    %v7632 = vpop.f32.mrb[0].mxu0
    %v7633 = vpop.f32.mrb[0].mxu0
    %7634 = vdwg.mxu0
    %7635 = vmatprep.subr.bf16.mxu0 %v5581
    %7636 = vmatpush1.bf16.msra.mxu0 %v5580
    %7637 = vmatprep.subr.bf16.mxu0 %v5591
    %7638 = vmatpush1.bf16.msra.mxu0 %v5590
    %7639 = vmatprep.subr.bf16.mxu0 %v5601
    %7640 = vmatpush1.bf16.msra.mxu0 %v5600
    %7641 = vmatprep.subr.bf16.mxu0 %v5611
    %7642 = vmatpush1.bf16.msra.mxu0 %v5610
    %7643 = vmatprep.subr.bf16.mxu0 %v5621
    %7644 = vmatpush1.bf16.msra.mxu0 %v5620
    %7645 = vmatprep.subr.bf16.mxu0 %v5631
    %7646 = vmatpush1.bf16.msra.mxu0 %v5630
    %7647 = vmatprep.subr.bf16.mxu0 %v5641
    %7648 = vmatpush1.bf16.msra.mxu0 %v5640
    %7649 = vmatprep.subr.bf16.mxu0 %v5651
    %7650 = vmatpush1.bf16.msra.mxu0 %v5650
    %7651 = vmatprep.subr.bf16.mxu0 %v5661
    %7652 = vmatpush1.bf16.msra.mxu0 %v5660
    %7653 = vmatprep.subr.bf16.mxu0 %v5671
    %7654 = vmatpush1.bf16.msra.mxu0 %v5670
    %7655 = vmatprep.subr.bf16.mxu0 %v5681
    %7656 = vmatpush1.bf16.msra.mxu0 %v5680
    %7657 = vmatprep.subr.bf16.mxu0 %v5691
    %7658 = vmatpush1.bf16.msra.mxu0 %v5690
    %7659 = vmatprep.subr.bf16.mxu0 %v5701
    %7660 = vmatpush1.bf16.msra.mxu0 %v5700
    %7661 = vmatprep.subr.bf16.mxu0 %v5711
    %7662 = vmatpush1.bf16.msra.mxu0 %v5710
    %7663 = vmatprep.subr.bf16.mxu0 %v5721
    %7664 = vmatpush1.bf16.msra.mxu0 %v5720
    %7665 = vmatprep.subr.bf16.mxu0 %v5731
    %7666 = vmatpush1.bf16.msra.mxu0 %v5730
    %7667 = vmatprep.mubr.bf16.mxu0 %v1835
    %7668 = vmatmul.mubr.bf16.gmra.mrb[0].mxu0 %v1834
    %v7669 = vpop.f32.mrb[0].mxu0
    %v7670 = vadd.f32 %v7629, %v7669
    %v7671 = vpop.f32.mrb[0].mxu0
    %v7672 = vadd.f32 %v7631, %v7671
    %v7673 = vpop.f32.mrb[0].mxu0
    %v7674 = vpop.f32.mrb[0].mxu0
    %7675 = vdwg.mxu0
    %7676 = vmatprep.subr.bf16.mxu0 %v5741
    %7677 = vmatpush1.bf16.msra.mxu0 %v5740
    %7678 = vmatprep.subr.bf16.mxu0 %v5751
    %7679 = vmatpush1.bf16.msra.mxu0 %v5750
    %7680 = vmatprep.subr.bf16.mxu0 %v5761
    %7681 = vmatpush1.bf16.msra.mxu0 %v5760
    %7682 = vmatprep.subr.bf16.mxu0 %v5771
    %7683 = vmatpush1.bf16.msra.mxu0 %v5770
    %7684 = vmatprep.subr.bf16.mxu0 %v5781
    %7685 = vmatpush1.bf16.msra.mxu0 %v5780
    %7686 = vmatprep.subr.bf16.mxu0 %v5791
    %7687 = vmatpush1.bf16.msra.mxu0 %v5790
    %7688 = vmatprep.subr.bf16.mxu0 %v5801
    %7689 = vmatpush1.bf16.msra.mxu0 %v5800
    %7690 = vmatprep.subr.bf16.mxu0 %v5811
    %7691 = vmatpush1.bf16.msra.mxu0 %v5810
    %7692 = vmatprep.subr.bf16.mxu0 %v5821
    %7693 = vmatpush1.bf16.msra.mxu0 %v5820
    %7694 = vmatprep.subr.bf16.mxu0 %v5831
    %7695 = vmatpush1.bf16.msra.mxu0 %v5830
    %7696 = vmatprep.subr.bf16.mxu0 %v5841
    %7697 = vmatpush1.bf16.msra.mxu0 %v5840
    %7698 = vmatprep.subr.bf16.mxu0 %v5851
    %7699 = vmatpush1.bf16.msra.mxu0 %v5850
    %7700 = vmatprep.subr.bf16.mxu0 %v5861
    %7701 = vmatpush1.bf16.msra.mxu0 %v5860
    %7702 = vmatprep.subr.bf16.mxu0 %v5871
    %7703 = vmatpush1.bf16.msra.mxu0 %v5870
    %7704 = vmatprep.subr.bf16.mxu0 %v5881
    %7705 = vmatpush1.bf16.msra.mxu0 %v5880
    %7706 = vmatprep.subr.bf16.mxu0 %v5891
    %7707 = vmatpush1.bf16.msra.mxu0 %v5890
    %7708 = vmatprep.mubr.bf16.mxu0 %v1837
    %7709 = vmatmul.mubr.bf16.gmra.mrb[0].mxu0 %v1836
    %v7710 = vpop.f32.mrb[0].mxu0
    %v7711 = vadd.f32 %v7670, %v7710
    %v7712 = vpop.f32.mrb[0].mxu0
    %v7713 = vadd.f32 %v7672, %v7712
    %v7714 = vpop.f32.mrb[0].mxu0
    %v7715 = vpop.f32.mrb[0].mxu0
    %7716 = vdwg.mxu0
    %7717 = vst [vmem:[#allocation11] sm:$0xff] %v6891
    %7718 = vst [vmem:[#allocation11 + $0x8] sm:$0xff] %v6893
    %7719 = vst [vmem:[#allocation11 + $0x10] sm:$0xff] %v7096
    %7720 = vst [vmem:[#allocation11 + $0x18] sm:$0xff] %v7098
    %7721 = vst [vmem:[#allocation11 + $0x20] sm:$0xff] %v7301
    %7722 = vst [vmem:[#allocation11 + $0x28] sm:$0xff] %v7303
    %7723 = vst [vmem:[#allocation11 + $0x30] sm:$0xff] %v7506
    %7724 = vst [vmem:[#allocation11 + $0x38] sm:$0xff] %v7508
    %7725 = vst [vmem:[#allocation11 + $0x40] sm:$0xff] %v7711
    %7726 = vst [vmem:[#allocation11 + $0x48] sm:$0xff] %v7713
    // Predicated region
    $region42: #{tpu_custom_call.1} parent=1 // pred_check
      _
    $region43: #{tpu_custom_call.1} parent=1 // pred_check_branch
      %7728 = sbr.rel (0) target = $region45
    $region44: #{tpu_custom_call.1} parent=1 // pred_region
      %s7730 = ssub.s32 1280, 1280
      %7731 = vsyncadd [#allocation4], %s7730
      %s7733 = sshll.u32 [#allocation11], 4
      %s7734 = int_to_ptr.vmem [resolvable:$true] %s7733
      %7736 = dma.vmem_to_hbm [thread:$0]  %s7734, 1280, %s5, [#allocation4]
    $region45: #{tpu_custom_call.1} parent=1 // pred_fallthru
      _
    // Predicated region
    $region46: #{tpu_custom_call.1} parent=1 // pred_check
      _
    $region47: #{tpu_custom_call.1} parent=1 // pred_check_branch
      %7738 = sbr.rel (0) target = $region49
    $region48: #{tpu_custom_call.1} parent=1 // pred_region
      %7739 = dma.done [#allocation4], 1280
    $region49: #{tpu_custom_call.1} parent=1 // pred_fallthru
      _
    %7740 = vsyncpa [#allocation3], 1
    %7741 = vsyncpa [#allocation6], 1
    %7742 = vsyncpa [#allocation9], 1
    %7743 = vsyncpa [#allocation4], 1

</llo_original>
